<compile_context>
chip_gen: v6e
topology: v6e:2x2x1
jax: 0.10.0
libtpu: 0.0.40
codegen_flags: <defaults>
</compile_context>

<pallas_src>
import math

import jax
import jax.numpy as jnp
from jax import lax
from jax.experimental import pallas as pl
from jax.experimental.pallas import tpu as pltpu


# Set to jnp.bfloat16 on v6e/v7x at realistic roi_num for ~2x MXU throughput and
# half the weight VMEM/DMA bytes (accumulation stays f32; LayerNorm/softmax math
# stays f32 either way).  Kept f32 here to match the PyTorch module's precision.
MATMUL_DTYPE = jnp.float32


# ----------------------------------------------------------------------------
# Fused kernel: L encoder layers + mask zeroing + cosine features + classifier.
# ----------------------------------------------------------------------------
def _make_fused_kernel(Bc, K, D, H, L, C):
    hd = D // H
    scale = 1.0 / math.sqrt(hd)
    eps = 1e-5
    f32 = jnp.float32

    def mm(a, b):
        return jnp.dot(a.astype(MATMUL_DTYPE), b.astype(MATMUL_DTYPE),
                       preferred_element_type=f32)

    def kernel(x_ref, bias_ref, mrow_ref,
               wqkv_ref, bqkv_ref, wo_ref, bo_ref,
               g1_ref, be1_ref, w1_ref, b1_ref, w2_ref, b2_ref,
               g2_ref, be2_ref, w3_ref, lb_ref, o_ref):
        y = x_ref[...].astype(f32)           # (Bc*K, D) activation slab
        bias = bias_ref[...].astype(f32)     # (Bc, 1, K) additive key-padding bias
        mrow = mrow_ref[...].astype(f32)     # (Bc*K, 1)  1.0 at padded time rows

        def layer_norm(z, g, b):
            mu = jnp.mean(z, axis=-1, keepdims=True)
            var = jnp.mean((z - mu) ** 2, axis=-1, keepdims=True)
            return (z - mu) * lax.rsqrt(var + eps) * g + b

        # -------- L post-norm TransformerEncoderLayers (dropout = identity) ----
        for l in range(L):
            # fused QKV projection for the whole chunk: one MXU push
            qkv = mm(y, wqkv_ref[l]) + bqkv_ref[l]              # (Bc*K, 3D)

            # per-(sample, head) scaled-dot-product attention on slices of qkv
            rows = []
            for bi in range(Bc):
                r0 = bi * K
                key_bias = bias[bi]                             # (1, K)
                heads = []
                for h in range(H):
                    q = qkv[r0:r0 + K, h * hd:(h + 1) * hd]
                    k = qkv[r0:r0 + K, D + h * hd:D + (h + 1) * hd]
                    v = qkv[r0:r0 + K, 2 * D + h * hd:2 * D + (h + 1) * hd]
                    s = lax.dot_general(q, k, (((1,), (1,)), ((), ())),
                                        preferred_element_type=f32) * scale
                    s = s + key_bias                            # finite -1e30 mask
                    s = s - jnp.max(s, axis=-1, keepdims=True)
                    e = jnp.exp(s)
                    p = e * pl.reciprocal(jnp.sum(e, axis=-1, keepdims=True),
                                          approx=True)
                    heads.append(mm(p, v))                      # (K, hd)
                rows.append(jnp.concatenate(heads, axis=-1))    # (K, D)
            attn = jnp.concatenate(rows, axis=0)                # (Bc*K, D)

            # single out-projection + residual + LayerNorm1
            attn = mm(attn, wo_ref[l]) + bo_ref[l]
            y = layer_norm(y + attn, g1_ref[l], be1_ref[l])

            # ReLU feed-forward + residual + LayerNorm2
            ff = jnp.maximum(mm(y, w1_ref[l]) + b1_ref[l], 0.0)
            ff = mm(ff, w2_ref[l]) + b2_ref[l]
            y = layer_norm(y + ff, g2_ref[l], be2_ref[l])

        # -------- post-encoder key-padding zeroing (x[x_mask, :] = 0) ----------
        y = y * (1.0 - mrow)

        # -------- cosine gram folded into the classifier -----------------------
        # logits[c] = sum_{i<j} cos(roi_i, roi_j) * W[c, pos(i,j)]
        #           = sum_{k,j} xn[k,j] * (xn @ W3[c])[k,j]   (quadratic form),
        # with W3[c] the (D,D) upper-triangular weight cube -> no transpose,
        # no triu gather, no (D,D)->(D*D) reshape.
        for bi in range(Bc):
            xe = y[bi * K:(bi + 1) * K, :]                              # (K, D)
            nrm = jnp.sqrt(jnp.sum(xe * xe, axis=0, keepdims=True))     # (1, D)
            xn = xe / jnp.maximum(nrm, 1e-12)                           # F.normalize
            cls = []
            for c in range(C):
                yc = jnp.dot(xn, w3_ref[c], preferred_element_type=f32)  # (K, D)
                t = jnp.sum(yc * xn, axis=-1, keepdims=True)             # (K, 1)
                cls.append(jnp.sum(t, axis=0, keepdims=True))            # (1, 1)
            logits = jnp.concatenate(cls, axis=-1) + lb_ref[...]         # (1, C)
            logits = logits - jnp.max(logits, axis=-1, keepdims=True)
            e = jnp.exp(logits)
            o_ref[bi] = (e / jnp.sum(e, axis=-1, keepdims=True)).astype(o_ref.dtype)

    return kernel


def _fused_encoder_head(x2, bias, mrow, params, cfg, B, K, D):
    L = cfg["layers"]
    H = cfg["n_heads"]
    C = params["lb"].shape[-1]

    # >=2 grid programs when the shapes allow so a v7x chip can spread batch
    # chunks over both TensorCores; on 1-TC chips the extra step is negligible.
    nc = 2 if (B % 2 == 0 and ((B * K) // 2) % 8 == 0) else 1
    Bc = B // nc

    weight_names = ("wqkv", "bqkv", "wo", "bo", "g1", "be1", "w1", "b1",
                    "w2", "b2", "g2", "be2", "w3", "lb")
    weights = [params[n] for n in weight_names]

    # All weights fit comfortably in VMEM at these sizes.
    # TODO(synk): at realistic roi_num/dim_feedforward on v7x (64 MiB VMEM), keep
    # stacked weights in HBM (memory_space=pl.ANY) and double-buffer one layer's
    # weights with pltpu.make_async_copy instead of holding all L layers resident.
    def full_spec(a):
        nd = a.ndim
        return pl.BlockSpec(a.shape, lambda p, _nd=nd: (0,) * _nd)

    kernel = _make_fused_kernel(Bc, K, D, H, L, C)
    out = pl.pallas_call(
        kernel,
        out_shape=jax.ShapeDtypeStruct((B, 1, C), jnp.float32),
        grid=(nc,),
        in_specs=[pl.BlockSpec((Bc * K, D), lambda p: (p, 0)),
                  pl.BlockSpec((Bc, 1, K), lambda p: (p, 0, 0)),
                  pl.BlockSpec((Bc * K, 1), lambda p: (p, 0))]
                 + [full_spec(w) for w in weights],
        out_specs=pl.BlockSpec((Bc, 1, C), lambda p: (p, 0, 0)),
        compiler_params=pltpu.CompilerParams(dimension_semantics=("parallel",)),
    )(x2, bias, mrow, *weights)
    return out[:, 0, :]


# ----------------------------------------------------------------------------
# Parameter init (deterministic, shapes from the module's __init__).
# ----------------------------------------------------------------------------
def init_params(key, roi_num, num_classes, cfg):
    D = roi_num
    FF = cfg["dim_feedforward"]
    L = cfg["layers"]
    max_len = cfg["max_length"]
    C = num_classes
    P = D * (D - 1) // 2

    keys = iter(jax.random.split(key, 8 * L + 3))

    def rnd(shape, s=0.05):
        return (s * jax.random.normal(next(keys), shape)).astype(jnp.float32)

    wqkv, bqkv, wo, bo = [], [], [], []
    w1, b1, w2, b2 = [], [], [], []
    g1, be1, g2, be2 = [], [], [], []
    for _ in range(L):
        wqkv.append(rnd((D, 3 * D)))          # x @ wqkv == x @ in_proj_weight.T
        bqkv.append(rnd((1, 3 * D)))
        wo.append(rnd((D, D)))                # out_proj.weight.T
        bo.append(rnd((1, D)))
        w1.append(rnd((D, FF)))
        b1.append(rnd((1, FF)))
        w2.append(rnd((FF, D)))
        b2.append(rnd((1, D)))
        g1.append(jnp.ones((1, D), jnp.float32))
        be1.append(jnp.zeros((1, D), jnp.float32))
        g2.append(jnp.ones((1, D), jnp.float32))
        be2.append(jnp.zeros((1, D), jnp.float32))

    pe = rnd((1, max_len, D), 0.02)           # PositionalEncodingTrainable param

    # Linear(P -> C): fold the row-major upper-triangle (i<j) gather into a
    # dense (C, D, D) weight cube (zeros elsewhere) so the kernel never gathers.
    lin_w = rnd((P, C))                       # == torch Linear weight (C, P).T
    lin_b = rnd((1, C))
    iu, ju = jnp.triu_indices(D, k=1)         # row-major, like torch.triu_indices
    w3 = jnp.zeros((C, D, D), jnp.float32).at[:, iu, ju].set(lin_w.T)

    stk = lambda xs: jnp.stack(xs, axis=0)
    return dict(
        pe=pe,
        wqkv=stk(wqkv), bqkv=stk(bqkv), wo=stk(wo), bo=stk(bo),
        g1=stk(g1), be1=stk(be1), w1=stk(w1), b1=stk(b1),
        w2=stk(w2), b2=stk(b2), g2=stk(g2), be2=stk(be2),
        w3=w3, lb=lin_b)


# ----------------------------------------------------------------------------
# Full VarCoNet_noSSL forward.
# ----------------------------------------------------------------------------
def varconet_forward(x, params, cfg):
    B, K, D = x.shape
    x = x.astype(jnp.float32)

    # InstanceNorm1d(roi) over time (affine=False, biased var, eps=1e-5)
    mu = jnp.mean(x, axis=1, keepdims=True)
    var = jnp.mean((x - mu) ** 2, axis=1, keepdims=True)
    xn = (x - mu) * lax.rsqrt(var + 1e-5)

    # padding-value heuristic (matches the in-place torch code; exact equality)
    v = xn[0, -1, 0]
    do_zero = jnp.sum(xn == v) >= D
    xz = jnp.where(jnp.logical_and(do_zero, xn == v), 0.0, xn)

    mask = xz[:, :, 0] == 0                                    # (B, K) key padding
    xp = xz + params["pe"][:, :K, :]                           # trainable pos. enc.
    xp = jnp.where(mask[:, :, None], 0.0, xp)                  # x[x_mask, :] = 0

    bias = jnp.where(mask, -1e30, 0.0).astype(jnp.float32)[:, None, :]   # (B,1,K)
    mrow = mask.astype(jnp.float32).reshape(B * K, 1)                    # (B*K,1)
    x2 = xp.reshape(B * K, D)                                            # (B*K,D)

    return _fused_encoder_head(x2, bias, mrow, params, cfg, B, K, D)


if __name__ == "__main__":
    B, K, D = 2, 8, 16                       # batch, time steps, roi_num
    num_classes = 3
    model_config = dict(layers=2, n_heads=2, dim_feedforward=32, max_length=16)

    x = jax.random.normal(jax.random.PRNGKey(0), (B, K, D), jnp.float32)
    params = init_params(jax.random.PRNGKey(1), D, num_classes, model_config)

    fwd = jax.jit(lambda xi, pi: varconet_forward(xi, pi, model_config))
    out = fwd(x, params)
    out = jax.block_until_ready(out)

    assert out.shape == (B, num_classes)
    assert bool(jnp.all(jnp.isfinite(out)))
    assert bool(jnp.allclose(jnp.sum(out, axis=-1), 1.0, atol=1e-5))
    print("KERNEL_OK")
</pallas_src>

<mosaic_0001>
module attributes {stable_mosaic.version = 11 : i64} {
  func.func @kernel(%arg0: i32, %arg1: memref<8x16xf32, #tpu.memory_space<vmem>>, %arg2: memref<1x1x8xf32, #tpu.memory_space<vmem>>, %arg3: memref<8x1xf32, #tpu.memory_space<vmem>>, %arg4: memref<2x16x48xf32, #tpu.memory_space<vmem>>, %arg5: memref<2x1x48xf32, #tpu.memory_space<vmem>>, %arg6: memref<2x16x16xf32, #tpu.memory_space<vmem>>, %arg7: memref<2x1x16xf32, #tpu.memory_space<vmem>>, %arg8: memref<2x1x16xf32, #tpu.memory_space<vmem>>, %arg9: memref<2x1x16xf32, #tpu.memory_space<vmem>>, %arg10: memref<2x16x32xf32, #tpu.memory_space<vmem>>, %arg11: memref<2x1x32xf32, #tpu.memory_space<vmem>>, %arg12: memref<2x32x16xf32, #tpu.memory_space<vmem>>, %arg13: memref<2x1x16xf32, #tpu.memory_space<vmem>>, %arg14: memref<2x1x16xf32, #tpu.memory_space<vmem>>, %arg15: memref<2x1x16xf32, #tpu.memory_space<vmem>>, %arg16: memref<3x16x16xf32, #tpu.memory_space<vmem>>, %arg17: memref<1x3xf32, #tpu.memory_space<vmem>>, %arg18: memref<1x1x3xf32, #tpu.memory_space<vmem>>) attributes {dimension_semantics = [#tpu.dimension_semantics<parallel>], iteration_bounds = array<i64: 2>, scalar_prefetch = 0 : i64, scratch_operands = 0 : i64, tpu.core_type = #tpu.core_type<tc>, window_params = [{transform_indices = @transform_0, window_bounds = array<i64: 8, 16>}, {transform_indices = @transform_1, window_bounds = array<i64: 1, 1, 8>}, {transform_indices = @transform_2, window_bounds = array<i64: 8, 1>}, {pipeline_mode = #tpu.pipeline_mode<synchronous>, transform_indices = @transform_3, window_bounds = array<i64: 2, 16, 48>}, {pipeline_mode = #tpu.pipeline_mode<synchronous>, transform_indices = @transform_4, window_bounds = array<i64: 2, 1, 48>}, {pipeline_mode = #tpu.pipeline_mode<synchronous>, transform_indices = @transform_5, window_bounds = array<i64: 2, 16, 16>}, {pipeline_mode = #tpu.pipeline_mode<synchronous>, transform_indices = @transform_6, window_bounds = array<i64: 2, 1, 16>}, {pipeline_mode = #tpu.pipeline_mode<synchronous>, transform_indices = @transform_7, window_bounds = array<i64: 2, 1, 16>}, {pipeline_mode = #tpu.pipeline_mode<synchronous>, transform_indices = @transform_8, window_bounds = array<i64: 2, 1, 16>}, {pipeline_mode = #tpu.pipeline_mode<synchronous>, transform_indices = @transform_9, window_bounds = array<i64: 2, 16, 32>}, {pipeline_mode = #tpu.pipeline_mode<synchronous>, transform_indices = @transform_10, window_bounds = array<i64: 2, 1, 32>}, {pipeline_mode = #tpu.pipeline_mode<synchronous>, transform_indices = @transform_11, window_bounds = array<i64: 2, 32, 16>}, {pipeline_mode = #tpu.pipeline_mode<synchronous>, transform_indices = @transform_12, window_bounds = array<i64: 2, 1, 16>}, {pipeline_mode = #tpu.pipeline_mode<synchronous>, transform_indices = @transform_13, window_bounds = array<i64: 2, 1, 16>}, {pipeline_mode = #tpu.pipeline_mode<synchronous>, transform_indices = @transform_14, window_bounds = array<i64: 2, 1, 16>}, {pipeline_mode = #tpu.pipeline_mode<synchronous>, transform_indices = @transform_15, window_bounds = array<i64: 3, 16, 16>}, {pipeline_mode = #tpu.pipeline_mode<synchronous>, transform_indices = @transform_16, window_bounds = array<i64: 1, 3>}, {transform_indices = @transform_17, window_bounds = array<i64: 1, 1, 3>}]} {
    %c0 = arith.constant 0 : index
    %c0_0 = arith.constant 0 : index
    %0 = vector.load %arg1[%c0, %c0_0] : memref<8x16xf32, #tpu.memory_space<vmem>>, vector<8x16xf32>
    %c0_1 = arith.constant 0 : index
    %c0_2 = arith.constant 0 : index
    %c0_3 = arith.constant 0 : index
    %1 = vector.load %arg2[%c0_1, %c0_2, %c0_3] : memref<1x1x8xf32, #tpu.memory_space<vmem>>, vector<1x1x8xf32>
    %c0_4 = arith.constant 0 : index
    %c0_5 = arith.constant 0 : index
    %2 = vector.load %arg3[%c0_4, %c0_5] : memref<8x1xf32, #tpu.memory_space<vmem>>, vector<8x1xf32>
    %c0_6 = arith.constant 0 : index
    %c0_7 = arith.constant 0 : index
    %c0_8 = arith.constant 0 : index
    %3 = vector.load %arg4[%c0_6, %c0_7, %c0_8] : memref<2x16x48xf32, #tpu.memory_space<vmem>>, vector<1x16x48xf32>
    %4 = vector.shape_cast %3 : vector<1x16x48xf32> to vector<16x48xf32>
    %cst = arith.constant dense<0.000000e+00> : vector<8x48xf32>
    %5 = tpu.matmul %0, %4, %cst {dimension_numbers = #tpu.dot_dimension_numbers<[1], [0], [0], [1], [0, 0, 1, 1], [], []>} : vector<8x16xf32>, vector<16x48xf32>, vector<8x48xf32> -> vector<8x48xf32>
    %c0_9 = arith.constant 0 : index
    %c0_10 = arith.constant 0 : index
    %c0_11 = arith.constant 0 : index
    %6 = vector.load %arg5[%c0_9, %c0_10, %c0_11] : memref<2x1x48xf32, #tpu.memory_space<vmem>>, vector<1x1x48xf32>
    %7 = vector.shape_cast %6 : vector<1x1x48xf32> to vector<1x48xf32>
    %8 = vector.broadcast %7 : vector<1x48xf32> to vector<8x48xf32>
    %9 = arith.addf %5, %8 : vector<8x48xf32>
    %10 = vector.shape_cast %1 : vector<1x1x8xf32> to vector<1x8xf32>
    %11 = vector.extract_strided_slice %9 {offsets = [0, 0], sizes = [8, 8], strides = [1, 1]} : vector<8x48xf32> to vector<8x8xf32>
    %12 = vector.extract_strided_slice %9 {offsets = [0, 16], sizes = [8, 8], strides = [1, 1]} : vector<8x48xf32> to vector<8x8xf32>
    %13 = vector.extract_strided_slice %9 {offsets = [0, 32], sizes = [8, 8], strides = [1, 1]} : vector<8x48xf32> to vector<8x8xf32>
    %cst_12 = arith.constant dense<0.000000e+00> : vector<8x8xf32>
    %14 = tpu.matmul %11, %12, %cst_12 {dimension_numbers = #tpu.dot_dimension_numbers<[1], [1], [0], [0], [0, 0, 1, 0], [], []>} : vector<8x8xf32>, vector<8x8xf32>, vector<8x8xf32> -> vector<8x8xf32>
    %cst_13 = arith.constant 0.353553385 : f32
    %15 = vector.broadcast %cst_13 : f32 to vector<8x8xf32>
    %16 = arith.mulf %14, %15 : vector<8x8xf32>
    %17 = vector.broadcast %10 : vector<1x8xf32> to vector<8x8xf32>
    %18 = arith.addf %16, %17 : vector<8x8xf32>
    %cst_14 = arith.constant dense<0xFF800000> : vector<8xf32>
    %19 = vector.multi_reduction <maximumf>, %18, %cst_14 [1] : vector<8x8xf32> to vector<8xf32>
    %20 = vector.shape_cast %19 : vector<8xf32> to vector<8x1xf32>
    %21 = vector.broadcast %20 : vector<8x1xf32> to vector<8x8xf32>
    %22 = arith.subf %18, %21 : vector<8x8xf32>
    %23 = math.exp %22 : vector<8x8xf32>
    %cst_15 = arith.constant dense<0.000000e+00> : vector<8xf32>
    %24 = vector.multi_reduction <add>, %23, %cst_15 [1] : vector<8x8xf32> to vector<8xf32>
    %25 = vector.shape_cast %24 : vector<8xf32> to vector<8x1xf32>
    %26 = tpu.reciprocal %25 {approx = true} : vector<8x1xf32> -> vector<8x1xf32>
    %27 = vector.broadcast %26 : vector<8x1xf32> to vector<8x8xf32>
    %28 = arith.mulf %23, %27 : vector<8x8xf32>
    %cst_16 = arith.constant dense<0.000000e+00> : vector<8x8xf32>
    %29 = tpu.matmul %28, %13, %cst_16 {dimension_numbers = #tpu.dot_dimension_numbers<[1], [0], [0], [1], [0, 0, 1, 1], [], []>} : vector<8x8xf32>, vector<8x8xf32>, vector<8x8xf32> -> vector<8x8xf32>
    %30 = vector.extract_strided_slice %9 {offsets = [0, 8], sizes = [8, 8], strides = [1, 1]} : vector<8x48xf32> to vector<8x8xf32>
    %31 = vector.extract_strided_slice %9 {offsets = [0, 24], sizes = [8, 8], strides = [1, 1]} : vector<8x48xf32> to vector<8x8xf32>
    %32 = vector.extract_strided_slice %9 {offsets = [0, 40], sizes = [8, 8], strides = [1, 1]} : vector<8x48xf32> to vector<8x8xf32>
    %cst_17 = arith.constant dense<0.000000e+00> : vector<8x8xf32>
    %33 = tpu.matmul %30, %31, %cst_17 {dimension_numbers = #tpu.dot_dimension_numbers<[1], [1], [0], [0], [0, 0, 1, 0], [], []>} : vector<8x8xf32>, vector<8x8xf32>, vector<8x8xf32> -> vector<8x8xf32>
    %cst_18 = arith.constant 0.353553385 : f32
    %34 = vector.broadcast %cst_18 : f32 to vector<8x8xf32>
    %35 = arith.mulf %33, %34 : vector<8x8xf32>
    %36 = vector.broadcast %10 : vector<1x8xf32> to vector<8x8xf32>
    %37 = arith.addf %35, %36 : vector<8x8xf32>
    %cst_19 = arith.constant dense<0xFF800000> : vector<8xf32>
    %38 = vector.multi_reduction <maximumf>, %37, %cst_19 [1] : vector<8x8xf32> to vector<8xf32>
    %39 = vector.shape_cast %38 : vector<8xf32> to vector<8x1xf32>
    %40 = vector.broadcast %39 : vector<8x1xf32> to vector<8x8xf32>
    %41 = arith.subf %37, %40 : vector<8x8xf32>
    %42 = math.exp %41 : vector<8x8xf32>
    %cst_20 = arith.constant dense<0.000000e+00> : vector<8xf32>
    %43 = vector.multi_reduction <add>, %42, %cst_20 [1] : vector<8x8xf32> to vector<8xf32>
    %44 = vector.shape_cast %43 : vector<8xf32> to vector<8x1xf32>
    %45 = tpu.reciprocal %44 {approx = true} : vector<8x1xf32> -> vector<8x1xf32>
    %46 = vector.broadcast %45 : vector<8x1xf32> to vector<8x8xf32>
    %47 = arith.mulf %42, %46 : vector<8x8xf32>
    %cst_21 = arith.constant dense<0.000000e+00> : vector<8x8xf32>
    %48 = tpu.matmul %47, %32, %cst_21 {dimension_numbers = #tpu.dot_dimension_numbers<[1], [0], [0], [1], [0, 0, 1, 1], [], []>} : vector<8x8xf32>, vector<8x8xf32>, vector<8x8xf32> -> vector<8x8xf32>
    %49 = tpu.concatenate %29, %48 in 1 : vector<8x8xf32>, vector<8x8xf32> -> vector<8x16xf32>
    %c0_22 = arith.constant 0 : index
    %c0_23 = arith.constant 0 : index
    %c0_24 = arith.constant 0 : index
    %50 = vector.load %arg6[%c0_22, %c0_23, %c0_24] : memref<2x16x16xf32, #tpu.memory_space<vmem>>, vector<1x16x16xf32>
    %51 = vector.shape_cast %50 : vector<1x16x16xf32> to vector<16x16xf32>
    %cst_25 = arith.constant dense<0.000000e+00> : vector<8x16xf32>
    %52 = tpu.matmul %49, %51, %cst_25 {dimension_numbers = #tpu.dot_dimension_numbers<[1], [0], [0], [1], [0, 0, 1, 1], [], []>} : vector<8x16xf32>, vector<16x16xf32>, vector<8x16xf32> -> vector<8x16xf32>
    %c0_26 = arith.constant 0 : index
    %c0_27 = arith.constant 0 : index
    %c0_28 = arith.constant 0 : index
    %53 = vector.load %arg7[%c0_26, %c0_27, %c0_28] : memref<2x1x16xf32, #tpu.memory_space<vmem>>, vector<1x1x16xf32>
    %54 = vector.shape_cast %53 : vector<1x1x16xf32> to vector<1x16xf32>
    %55 = vector.broadcast %54 : vector<1x16xf32> to vector<8x16xf32>
    %56 = arith.addf %52, %55 : vector<8x16xf32>
    %57 = arith.addf %0, %56 : vector<8x16xf32>
    %c0_29 = arith.constant 0 : index
    %c0_30 = arith.constant 0 : index
    %c0_31 = arith.constant 0 : index
    %58 = vector.load %arg8[%c0_29, %c0_30, %c0_31] : memref<2x1x16xf32, #tpu.memory_space<vmem>>, vector<1x1x16xf32>
    %59 = vector.shape_cast %58 : vector<1x1x16xf32> to vector<1x16xf32>
    %c0_32 = arith.constant 0 : index
    %c0_33 = arith.constant 0 : index
    %c0_34 = arith.constant 0 : index
    %60 = vector.load %arg9[%c0_32, %c0_33, %c0_34] : memref<2x1x16xf32, #tpu.memory_space<vmem>>, vector<1x1x16xf32>
    %61 = vector.shape_cast %60 : vector<1x1x16xf32> to vector<1x16xf32>
    %cst_35 = arith.constant dense<0.000000e+00> : vector<8xf32>
    %62 = vector.multi_reduction <add>, %57, %cst_35 [1] : vector<8x16xf32> to vector<8xf32>
    %63 = vector.shape_cast %62 : vector<8xf32> to vector<8x1xf32>
    %cst_36 = arith.constant 1.600000e+01 : f32
    %64 = vector.broadcast %cst_36 : f32 to vector<8x1xf32>
    %65 = arith.divf %63, %64 : vector<8x1xf32>
    %66 = vector.broadcast %65 : vector<8x1xf32> to vector<8x16xf32>
    %67 = arith.subf %57, %66 : vector<8x16xf32>
    %68 = arith.mulf %67, %67 : vector<8x16xf32>
    %cst_37 = arith.constant dense<0.000000e+00> : vector<8xf32>
    %69 = vector.multi_reduction <add>, %68, %cst_37 [1] : vector<8x16xf32> to vector<8xf32>
    %70 = vector.shape_cast %69 : vector<8xf32> to vector<8x1xf32>
    %cst_38 = arith.constant 1.600000e+01 : f32
    %71 = vector.broadcast %cst_38 : f32 to vector<8x1xf32>
    %72 = arith.divf %70, %71 : vector<8x1xf32>
    %73 = vector.broadcast %65 : vector<8x1xf32> to vector<8x16xf32>
    %74 = arith.subf %57, %73 : vector<8x16xf32>
    %cst_39 = arith.constant 9.99999974E-6 : f32
    %75 = vector.broadcast %cst_39 : f32 to vector<8x1xf32>
    %76 = arith.addf %72, %75 : vector<8x1xf32>
    %77 = math.rsqrt %76 : vector<8x1xf32>
    %78 = vector.broadcast %77 : vector<8x1xf32> to vector<8x16xf32>
    %79 = arith.mulf %74, %78 : vector<8x16xf32>
    %80 = vector.broadcast %59 : vector<1x16xf32> to vector<8x16xf32>
    %81 = arith.mulf %79, %80 : vector<8x16xf32>
    %82 = vector.broadcast %61 : vector<1x16xf32> to vector<8x16xf32>
    %83 = arith.addf %81, %82 : vector<8x16xf32>
    %c0_40 = arith.constant 0 : index
    %c0_41 = arith.constant 0 : index
    %c0_42 = arith.constant 0 : index
    %84 = vector.load %arg10[%c0_40, %c0_41, %c0_42] : memref<2x16x32xf32, #tpu.memory_space<vmem>>, vector<1x16x32xf32>
    %85 = vector.shape_cast %84 : vector<1x16x32xf32> to vector<16x32xf32>
    %cst_43 = arith.constant dense<0.000000e+00> : vector<8x32xf32>
    %86 = tpu.matmul %83, %85, %cst_43 {dimension_numbers = #tpu.dot_dimension_numbers<[1], [0], [0], [1], [0, 0, 1, 1], [], []>} : vector<8x16xf32>, vector<16x32xf32>, vector<8x32xf32> -> vector<8x32xf32>
    %c0_44 = arith.constant 0 : index
    %c0_45 = arith.constant 0 : index
    %c0_46 = arith.constant 0 : index
    %87 = vector.load %arg11[%c0_44, %c0_45, %c0_46] : memref<2x1x32xf32, #tpu.memory_space<vmem>>, vector<1x1x32xf32>
    %88 = vector.shape_cast %87 : vector<1x1x32xf32> to vector<1x32xf32>
    %89 = vector.broadcast %88 : vector<1x32xf32> to vector<8x32xf32>
    %90 = arith.addf %86, %89 : vector<8x32xf32>
    %cst_47 = arith.constant 0.000000e+00 : f32
    %91 = vector.broadcast %cst_47 : f32 to vector<8x32xf32>
    %92 = arith.maximumf %90, %91 : vector<8x32xf32>
    %c0_48 = arith.constant 0 : index
    %c0_49 = arith.constant 0 : index
    %c0_50 = arith.constant 0 : index
    %93 = vector.load %arg12[%c0_48, %c0_49, %c0_50] : memref<2x32x16xf32, #tpu.memory_space<vmem>>, vector<1x32x16xf32>
    %94 = vector.shape_cast %93 : vector<1x32x16xf32> to vector<32x16xf32>
    %cst_51 = arith.constant dense<0.000000e+00> : vector<8x16xf32>
    %95 = tpu.matmul %92, %94, %cst_51 {dimension_numbers = #tpu.dot_dimension_numbers<[1], [0], [0], [1], [0, 0, 1, 1], [], []>} : vector<8x32xf32>, vector<32x16xf32>, vector<8x16xf32> -> vector<8x16xf32>
    %c0_52 = arith.constant 0 : index
    %c0_53 = arith.constant 0 : index
    %c0_54 = arith.constant 0 : index
    %96 = vector.load %arg13[%c0_52, %c0_53, %c0_54] : memref<2x1x16xf32, #tpu.memory_space<vmem>>, vector<1x1x16xf32>
    %97 = vector.shape_cast %96 : vector<1x1x16xf32> to vector<1x16xf32>
    %98 = vector.broadcast %97 : vector<1x16xf32> to vector<8x16xf32>
    %99 = arith.addf %95, %98 : vector<8x16xf32>
    %100 = arith.addf %83, %99 : vector<8x16xf32>
    %c0_55 = arith.constant 0 : index
    %c0_56 = arith.constant 0 : index
    %c0_57 = arith.constant 0 : index
    %101 = vector.load %arg14[%c0_55, %c0_56, %c0_57] : memref<2x1x16xf32, #tpu.memory_space<vmem>>, vector<1x1x16xf32>
    %102 = vector.shape_cast %101 : vector<1x1x16xf32> to vector<1x16xf32>
    %c0_58 = arith.constant 0 : index
    %c0_59 = arith.constant 0 : index
    %c0_60 = arith.constant 0 : index
    %103 = vector.load %arg15[%c0_58, %c0_59, %c0_60] : memref<2x1x16xf32, #tpu.memory_space<vmem>>, vector<1x1x16xf32>
    %104 = vector.shape_cast %103 : vector<1x1x16xf32> to vector<1x16xf32>
    %cst_61 = arith.constant dense<0.000000e+00> : vector<8xf32>
    %105 = vector.multi_reduction <add>, %100, %cst_61 [1] : vector<8x16xf32> to vector<8xf32>
    %106 = vector.shape_cast %105 : vector<8xf32> to vector<8x1xf32>
    %cst_62 = arith.constant 1.600000e+01 : f32
    %107 = vector.broadcast %cst_62 : f32 to vector<8x1xf32>
    %108 = arith.divf %106, %107 : vector<8x1xf32>
    %109 = vector.broadcast %108 : vector<8x1xf32> to vector<8x16xf32>
    %110 = arith.subf %100, %109 : vector<8x16xf32>
    %111 = arith.mulf %110, %110 : vector<8x16xf32>
    %cst_63 = arith.constant dense<0.000000e+00> : vector<8xf32>
    %112 = vector.multi_reduction <add>, %111, %cst_63 [1] : vector<8x16xf32> to vector<8xf32>
    %113 = vector.shape_cast %112 : vector<8xf32> to vector<8x1xf32>
    %cst_64 = arith.constant 1.600000e+01 : f32
    %114 = vector.broadcast %cst_64 : f32 to vector<8x1xf32>
    %115 = arith.divf %113, %114 : vector<8x1xf32>
    %116 = vector.broadcast %108 : vector<8x1xf32> to vector<8x16xf32>
    %117 = arith.subf %100, %116 : vector<8x16xf32>
    %cst_65 = arith.constant 9.99999974E-6 : f32
    %118 = vector.broadcast %cst_65 : f32 to vector<8x1xf32>
    %119 = arith.addf %115, %118 : vector<8x1xf32>
    %120 = math.rsqrt %119 : vector<8x1xf32>
    %121 = vector.broadcast %120 : vector<8x1xf32> to vector<8x16xf32>
    %122 = arith.mulf %117, %121 : vector<8x16xf32>
    %123 = vector.broadcast %102 : vector<1x16xf32> to vector<8x16xf32>
    %124 = arith.mulf %122, %123 : vector<8x16xf32>
    %125 = vector.broadcast %104 : vector<1x16xf32> to vector<8x16xf32>
    %126 = arith.addf %124, %125 : vector<8x16xf32>
    %c1 = arith.constant 1 : index
    %c0_66 = arith.constant 0 : index
    %c0_67 = arith.constant 0 : index
    %127 = vector.load %arg4[%c1, %c0_66, %c0_67] : memref<2x16x48xf32, #tpu.memory_space<vmem>>, vector<1x16x48xf32>
    %128 = vector.shape_cast %127 : vector<1x16x48xf32> to vector<16x48xf32>
    %cst_68 = arith.constant dense<0.000000e+00> : vector<8x48xf32>
    %129 = tpu.matmul %126, %128, %cst_68 {dimension_numbers = #tpu.dot_dimension_numbers<[1], [0], [0], [1], [0, 0, 1, 1], [], []>} : vector<8x16xf32>, vector<16x48xf32>, vector<8x48xf32> -> vector<8x48xf32>
    %c1_69 = arith.constant 1 : index
    %c0_70 = arith.constant 0 : index
    %c0_71 = arith.constant 0 : index
    %130 = vector.load %arg5[%c1_69, %c0_70, %c0_71] : memref<2x1x48xf32, #tpu.memory_space<vmem>>, vector<1x1x48xf32>
    %131 = vector.shape_cast %130 : vector<1x1x48xf32> to vector<1x48xf32>
    %132 = vector.broadcast %131 : vector<1x48xf32> to vector<8x48xf32>
    %133 = arith.addf %129, %132 : vector<8x48xf32>
    %134 = vector.shape_cast %1 : vector<1x1x8xf32> to vector<1x8xf32>
    %135 = vector.extract_strided_slice %133 {offsets = [0, 0], sizes = [8, 8], strides = [1, 1]} : vector<8x48xf32> to vector<8x8xf32>
    %136 = vector.extract_strided_slice %133 {offsets = [0, 16], sizes = [8, 8], strides = [1, 1]} : vector<8x48xf32> to vector<8x8xf32>
    %137 = vector.extract_strided_slice %133 {offsets = [0, 32], sizes = [8, 8], strides = [1, 1]} : vector<8x48xf32> to vector<8x8xf32>
    %cst_72 = arith.constant dense<0.000000e+00> : vector<8x8xf32>
    %138 = tpu.matmul %135, %136, %cst_72 {dimension_numbers = #tpu.dot_dimension_numbers<[1], [1], [0], [0], [0, 0, 1, 0], [], []>} : vector<8x8xf32>, vector<8x8xf32>, vector<8x8xf32> -> vector<8x8xf32>
    %cst_73 = arith.constant 0.353553385 : f32
    %139 = vector.broadcast %cst_73 : f32 to vector<8x8xf32>
    %140 = arith.mulf %138, %139 : vector<8x8xf32>
    %141 = vector.broadcast %134 : vector<1x8xf32> to vector<8x8xf32>
    %142 = arith.addf %140, %141 : vector<8x8xf32>
    %cst_74 = arith.constant dense<0xFF800000> : vector<8xf32>
    %143 = vector.multi_reduction <maximumf>, %142, %cst_74 [1] : vector<8x8xf32> to vector<8xf32>
    %144 = vector.shape_cast %143 : vector<8xf32> to vector<8x1xf32>
    %145 = vector.broadcast %144 : vector<8x1xf32> to vector<8x8xf32>
    %146 = arith.subf %142, %145 : vector<8x8xf32>
    %147 = math.exp %146 : vector<8x8xf32>
    %cst_75 = arith.constant dense<0.000000e+00> : vector<8xf32>
    %148 = vector.multi_reduction <add>, %147, %cst_75 [1] : vector<8x8xf32> to vector<8xf32>
    %149 = vector.shape_cast %148 : vector<8xf32> to vector<8x1xf32>
    %150 = tpu.reciprocal %149 {approx = true} : vector<8x1xf32> -> vector<8x1xf32>
    %151 = vector.broadcast %150 : vector<8x1xf32> to vector<8x8xf32>
    %152 = arith.mulf %147, %151 : vector<8x8xf32>
    %cst_76 = arith.constant dense<0.000000e+00> : vector<8x8xf32>
    %153 = tpu.matmul %152, %137, %cst_76 {dimension_numbers = #tpu.dot_dimension_numbers<[1], [0], [0], [1], [0, 0, 1, 1], [], []>} : vector<8x8xf32>, vector<8x8xf32>, vector<8x8xf32> -> vector<8x8xf32>
    %154 = vector.extract_strided_slice %133 {offsets = [0, 8], sizes = [8, 8], strides = [1, 1]} : vector<8x48xf32> to vector<8x8xf32>
    %155 = vector.extract_strided_slice %133 {offsets = [0, 24], sizes = [8, 8], strides = [1, 1]} : vector<8x48xf32> to vector<8x8xf32>
    %156 = vector.extract_strided_slice %133 {offsets = [0, 40], sizes = [8, 8], strides = [1, 1]} : vector<8x48xf32> to vector<8x8xf32>
    %cst_77 = arith.constant dense<0.000000e+00> : vector<8x8xf32>
    %157 = tpu.matmul %154, %155, %cst_77 {dimension_numbers = #tpu.dot_dimension_numbers<[1], [1], [0], [0], [0, 0, 1, 0], [], []>} : vector<8x8xf32>, vector<8x8xf32>, vector<8x8xf32> -> vector<8x8xf32>
    %cst_78 = arith.constant 0.353553385 : f32
    %158 = vector.broadcast %cst_78 : f32 to vector<8x8xf32>
    %159 = arith.mulf %157, %158 : vector<8x8xf32>
    %160 = vector.broadcast %134 : vector<1x8xf32> to vector<8x8xf32>
    %161 = arith.addf %159, %160 : vector<8x8xf32>
    %cst_79 = arith.constant dense<0xFF800000> : vector<8xf32>
    %162 = vector.multi_reduction <maximumf>, %161, %cst_79 [1] : vector<8x8xf32> to vector<8xf32>
    %163 = vector.shape_cast %162 : vector<8xf32> to vector<8x1xf32>
    %164 = vector.broadcast %163 : vector<8x1xf32> to vector<8x8xf32>
    %165 = arith.subf %161, %164 : vector<8x8xf32>
    %166 = math.exp %165 : vector<8x8xf32>
    %cst_80 = arith.constant dense<0.000000e+00> : vector<8xf32>
    %167 = vector.multi_reduction <add>, %166, %cst_80 [1] : vector<8x8xf32> to vector<8xf32>
    %168 = vector.shape_cast %167 : vector<8xf32> to vector<8x1xf32>
    %169 = tpu.reciprocal %168 {approx = true} : vector<8x1xf32> -> vector<8x1xf32>
    %170 = vector.broadcast %169 : vector<8x1xf32> to vector<8x8xf32>
    %171 = arith.mulf %166, %170 : vector<8x8xf32>
    %cst_81 = arith.constant dense<0.000000e+00> : vector<8x8xf32>
    %172 = tpu.matmul %171, %156, %cst_81 {dimension_numbers = #tpu.dot_dimension_numbers<[1], [0], [0], [1], [0, 0, 1, 1], [], []>} : vector<8x8xf32>, vector<8x8xf32>, vector<8x8xf32> -> vector<8x8xf32>
    %173 = tpu.concatenate %153, %172 in 1 : vector<8x8xf32>, vector<8x8xf32> -> vector<8x16xf32>
    %c1_82 = arith.constant 1 : index
    %c0_83 = arith.constant 0 : index
    %c0_84 = arith.constant 0 : index
    %174 = vector.load %arg6[%c1_82, %c0_83, %c0_84] : memref<2x16x16xf32, #tpu.memory_space<vmem>>, vector<1x16x16xf32>
    %175 = vector.shape_cast %174 : vector<1x16x16xf32> to vector<16x16xf32>
    %cst_85 = arith.constant dense<0.000000e+00> : vector<8x16xf32>
    %176 = tpu.matmul %173, %175, %cst_85 {dimension_numbers = #tpu.dot_dimension_numbers<[1], [0], [0], [1], [0, 0, 1, 1], [], []>} : vector<8x16xf32>, vector<16x16xf32>, vector<8x16xf32> -> vector<8x16xf32>
    %c1_86 = arith.constant 1 : index
    %c0_87 = arith.constant 0 : index
    %c0_88 = arith.constant 0 : index
    %177 = vector.load %arg7[%c1_86, %c0_87, %c0_88] : memref<2x1x16xf32, #tpu.memory_space<vmem>>, vector<1x1x16xf32>
    %178 = vector.shape_cast %177 : vector<1x1x16xf32> to vector<1x16xf32>
    %179 = vector.broadcast %178 : vector<1x16xf32> to vector<8x16xf32>
    %180 = arith.addf %176, %179 : vector<8x16xf32>
    %181 = arith.addf %126, %180 : vector<8x16xf32>
    %c1_89 = arith.constant 1 : index
    %c0_90 = arith.constant 0 : index
    %c0_91 = arith.constant 0 : index
    %182 = vector.load %arg8[%c1_89, %c0_90, %c0_91] : memref<2x1x16xf32, #tpu.memory_space<vmem>>, vector<1x1x16xf32>
    %183 = vector.shape_cast %182 : vector<1x1x16xf32> to vector<1x16xf32>
    %c1_92 = arith.constant 1 : index
    %c0_93 = arith.constant 0 : index
    %c0_94 = arith.constant 0 : index
    %184 = vector.load %arg9[%c1_92, %c0_93, %c0_94] : memref<2x1x16xf32, #tpu.memory_space<vmem>>, vector<1x1x16xf32>
    %185 = vector.shape_cast %184 : vector<1x1x16xf32> to vector<1x16xf32>
    %cst_95 = arith.constant dense<0.000000e+00> : vector<8xf32>
    %186 = vector.multi_reduction <add>, %181, %cst_95 [1] : vector<8x16xf32> to vector<8xf32>
    %187 = vector.shape_cast %186 : vector<8xf32> to vector<8x1xf32>
    %cst_96 = arith.constant 1.600000e+01 : f32
    %188 = vector.broadcast %cst_96 : f32 to vector<8x1xf32>
    %189 = arith.divf %187, %188 : vector<8x1xf32>
    %190 = vector.broadcast %189 : vector<8x1xf32> to vector<8x16xf32>
    %191 = arith.subf %181, %190 : vector<8x16xf32>
    %192 = arith.mulf %191, %191 : vector<8x16xf32>
    %cst_97 = arith.constant dense<0.000000e+00> : vector<8xf32>
    %193 = vector.multi_reduction <add>, %192, %cst_97 [1] : vector<8x16xf32> to vector<8xf32>
    %194 = vector.shape_cast %193 : vector<8xf32> to vector<8x1xf32>
    %cst_98 = arith.constant 1.600000e+01 : f32
    %195 = vector.broadcast %cst_98 : f32 to vector<8x1xf32>
    %196 = arith.divf %194, %195 : vector<8x1xf32>
    %197 = vector.broadcast %189 : vector<8x1xf32> to vector<8x16xf32>
    %198 = arith.subf %181, %197 : vector<8x16xf32>
    %cst_99 = arith.constant 9.99999974E-6 : f32
    %199 = vector.broadcast %cst_99 : f32 to vector<8x1xf32>
    %200 = arith.addf %196, %199 : vector<8x1xf32>
    %201 = math.rsqrt %200 : vector<8x1xf32>
    %202 = vector.broadcast %201 : vector<8x1xf32> to vector<8x16xf32>
    %203 = arith.mulf %198, %202 : vector<8x16xf32>
    %204 = vector.broadcast %183 : vector<1x16xf32> to vector<8x16xf32>
    %205 = arith.mulf %203, %204 : vector<8x16xf32>
    %206 = vector.broadcast %185 : vector<1x16xf32> to vector<8x16xf32>
    %207 = arith.addf %205, %206 : vector<8x16xf32>
    %c1_100 = arith.constant 1 : index
    %c0_101 = arith.constant 0 : index
    %c0_102 = arith.constant 0 : index
    %208 = vector.load %arg10[%c1_100, %c0_101, %c0_102] : memref<2x16x32xf32, #tpu.memory_space<vmem>>, vector<1x16x32xf32>
    %209 = vector.shape_cast %208 : vector<1x16x32xf32> to vector<16x32xf32>
    %cst_103 = arith.constant dense<0.000000e+00> : vector<8x32xf32>
    %210 = tpu.matmul %207, %209, %cst_103 {dimension_numbers = #tpu.dot_dimension_numbers<[1], [0], [0], [1], [0, 0, 1, 1], [], []>} : vector<8x16xf32>, vector<16x32xf32>, vector<8x32xf32> -> vector<8x32xf32>
    %c1_104 = arith.constant 1 : index
    %c0_105 = arith.constant 0 : index
    %c0_106 = arith.constant 0 : index
    %211 = vector.load %arg11[%c1_104, %c0_105, %c0_106] : memref<2x1x32xf32, #tpu.memory_space<vmem>>, vector<1x1x32xf32>
    %212 = vector.shape_cast %211 : vector<1x1x32xf32> to vector<1x32xf32>
    %213 = vector.broadcast %212 : vector<1x32xf32> to vector<8x32xf32>
    %214 = arith.addf %210, %213 : vector<8x32xf32>
    %cst_107 = arith.constant 0.000000e+00 : f32
    %215 = vector.broadcast %cst_107 : f32 to vector<8x32xf32>
    %216 = arith.maximumf %214, %215 : vector<8x32xf32>
    %c1_108 = arith.constant 1 : index
    %c0_109 = arith.constant 0 : index
    %c0_110 = arith.constant 0 : index
    %217 = vector.load %arg12[%c1_108, %c0_109, %c0_110] : memref<2x32x16xf32, #tpu.memory_space<vmem>>, vector<1x32x16xf32>
    %218 = vector.shape_cast %217 : vector<1x32x16xf32> to vector<32x16xf32>
    %cst_111 = arith.constant dense<0.000000e+00> : vector<8x16xf32>
    %219 = tpu.matmul %216, %218, %cst_111 {dimension_numbers = #tpu.dot_dimension_numbers<[1], [0], [0], [1], [0, 0, 1, 1], [], []>} : vector<8x32xf32>, vector<32x16xf32>, vector<8x16xf32> -> vector<8x16xf32>
    %c1_112 = arith.constant 1 : index
    %c0_113 = arith.constant 0 : index
    %c0_114 = arith.constant 0 : index
    %220 = vector.load %arg13[%c1_112, %c0_113, %c0_114] : memref<2x1x16xf32, #tpu.memory_space<vmem>>, vector<1x1x16xf32>
    %221 = vector.shape_cast %220 : vector<1x1x16xf32> to vector<1x16xf32>
    %222 = vector.broadcast %221 : vector<1x16xf32> to vector<8x16xf32>
    %223 = arith.addf %219, %222 : vector<8x16xf32>
    %224 = arith.addf %207, %223 : vector<8x16xf32>
    %c1_115 = arith.constant 1 : index
    %c0_116 = arith.constant 0 : index
    %c0_117 = arith.constant 0 : index
    %225 = vector.load %arg14[%c1_115, %c0_116, %c0_117] : memref<2x1x16xf32, #tpu.memory_space<vmem>>, vector<1x1x16xf32>
    %226 = vector.shape_cast %225 : vector<1x1x16xf32> to vector<1x16xf32>
    %c1_118 = arith.constant 1 : index
    %c0_119 = arith.constant 0 : index
    %c0_120 = arith.constant 0 : index
    %227 = vector.load %arg15[%c1_118, %c0_119, %c0_120] : memref<2x1x16xf32, #tpu.memory_space<vmem>>, vector<1x1x16xf32>
    %228 = vector.shape_cast %227 : vector<1x1x16xf32> to vector<1x16xf32>
    %cst_121 = arith.constant dense<0.000000e+00> : vector<8xf32>
    %229 = vector.multi_reduction <add>, %224, %cst_121 [1] : vector<8x16xf32> to vector<8xf32>
    %230 = vector.shape_cast %229 : vector<8xf32> to vector<8x1xf32>
    %cst_122 = arith.constant 1.600000e+01 : f32
    %231 = vector.broadcast %cst_122 : f32 to vector<8x1xf32>
    %232 = arith.divf %230, %231 : vector<8x1xf32>
    %233 = vector.broadcast %232 : vector<8x1xf32> to vector<8x16xf32>
    %234 = arith.subf %224, %233 : vector<8x16xf32>
    %235 = arith.mulf %234, %234 : vector<8x16xf32>
    %cst_123 = arith.constant dense<0.000000e+00> : vector<8xf32>
    %236 = vector.multi_reduction <add>, %235, %cst_123 [1] : vector<8x16xf32> to vector<8xf32>
    %237 = vector.shape_cast %236 : vector<8xf32> to vector<8x1xf32>
    %cst_124 = arith.constant 1.600000e+01 : f32
    %238 = vector.broadcast %cst_124 : f32 to vector<8x1xf32>
    %239 = arith.divf %237, %238 : vector<8x1xf32>
    %240 = vector.broadcast %232 : vector<8x1xf32> to vector<8x16xf32>
    %241 = arith.subf %224, %240 : vector<8x16xf32>
    %cst_125 = arith.constant 9.99999974E-6 : f32
    %242 = vector.broadcast %cst_125 : f32 to vector<8x1xf32>
    %243 = arith.addf %239, %242 : vector<8x1xf32>
    %244 = math.rsqrt %243 : vector<8x1xf32>
    %245 = vector.broadcast %244 : vector<8x1xf32> to vector<8x16xf32>
    %246 = arith.mulf %241, %245 : vector<8x16xf32>
    %247 = vector.broadcast %226 : vector<1x16xf32> to vector<8x16xf32>
    %248 = arith.mulf %246, %247 : vector<8x16xf32>
    %249 = vector.broadcast %228 : vector<1x16xf32> to vector<8x16xf32>
    %250 = arith.addf %248, %249 : vector<8x16xf32>
    %cst_126 = arith.constant 1.000000e+00 : f32
    %251 = vector.broadcast %cst_126 : f32 to vector<8x1xf32>
    %252 = arith.subf %251, %2 : vector<8x1xf32>
    %253 = vector.broadcast %252 : vector<8x1xf32> to vector<8x16xf32>
    %254 = arith.mulf %250, %253 : vector<8x16xf32>
    %255 = arith.mulf %254, %254 : vector<8x16xf32>
    %cst_127 = arith.constant dense<0.000000e+00> : vector<16xf32>
    %256 = vector.multi_reduction <add>, %255, %cst_127 [0] : vector<8x16xf32> to vector<16xf32>
    %257 = vector.shape_cast %256 : vector<16xf32> to vector<1x16xf32>
    %258 = math.sqrt %257 : vector<1x16xf32>
    %cst_128 = arith.constant 9.99999996E-13 : f32
    %259 = vector.broadcast %cst_128 : f32 to vector<1x16xf32>
    %260 = arith.maximumf %258, %259 : vector<1x16xf32>
    %261 = vector.broadcast %260 : vector<1x16xf32> to vector<8x16xf32>
    %262 = arith.divf %254, %261 : vector<8x16xf32>
    %c0_129 = arith.constant 0 : index
    %c0_130 = arith.constant 0 : index
    %c0_131 = arith.constant 0 : index
    %263 = vector.load %arg16[%c0_129, %c0_130, %c0_131] : memref<3x16x16xf32, #tpu.memory_space<vmem>>, vector<1x16x16xf32>
    %264 = vector.shape_cast %263 : vector<1x16x16xf32> to vector<16x16xf32>
    %cst_132 = arith.constant dense<0.000000e+00> : vector<8x16xf32>
    %265 = tpu.matmul %262, %264, %cst_132 {dimension_numbers = #tpu.dot_dimension_numbers<[1], [0], [0], [1], [0, 0, 1, 1], [], []>} : vector<8x16xf32>, vector<16x16xf32>, vector<8x16xf32> -> vector<8x16xf32>
    %266 = arith.mulf %265, %262 : vector<8x16xf32>
    %cst_133 = arith.constant dense<0.000000e+00> : vector<8xf32>
    %267 = vector.multi_reduction <add>, %266, %cst_133 [1] : vector<8x16xf32> to vector<8xf32>
    %268 = vector.shape_cast %267 : vector<8xf32> to vector<8x1xf32>
    %cst_134 = arith.constant dense<0.000000e+00> : vector<1xf32>
    %269 = vector.multi_reduction <add>, %268, %cst_134 [0] : vector<8x1xf32> to vector<1xf32>
    %270 = vector.shape_cast %269 : vector<1xf32> to vector<1x1xf32>
    %c1_135 = arith.constant 1 : index
    %c0_136 = arith.constant 0 : index
    %c0_137 = arith.constant 0 : index
    %271 = vector.load %arg16[%c1_135, %c0_136, %c0_137] : memref<3x16x16xf32, #tpu.memory_space<vmem>>, vector<1x16x16xf32>
    %272 = vector.shape_cast %271 : vector<1x16x16xf32> to vector<16x16xf32>
    %cst_138 = arith.constant dense<0.000000e+00> : vector<8x16xf32>
    %273 = tpu.matmul %262, %272, %cst_138 {dimension_numbers = #tpu.dot_dimension_numbers<[1], [0], [0], [1], [0, 0, 1, 1], [], []>} : vector<8x16xf32>, vector<16x16xf32>, vector<8x16xf32> -> vector<8x16xf32>
    %274 = arith.mulf %273, %262 : vector<8x16xf32>
    %cst_139 = arith.constant dense<0.000000e+00> : vector<8xf32>
    %275 = vector.multi_reduction <add>, %274, %cst_139 [1] : vector<8x16xf32> to vector<8xf32>
    %276 = vector.shape_cast %275 : vector<8xf32> to vector<8x1xf32>
    %cst_140 = arith.constant dense<0.000000e+00> : vector<1xf32>
    %277 = vector.multi_reduction <add>, %276, %cst_140 [0] : vector<8x1xf32> to vector<1xf32>
    %278 = vector.shape_cast %277 : vector<1xf32> to vector<1x1xf32>
    %c2 = arith.constant 2 : index
    %c0_141 = arith.constant 0 : index
    %c0_142 = arith.constant 0 : index
    %279 = vector.load %arg16[%c2, %c0_141, %c0_142] : memref<3x16x16xf32, #tpu.memory_space<vmem>>, vector<1x16x16xf32>
    %280 = vector.shape_cast %279 : vector<1x16x16xf32> to vector<16x16xf32>
    %cst_143 = arith.constant dense<0.000000e+00> : vector<8x16xf32>
    %281 = tpu.matmul %262, %280, %cst_143 {dimension_numbers = #tpu.dot_dimension_numbers<[1], [0], [0], [1], [0, 0, 1, 1], [], []>} : vector<8x16xf32>, vector<16x16xf32>, vector<8x16xf32> -> vector<8x16xf32>
    %282 = arith.mulf %281, %262 : vector<8x16xf32>
    %cst_144 = arith.constant dense<0.000000e+00> : vector<8xf32>
    %283 = vector.multi_reduction <add>, %282, %cst_144 [1] : vector<8x16xf32> to vector<8xf32>
    %284 = vector.shape_cast %283 : vector<8xf32> to vector<8x1xf32>
    %cst_145 = arith.constant dense<0.000000e+00> : vector<1xf32>
    %285 = vector.multi_reduction <add>, %284, %cst_145 [0] : vector<8x1xf32> to vector<1xf32>
    %286 = vector.shape_cast %285 : vector<1xf32> to vector<1x1xf32>
    %287 = tpu.concatenate %270, %278, %286 in 1 : vector<1x1xf32>, vector<1x1xf32>, vector<1x1xf32> -> vector<1x3xf32>
    %c0_146 = arith.constant 0 : index
    %c0_147 = arith.constant 0 : index
    %288 = vector.load %arg17[%c0_146, %c0_147] : memref<1x3xf32, #tpu.memory_space<vmem>>, vector<1x3xf32>
    %289 = arith.addf %287, %288 : vector<1x3xf32>
    %cst_148 = arith.constant dense<0xFF800000> : vector<1xf32>
    %290 = vector.multi_reduction <maximumf>, %289, %cst_148 [1] : vector<1x3xf32> to vector<1xf32>
    %291 = vector.shape_cast %290 : vector<1xf32> to vector<1x1xf32>
    %292 = vector.broadcast %291 : vector<1x1xf32> to vector<1x3xf32>
    %293 = arith.subf %289, %292 : vector<1x3xf32>
    %294 = math.exp %293 : vector<1x3xf32>
    %cst_149 = arith.constant dense<0.000000e+00> : vector<1xf32>
    %295 = vector.multi_reduction <add>, %294, %cst_149 [1] : vector<1x3xf32> to vector<1xf32>
    %296 = vector.shape_cast %295 : vector<1xf32> to vector<1x1xf32>
    %297 = vector.broadcast %296 : vector<1x1xf32> to vector<1x3xf32>
    %298 = arith.divf %294, %297 : vector<1x3xf32>
    %c0_150 = arith.constant 0 : index
    %c0_151 = arith.constant 0 : index
    %c0_152 = arith.constant 0 : index
    %299 = vector.load %arg18[%c0_150, %c0_151, %c0_152] : memref<1x1x3xf32, #tpu.memory_space<vmem>>, vector<1x1x3xf32>
    %300 = vector.shape_cast %299 : vector<1x1x3xf32> to vector<1x3xf32>
    %301 = vector.shape_cast %298 : vector<1x3xf32> to vector<1x1x3xf32>
    tpu.vector_store %arg18[%c0_150, %c0_151, %c0_152], %301 {strides = array<i32>} : memref<1x1x3xf32, #tpu.memory_space<vmem>>, vector<1x1x3xf32>,
    return
  }
  func.func @transform_0(%arg0: i32) -> (i32, i32) {
    %c0_i32 = arith.constant 0 : i32
    %c0_i32_0 = arith.constant 0 : i32
    return %arg0, %c0_i32 : i32, i32
  }
  func.func @transform_1(%arg0: i32) -> (i32, i32, i32) {
    %c0_i32 = arith.constant 0 : i32
    %c0_i32_0 = arith.constant 0 : i32
    %c0_i32_1 = arith.constant 0 : i32
    return %arg0, %c0_i32, %c0_i32_0 : i32, i32, i32
  }
  func.func @transform_2(%arg0: i32) -> (i32, i32) {
    %c0_i32 = arith.constant 0 : i32
    %c0_i32_0 = arith.constant 0 : i32
    return %arg0, %c0_i32 : i32, i32
  }
  func.func @transform_3(%arg0: i32) -> (i32, i32, i32) {
    %c0_i32 = arith.constant 0 : i32
    %c0_i32_0 = arith.constant 0 : i32
    %c0_i32_1 = arith.constant 0 : i32
    %c0_i32_2 = arith.constant 0 : i32
    return %c0_i32, %c0_i32_0, %c0_i32_1 : i32, i32, i32
  }
  func.func @transform_4(%arg0: i32) -> (i32, i32, i32) {
    %c0_i32 = arith.constant 0 : i32
    %c0_i32_0 = arith.constant 0 : i32
    %c0_i32_1 = arith.constant 0 : i32
    %c0_i32_2 = arith.constant 0 : i32
    return %c0_i32, %c0_i32_0, %c0_i32_1 : i32, i32, i32
  }
  func.func @transform_5(%arg0: i32) -> (i32, i32, i32) {
    %c0_i32 = arith.constant 0 : i32
    %c0_i32_0 = arith.constant 0 : i32
    %c0_i32_1 = arith.constant 0 : i32
    %c0_i32_2 = arith.constant 0 : i32
    return %c0_i32, %c0_i32_0, %c0_i32_1 : i32, i32, i32
  }
  func.func @transform_6(%arg0: i32) -> (i32, i32, i32) {
    %c0_i32 = arith.constant 0 : i32
    %c0_i32_0 = arith.constant 0 : i32
    %c0_i32_1 = arith.constant 0 : i32
    %c0_i32_2 = arith.constant 0 : i32
    return %c0_i32, %c0_i32_0, %c0_i32_1 : i32, i32, i32
  }
  func.func @transform_7(%arg0: i32) -> (i32, i32, i32) {
    %c0_i32 = arith.constant 0 : i32
    %c0_i32_0 = arith.constant 0 : i32
    %c0_i32_1 = arith.constant 0 : i32
    %c0_i32_2 = arith.constant 0 : i32
    return %c0_i32, %c0_i32_0, %c0_i32_1 : i32, i32, i32
  }
  func.func @transform_8(%arg0: i32) -> (i32, i32, i32) {
    %c0_i32 = arith.constant 0 : i32
    %c0_i32_0 = arith.constant 0 : i32
    %c0_i32_1 = arith.constant 0 : i32
    %c0_i32_2 = arith.constant 0 : i32
    return %c0_i32, %c0_i32_0, %c0_i32_1 : i32, i32, i32
  }
  func.func @transform_9(%arg0: i32) -> (i32, i32, i32) {
    %c0_i32 = arith.constant 0 : i32
    %c0_i32_0 = arith.constant 0 : i32
    %c0_i32_1 = arith.constant 0 : i32
    %c0_i32_2 = arith.constant 0 : i32
    return %c0_i32, %c0_i32_0, %c0_i32_1 : i32, i32, i32
  }
  func.func @transform_10(%arg0: i32) -> (i32, i32, i32) {
    %c0_i32 = arith.constant 0 : i32
    %c0_i32_0 = arith.constant 0 : i32
    %c0_i32_1 = arith.constant 0 : i32
    %c0_i32_2 = arith.constant 0 : i32
    return %c0_i32, %c0_i32_0, %c0_i32_1 : i32, i32, i32
  }
  func.func @transform_11(%arg0: i32) -> (i32, i32, i32) {
    %c0_i32 = arith.constant 0 : i32
    %c0_i32_0 = arith.constant 0 : i32
    %c0_i32_1 = arith.constant 0 : i32
    %c0_i32_2 = arith.constant 0 : i32
    return %c0_i32, %c0_i32_0, %c0_i32_1 : i32, i32, i32
  }
  func.func @transform_12(%arg0: i32) -> (i32, i32, i32) {
    %c0_i32 = arith.constant 0 : i32
    %c0_i32_0 = arith.constant 0 : i32
    %c0_i32_1 = arith.constant 0 : i32
    %c0_i32_2 = arith.constant 0 : i32
    return %c0_i32, %c0_i32_0, %c0_i32_1 : i32, i32, i32
  }
  func.func @transform_13(%arg0: i32) -> (i32, i32, i32) {
    %c0_i32 = arith.constant 0 : i32
    %c0_i32_0 = arith.constant 0 : i32
    %c0_i32_1 = arith.constant 0 : i32
    %c0_i32_2 = arith.constant 0 : i32
    return %c0_i32, %c0_i32_0, %c0_i32_1 : i32, i32, i32
  }
  func.func @transform_14(%arg0: i32) -> (i32, i32, i32) {
    %c0_i32 = arith.constant 0 : i32
    %c0_i32_0 = arith.constant 0 : i32
    %c0_i32_1 = arith.constant 0 : i32
    %c0_i32_2 = arith.constant 0 : i32
    return %c0_i32, %c0_i32_0, %c0_i32_1 : i32, i32, i32
  }
  func.func @transform_15(%arg0: i32) -> (i32, i32, i32) {
    %c0_i32 = arith.constant 0 : i32
    %c0_i32_0 = arith.constant 0 : i32
    %c0_i32_1 = arith.constant 0 : i32
    %c0_i32_2 = arith.constant 0 : i32
    return %c0_i32, %c0_i32_0, %c0_i32_1 : i32, i32, i32
  }
  func.func @transform_16(%arg0: i32) -> (i32, i32) {
    %c0_i32 = arith.constant 0 : i32
    %c0_i32_0 = arith.constant 0 : i32
    %c0_i32_1 = arith.constant 0 : i32
    return %c0_i32, %c0_i32_0 : i32, i32
  }
  func.func @transform_17(%arg0: i32) -> (i32, i32, i32) {
    %c0_i32 = arith.constant 0 : i32
    %c0_i32_0 = arith.constant 0 : i32
    %c0_i32_1 = arith.constant 0 : i32
    return %arg0, %c0_i32, %c0_i32_0 : i32, i32, i32
  }
}

</mosaic_0001>

<llo_original>
// kernel: _lambda_.1
$region0: #{_lambda_.1}
  #allocation0 [shape = 'u32[]', space=smem, size = 0x4, offset = 0x4, fixed_abs, tag = 'smem constant byte address 0x4 - core index']
  #allocation1 [shape = 'u32[144,128]{1,0:T(1,128)}', space=vmem, size = 0x12000, scoped, tag = 'internal scratch']
  %s0 = inlined_call_operand.vmem [shape: f32[16,16], index: 0, kind: input, shape index: {}]
  %s1 = inlined_call_operand.vmem [shape: f32[2,1,8], index: 1, kind: input, shape index: {}]
  %s2 = inlined_call_operand.vmem [shape: f32[16,1], index: 2, kind: input, shape index: {}]
  %s3 = inlined_call_operand.vmem [shape: f32[2,16,48], index: 3, kind: input, shape index: {}]
  %s4 = inlined_call_operand.vmem [shape: f32[2,1,48], index: 4, kind: input, shape index: {}]
  %s5 = inlined_call_operand.vmem [shape: f32[2,16,16], index: 5, kind: input, shape index: {}]
  %s6 = inlined_call_operand.vmem [shape: f32[2,1,16], index: 6, kind: input, shape index: {}]
  %s7 = inlined_call_operand.vmem [shape: f32[2,1,16], index: 7, kind: input, shape index: {}]
  %s8 = inlined_call_operand.vmem [shape: f32[2,1,16], index: 8, kind: input, shape index: {}]
  %s9 = inlined_call_operand.vmem [shape: f32[2,16,32], index: 9, kind: input, shape index: {}]
  %s10 = inlined_call_operand.vmem [shape: f32[2,1,32], index: 10, kind: input, shape index: {}]
  %s11 = inlined_call_operand.vmem [shape: f32[2,32,16], index: 11, kind: input, shape index: {}]
  %s12 = inlined_call_operand.vmem [shape: f32[2,1,16], index: 12, kind: input, shape index: {}]
  %s13 = inlined_call_operand.vmem [shape: f32[2,1,16], index: 13, kind: input, shape index: {}]
  %s14 = inlined_call_operand.vmem [shape: f32[2,1,16], index: 14, kind: input, shape index: {}]
  %s15 = inlined_call_operand.vmem [shape: f32[3,16,16], index: 15, kind: input, shape index: {}]
  %s16 = inlined_call_operand.vmem [shape: f32[1,3], index: 16, kind: input, shape index: {}]
  %s17 = inlined_call_operand.hbm [shape: f32[2,1,3], index: 17, kind: output, shape index: {}]
  %s18 = sld [smem:[#allocation0]]
  $region101: #{_lambda_.1} parent=0
    _
  %s20 = ssub.s32 1, %s18
  %s21 = scalar_select 0, %s20, %s18
  $region1: #{_lambda_.1} parent=0
    #allocation2 [shape = 'u8[1024]{0}', space=vmem, size = 0x400, scoped, tag = 'output window, operand 0']
    #allocation3 [shape = 's32[2]{0}', space=sflag, size = 0x8, scoped, tag = 'scoped memory for _lambda_.1']
    %22 = vsyncpa [#allocation3], 0
    %s23 = scalar_lea.sflag [#allocation3], 1
    %24 = vsyncpa %s23, 0
    loop: start=0, step=1, limit=4
    $region2: #{_lambda_.1} parent=1 // loop_pre_header
      _
    $region3: #{_lambda_.1} parent=1 // loop_header
      %s26 = sphi 0, %s30
      %p27 = scmp.ge.s32.totalorder %s26, 4
      %s36 = sphi 0, %s38
      %s39 = sphi 0, %s36
      %s40 = sphi 0, %s39
      %s56 = sphi 0, %s40
      %s62 = sphi 0, %s64
      %s65 = sphi 0, %s62
      %s66 = sphi 0, %s65
      %s82 = sphi 0, %s66
      %s88 = sphi 0, %s90
      %s91 = sphi 0, %s88
      %s92 = sphi 0, %s91
      %s108 = sphi 0, %s92
      %s112 = sphi 0, %s112
      %s114 = sphi 0, %s112
      %s115 = sphi 0, %s114
      %s129 = sphi 0, %s115
      %s133 = sphi 0, %s133
      %s135 = sphi 0, %s133
      %s136 = sphi 0, %s135
      %s150 = sphi 0, %s136
      %s154 = sphi 0, %s154
      %s156 = sphi 0, %s154
      %s157 = sphi 0, %s156
      %s171 = sphi 0, %s157
      %s175 = sphi 0, %s175
      %s177 = sphi 0, %s175
      %s178 = sphi 0, %s177
      %s192 = sphi 0, %s178
      %s196 = sphi 0, %s196
      %s198 = sphi 0, %s196
      %s199 = sphi 0, %s198
      %s213 = sphi 0, %s199
      %s217 = sphi 0, %s217
      %s219 = sphi 0, %s217
      %s220 = sphi 0, %s219
      %s234 = sphi 0, %s220
      %s238 = sphi 0, %s238
      %s240 = sphi 0, %s238
      %s241 = sphi 0, %s240
      %s255 = sphi 0, %s241
      %s259 = sphi 0, %s259
      %s261 = sphi 0, %s259
      %s262 = sphi 0, %s261
      %s276 = sphi 0, %s262
      %s280 = sphi 0, %s280
      %s282 = sphi 0, %s280
      %s283 = sphi 0, %s282
      %s297 = sphi 0, %s283
      %s301 = sphi 0, %s301
      %s303 = sphi 0, %s301
      %s304 = sphi 0, %s303
      %s318 = sphi 0, %s304
      %s322 = sphi 0, %s322
      %s324 = sphi 0, %s322
      %s325 = sphi 0, %s324
      %s339 = sphi 0, %s325
      %s343 = sphi 0, %s343
      %s345 = sphi 0, %s343
      %s346 = sphi 0, %s345
      %s360 = sphi 0, %s346
      %s364 = sphi 0, %s364
      %s366 = sphi 0, %s364
      %s367 = sphi 0, %s366
      %s381 = sphi 0, %s367
      %s385 = sphi 0, %s385
      %s387 = sphi 0, %s385
      %s388 = sphi 0, %s387
      %s402 = sphi 0, %s388
      %s408 = sphi 0, %s410
      %s411 = sphi 0, %s408
      %s412 = sphi 0, %s411
      %s428 = sphi 0, %s412
    $region4: #{_lambda_.1} parent=1 // loop_header_branch
      %29 = sbr.rel (%p27) target = $region8
    $region5: #{_lambda_.1} parent=1 // loop_body
      %s31 = ssub.s32 %s26, 1
      %s32 = ssub.s32 %s26, 2
      %s33 = sadd.s32 %s26, 1
      %s34 = ssub.s32 %s26, %s33
      %p35 = scmp.eq.s32.totalorder %s34, 0
      %s37 = sadd.s32 %s36, 1
      %s38 = scalar_select %p35, %s36, %s37
      %p41 = pneg %p35
      %p42 = scmp.eq.s32.totalorder %s26, 1
      %p43 = por %p41, %p42
      %p44 = scmp.ne.s32.totalorder %s36, %s39
      %p45 = scmp.eq.s32.totalorder %s26, 0
      %p46 = por %p44, %p45
      %p47 = scmp.ne.s32.totalorder %s36, %s39
      %p48 = scmp.eq.s32.totalorder %s31, 1
      %p49 = por %p47, %p48
      %p50 = scmp.ne.s32.totalorder %s39, %s40
      %p51 = scmp.eq.s32.totalorder %s31, 0
      %p52 = por %p50, %p51
      %p53 = scmp.ne.s32.totalorder %s39, %s40
      %p54 = scmp.eq.s32.totalorder %s32, 1
      %p55 = por %p53, %p54
      %p57 = scmp.ne.s32.totalorder %s40, %s56
      %p58 = scmp.eq.s32.totalorder %s32, 0
      %p59 = por %p57, %p58
      %s60 = ssub.s32 %s26, %s33
      %p61 = scmp.eq.s32.totalorder %s60, 0
      %s63 = sadd.s32 %s62, 1
      %s64 = scalar_select %p61, %s62, %s63
      %p67 = pneg %p61
      %p68 = scmp.eq.s32.totalorder %s26, 1
      %p69 = por %p67, %p68
      %p70 = scmp.ne.s32.totalorder %s62, %s65
      %p71 = scmp.eq.s32.totalorder %s26, 0
      %p72 = por %p70, %p71
      %p73 = scmp.ne.s32.totalorder %s62, %s65
      %p74 = scmp.eq.s32.totalorder %s31, 1
      %p75 = por %p73, %p74
      %p76 = scmp.ne.s32.totalorder %s65, %s66
      %p77 = scmp.eq.s32.totalorder %s31, 0
      %p78 = por %p76, %p77
      %p79 = scmp.ne.s32.totalorder %s65, %s66
      %p80 = scmp.eq.s32.totalorder %s32, 1
      %p81 = por %p79, %p80
      %p83 = scmp.ne.s32.totalorder %s66, %s82
      %p84 = scmp.eq.s32.totalorder %s32, 0
      %p85 = por %p83, %p84
      %s86 = ssub.s32 %s26, %s33
      %p87 = scmp.eq.s32.totalorder %s86, 0
      %s89 = sadd.s32 %s88, 1
      %s90 = scalar_select %p87, %s88, %s89
      %p93 = pneg %p87
      %p94 = scmp.eq.s32.totalorder %s26, 1
      %p95 = por %p93, %p94
      %p96 = scmp.ne.s32.totalorder %s88, %s91
      %p97 = scmp.eq.s32.totalorder %s26, 0
      %p98 = por %p96, %p97
      %p99 = scmp.ne.s32.totalorder %s88, %s91
      %p100 = scmp.eq.s32.totalorder %s31, 1
      %p101 = por %p99, %p100
      %p102 = scmp.ne.s32.totalorder %s91, %s92
      %p103 = scmp.eq.s32.totalorder %s31, 0
      %p104 = por %p102, %p103
      %p105 = scmp.ne.s32.totalorder %s91, %s92
      %p106 = scmp.eq.s32.totalorder %s32, 1
      %p107 = por %p105, %p106
      %p109 = scmp.ne.s32.totalorder %s92, %s108
      %p110 = scmp.eq.s32.totalorder %s32, 0
      %p111 = por %p109, %p110
      %s113 = sadd.s32 %s112, 1
      %p116 = scmp.eq.s32.totalorder %s26, 1
      %p117 = scmp.ne.s32.totalorder %s112, %s114
      %p118 = scmp.eq.s32.totalorder %s26, 0
      %p119 = por %p117, %p118
      %p120 = scmp.ne.s32.totalorder %s112, %s114
      %p121 = scmp.eq.s32.totalorder %s31, 1
      %p122 = por %p120, %p121
      %p123 = scmp.ne.s32.totalorder %s114, %s115
      %p124 = scmp.eq.s32.totalorder %s31, 0
      %p125 = por %p123, %p124
      %p126 = scmp.ne.s32.totalorder %s114, %s115
      %p127 = scmp.eq.s32.totalorder %s32, 1
      %p128 = por %p126, %p127
      %p130 = scmp.ne.s32.totalorder %s115, %s129
      %p131 = scmp.eq.s32.totalorder %s32, 0
      %p132 = por %p130, %p131
      %s134 = sadd.s32 %s133, 1
      %p137 = scmp.eq.s32.totalorder %s26, 1
      %p138 = scmp.ne.s32.totalorder %s133, %s135
      %p139 = scmp.eq.s32.totalorder %s26, 0
      %p140 = por %p138, %p139
      %p141 = scmp.ne.s32.totalorder %s133, %s135
      %p142 = scmp.eq.s32.totalorder %s31, 1
      %p143 = por %p141, %p142
      %p144 = scmp.ne.s32.totalorder %s135, %s136
      %p145 = scmp.eq.s32.totalorder %s31, 0
      %p146 = por %p144, %p145
      %p147 = scmp.ne.s32.totalorder %s135, %s136
      %p148 = scmp.eq.s32.totalorder %s32, 1
      %p149 = por %p147, %p148
      %p151 = scmp.ne.s32.totalorder %s136, %s150
      %p152 = scmp.eq.s32.totalorder %s32, 0
      %p153 = por %p151, %p152
      %s155 = sadd.s32 %s154, 1
      %p158 = scmp.eq.s32.totalorder %s26, 1
      %p159 = scmp.ne.s32.totalorder %s154, %s156
      %p160 = scmp.eq.s32.totalorder %s26, 0
      %p161 = por %p159, %p160
      %p162 = scmp.ne.s32.totalorder %s154, %s156
      %p163 = scmp.eq.s32.totalorder %s31, 1
      %p164 = por %p162, %p163
      %p165 = scmp.ne.s32.totalorder %s156, %s157
      %p166 = scmp.eq.s32.totalorder %s31, 0
      %p167 = por %p165, %p166
      %p168 = scmp.ne.s32.totalorder %s156, %s157
      %p169 = scmp.eq.s32.totalorder %s32, 1
      %p170 = por %p168, %p169
      %p172 = scmp.ne.s32.totalorder %s157, %s171
      %p173 = scmp.eq.s32.totalorder %s32, 0
      %p174 = por %p172, %p173
      %s176 = sadd.s32 %s175, 1
      %p179 = scmp.eq.s32.totalorder %s26, 1
      %p180 = scmp.ne.s32.totalorder %s175, %s177
      %p181 = scmp.eq.s32.totalorder %s26, 0
      %p182 = por %p180, %p181
      %p183 = scmp.ne.s32.totalorder %s175, %s177
      %p184 = scmp.eq.s32.totalorder %s31, 1
      %p185 = por %p183, %p184
      %p186 = scmp.ne.s32.totalorder %s177, %s178
      %p187 = scmp.eq.s32.totalorder %s31, 0
      %p188 = por %p186, %p187
      %p189 = scmp.ne.s32.totalorder %s177, %s178
      %p190 = scmp.eq.s32.totalorder %s32, 1
      %p191 = por %p189, %p190
      %p193 = scmp.ne.s32.totalorder %s178, %s192
      %p194 = scmp.eq.s32.totalorder %s32, 0
      %p195 = por %p193, %p194
      %s197 = sadd.s32 %s196, 1
      %p200 = scmp.eq.s32.totalorder %s26, 1
      %p201 = scmp.ne.s32.totalorder %s196, %s198
      %p202 = scmp.eq.s32.totalorder %s26, 0
      %p203 = por %p201, %p202
      %p204 = scmp.ne.s32.totalorder %s196, %s198
      %p205 = scmp.eq.s32.totalorder %s31, 1
      %p206 = por %p204, %p205
      %p207 = scmp.ne.s32.totalorder %s198, %s199
      %p208 = scmp.eq.s32.totalorder %s31, 0
      %p209 = por %p207, %p208
      %p210 = scmp.ne.s32.totalorder %s198, %s199
      %p211 = scmp.eq.s32.totalorder %s32, 1
      %p212 = por %p210, %p211
      %p214 = scmp.ne.s32.totalorder %s199, %s213
      %p215 = scmp.eq.s32.totalorder %s32, 0
      %p216 = por %p214, %p215
      %s218 = sadd.s32 %s217, 1
      %p221 = scmp.eq.s32.totalorder %s26, 1
      %p222 = scmp.ne.s32.totalorder %s217, %s219
      %p223 = scmp.eq.s32.totalorder %s26, 0
      %p224 = por %p222, %p223
      %p225 = scmp.ne.s32.totalorder %s217, %s219
      %p226 = scmp.eq.s32.totalorder %s31, 1
      %p227 = por %p225, %p226
      %p228 = scmp.ne.s32.totalorder %s219, %s220
      %p229 = scmp.eq.s32.totalorder %s31, 0
      %p230 = por %p228, %p229
      %p231 = scmp.ne.s32.totalorder %s219, %s220
      %p232 = scmp.eq.s32.totalorder %s32, 1
      %p233 = por %p231, %p232
      %p235 = scmp.ne.s32.totalorder %s220, %s234
      %p236 = scmp.eq.s32.totalorder %s32, 0
      %p237 = por %p235, %p236
      %s239 = sadd.s32 %s238, 1
      %p242 = scmp.eq.s32.totalorder %s26, 1
      %p243 = scmp.ne.s32.totalorder %s238, %s240
      %p244 = scmp.eq.s32.totalorder %s26, 0
      %p245 = por %p243, %p244
      %p246 = scmp.ne.s32.totalorder %s238, %s240
      %p247 = scmp.eq.s32.totalorder %s31, 1
      %p248 = por %p246, %p247
      %p249 = scmp.ne.s32.totalorder %s240, %s241
      %p250 = scmp.eq.s32.totalorder %s31, 0
      %p251 = por %p249, %p250
      %p252 = scmp.ne.s32.totalorder %s240, %s241
      %p253 = scmp.eq.s32.totalorder %s32, 1
      %p254 = por %p252, %p253
      %p256 = scmp.ne.s32.totalorder %s241, %s255
      %p257 = scmp.eq.s32.totalorder %s32, 0
      %p258 = por %p256, %p257
      %s260 = sadd.s32 %s259, 1
      %p263 = scmp.eq.s32.totalorder %s26, 1
      %p264 = scmp.ne.s32.totalorder %s259, %s261
      %p265 = scmp.eq.s32.totalorder %s26, 0
      %p266 = por %p264, %p265
      %p267 = scmp.ne.s32.totalorder %s259, %s261
      %p268 = scmp.eq.s32.totalorder %s31, 1
      %p269 = por %p267, %p268
      %p270 = scmp.ne.s32.totalorder %s261, %s262
      %p271 = scmp.eq.s32.totalorder %s31, 0
      %p272 = por %p270, %p271
      %p273 = scmp.ne.s32.totalorder %s261, %s262
      %p274 = scmp.eq.s32.totalorder %s32, 1
      %p275 = por %p273, %p274
      %p277 = scmp.ne.s32.totalorder %s262, %s276
      %p278 = scmp.eq.s32.totalorder %s32, 0
      %p279 = por %p277, %p278
      %s281 = sadd.s32 %s280, 1
      %p284 = scmp.eq.s32.totalorder %s26, 1
      %p285 = scmp.ne.s32.totalorder %s280, %s282
      %p286 = scmp.eq.s32.totalorder %s26, 0
      %p287 = por %p285, %p286
      %p288 = scmp.ne.s32.totalorder %s280, %s282
      %p289 = scmp.eq.s32.totalorder %s31, 1
      %p290 = por %p288, %p289
      %p291 = scmp.ne.s32.totalorder %s282, %s283
      %p292 = scmp.eq.s32.totalorder %s31, 0
      %p293 = por %p291, %p292
      %p294 = scmp.ne.s32.totalorder %s282, %s283
      %p295 = scmp.eq.s32.totalorder %s32, 1
      %p296 = por %p294, %p295
      %p298 = scmp.ne.s32.totalorder %s283, %s297
      %p299 = scmp.eq.s32.totalorder %s32, 0
      %p300 = por %p298, %p299
      %s302 = sadd.s32 %s301, 1
      %p305 = scmp.eq.s32.totalorder %s26, 1
      %p306 = scmp.ne.s32.totalorder %s301, %s303
      %p307 = scmp.eq.s32.totalorder %s26, 0
      %p308 = por %p306, %p307
      %p309 = scmp.ne.s32.totalorder %s301, %s303
      %p310 = scmp.eq.s32.totalorder %s31, 1
      %p311 = por %p309, %p310
      %p312 = scmp.ne.s32.totalorder %s303, %s304
      %p313 = scmp.eq.s32.totalorder %s31, 0
      %p314 = por %p312, %p313
      %p315 = scmp.ne.s32.totalorder %s303, %s304
      %p316 = scmp.eq.s32.totalorder %s32, 1
      %p317 = por %p315, %p316
      %p319 = scmp.ne.s32.totalorder %s304, %s318
      %p320 = scmp.eq.s32.totalorder %s32, 0
      %p321 = por %p319, %p320
      %s323 = sadd.s32 %s322, 1
      %p326 = scmp.eq.s32.totalorder %s26, 1
      %p327 = scmp.ne.s32.totalorder %s322, %s324
      %p328 = scmp.eq.s32.totalorder %s26, 0
      %p329 = por %p327, %p328
      %p330 = scmp.ne.s32.totalorder %s322, %s324
      %p331 = scmp.eq.s32.totalorder %s31, 1
      %p332 = por %p330, %p331
      %p333 = scmp.ne.s32.totalorder %s324, %s325
      %p334 = scmp.eq.s32.totalorder %s31, 0
      %p335 = por %p333, %p334
      %p336 = scmp.ne.s32.totalorder %s324, %s325
      %p337 = scmp.eq.s32.totalorder %s32, 1
      %p338 = por %p336, %p337
      %p340 = scmp.ne.s32.totalorder %s325, %s339
      %p341 = scmp.eq.s32.totalorder %s32, 0
      %p342 = por %p340, %p341
      %s344 = sadd.s32 %s343, 1
      %p347 = scmp.eq.s32.totalorder %s26, 1
      %p348 = scmp.ne.s32.totalorder %s343, %s345
      %p349 = scmp.eq.s32.totalorder %s26, 0
      %p350 = por %p348, %p349
      %p351 = scmp.ne.s32.totalorder %s343, %s345
      %p352 = scmp.eq.s32.totalorder %s31, 1
      %p353 = por %p351, %p352
      %p354 = scmp.ne.s32.totalorder %s345, %s346
      %p355 = scmp.eq.s32.totalorder %s31, 0
      %p356 = por %p354, %p355
      %p357 = scmp.ne.s32.totalorder %s345, %s346
      %p358 = scmp.eq.s32.totalorder %s32, 1
      %p359 = por %p357, %p358
      %p361 = scmp.ne.s32.totalorder %s346, %s360
      %p362 = scmp.eq.s32.totalorder %s32, 0
      %p363 = por %p361, %p362
      %s365 = sadd.s32 %s364, 1
      %p368 = scmp.eq.s32.totalorder %s26, 1
      %p369 = scmp.ne.s32.totalorder %s364, %s366
      %p370 = scmp.eq.s32.totalorder %s26, 0
      %p371 = por %p369, %p370
      %p372 = scmp.ne.s32.totalorder %s364, %s366
      %p373 = scmp.eq.s32.totalorder %s31, 1
      %p374 = por %p372, %p373
      %p375 = scmp.ne.s32.totalorder %s366, %s367
      %p376 = scmp.eq.s32.totalorder %s31, 0
      %p377 = por %p375, %p376
      %p378 = scmp.ne.s32.totalorder %s366, %s367
      %p379 = scmp.eq.s32.totalorder %s32, 1
      %p380 = por %p378, %p379
      %p382 = scmp.ne.s32.totalorder %s367, %s381
      %p383 = scmp.eq.s32.totalorder %s32, 0
      %p384 = por %p382, %p383
      %s386 = sadd.s32 %s385, 1
      %p389 = scmp.eq.s32.totalorder %s26, 1
      %p390 = scmp.ne.s32.totalorder %s385, %s387
      %p391 = scmp.eq.s32.totalorder %s26, 0
      %p392 = por %p390, %p391
      %p393 = scmp.ne.s32.totalorder %s385, %s387
      %p394 = scmp.eq.s32.totalorder %s31, 1
      %p395 = por %p393, %p394
      %p396 = scmp.ne.s32.totalorder %s387, %s388
      %p397 = scmp.eq.s32.totalorder %s31, 0
      %p398 = por %p396, %p397
      %p399 = scmp.ne.s32.totalorder %s387, %s388
      %p400 = scmp.eq.s32.totalorder %s32, 1
      %p401 = por %p399, %p400
      %p403 = scmp.ne.s32.totalorder %s388, %s402
      %p404 = scmp.eq.s32.totalorder %s32, 0
      %p405 = por %p403, %p404
      %s406 = ssub.s32 %s26, %s33
      %p407 = scmp.eq.s32.totalorder %s406, 0
      %s409 = sadd.s32 %s408, 1
      %s410 = scalar_select %p407, %s408, %s409
      %p413 = pneg %p407
      %p414 = scmp.eq.s32.totalorder %s26, 1
      %p415 = por %p413, %p414
      %p416 = scmp.ne.s32.totalorder %s408, %s411
      %p417 = scmp.eq.s32.totalorder %s26, 0
      %p418 = por %p416, %p417
      %p419 = scmp.ne.s32.totalorder %s408, %s411
      %p420 = scmp.eq.s32.totalorder %s31, 1
      %p421 = por %p419, %p420
      %p422 = scmp.ne.s32.totalorder %s411, %s412
      %p423 = scmp.eq.s32.totalorder %s31, 0
      %p424 = por %p422, %p423
      %p425 = scmp.ne.s32.totalorder %s411, %s412
      %p426 = scmp.eq.s32.totalorder %s32, 1
      %p427 = por %p425, %p426
      %p429 = scmp.ne.s32.totalorder %s412, %s428
      %p430 = scmp.eq.s32.totalorder %s32, 0
      %p431 = por %p429, %p430
      %p432 = scmp.le.s32.totalorder 1, %s26
      %p433 = scmp.lt.s32.totalorder %s26, 3
      %p434 = pnand %p432, %p433
      %p435 = pneg %p434
      // Predicated region
      $region9: #{_lambda_.1} parent=5 // pred_check
        _
      $region10: #{_lambda_.1} parent=5 // pred_check_branch
        %437 = sbr.rel (%p434) target = $region12
      $region11: #{_lambda_.1} parent=5 // pred_region
        %s438 = ssub.s32 %s26, 1
        // Predicated region
        $region13: #{_lambda_.1} parent=11 // pred_check
          %p439 = pneg %p125
        $region14: #{_lambda_.1} parent=11 // pred_check_branch
          %441 = sbr.rel (%p439) target = $region16
        $region15: #{_lambda_.1} parent=11 // pred_region
          _
        $region16: #{_lambda_.1} parent=11 // pred_fallthru
          _
        // Predicated region
        $region17: #{_lambda_.1} parent=11 // pred_check
          %p442 = pneg %p146
        $region18: #{_lambda_.1} parent=11 // pred_check_branch
          %444 = sbr.rel (%p442) target = $region20
        $region19: #{_lambda_.1} parent=11 // pred_region
          _
        $region20: #{_lambda_.1} parent=11 // pred_fallthru
          _
        // Predicated region
        $region21: #{_lambda_.1} parent=11 // pred_check
          %p445 = pneg %p167
        $region22: #{_lambda_.1} parent=11 // pred_check_branch
          %447 = sbr.rel (%p445) target = $region24
        $region23: #{_lambda_.1} parent=11 // pred_region
          _
        $region24: #{_lambda_.1} parent=11 // pred_fallthru
          _
        // Predicated region
        $region25: #{_lambda_.1} parent=11 // pred_check
          %p448 = pneg %p188
        $region26: #{_lambda_.1} parent=11 // pred_check_branch
          %450 = sbr.rel (%p448) target = $region28
        $region27: #{_lambda_.1} parent=11 // pred_region
          _
        $region28: #{_lambda_.1} parent=11 // pred_fallthru
          _
        // Predicated region
        $region29: #{_lambda_.1} parent=11 // pred_check
          %p451 = pneg %p209
        $region30: #{_lambda_.1} parent=11 // pred_check_branch
          %453 = sbr.rel (%p451) target = $region32
        $region31: #{_lambda_.1} parent=11 // pred_region
          _
        $region32: #{_lambda_.1} parent=11 // pred_fallthru
          _
        // Predicated region
        $region33: #{_lambda_.1} parent=11 // pred_check
          %p454 = pneg %p230
        $region34: #{_lambda_.1} parent=11 // pred_check_branch
          %456 = sbr.rel (%p454) target = $region36
        $region35: #{_lambda_.1} parent=11 // pred_region
          _
        $region36: #{_lambda_.1} parent=11 // pred_fallthru
          _
        // Predicated region
        $region37: #{_lambda_.1} parent=11 // pred_check
          %p457 = pneg %p251
        $region38: #{_lambda_.1} parent=11 // pred_check_branch
          %459 = sbr.rel (%p457) target = $region40
        $region39: #{_lambda_.1} parent=11 // pred_region
          _
        $region40: #{_lambda_.1} parent=11 // pred_fallthru
          _
        // Predicated region
        $region41: #{_lambda_.1} parent=11 // pred_check
          %p460 = pneg %p272
        $region42: #{_lambda_.1} parent=11 // pred_check_branch
          %462 = sbr.rel (%p460) target = $region44
        $region43: #{_lambda_.1} parent=11 // pred_region
          _
        $region44: #{_lambda_.1} parent=11 // pred_fallthru
          _
        // Predicated region
        $region45: #{_lambda_.1} parent=11 // pred_check
          %p463 = pneg %p293
        $region46: #{_lambda_.1} parent=11 // pred_check_branch
          %465 = sbr.rel (%p463) target = $region48
        $region47: #{_lambda_.1} parent=11 // pred_region
          _
        $region48: #{_lambda_.1} parent=11 // pred_fallthru
          _
        // Predicated region
        $region49: #{_lambda_.1} parent=11 // pred_check
          %p466 = pneg %p314
        $region50: #{_lambda_.1} parent=11 // pred_check_branch
          %468 = sbr.rel (%p466) target = $region52
        $region51: #{_lambda_.1} parent=11 // pred_region
          _
        $region52: #{_lambda_.1} parent=11 // pred_fallthru
          _
        // Predicated region
        $region53: #{_lambda_.1} parent=11 // pred_check
          %p469 = pneg %p335
        $region54: #{_lambda_.1} parent=11 // pred_check_branch
          %471 = sbr.rel (%p469) target = $region56
        $region55: #{_lambda_.1} parent=11 // pred_region
          _
        $region56: #{_lambda_.1} parent=11 // pred_fallthru
          _
        // Predicated region
        $region57: #{_lambda_.1} parent=11 // pred_check
          %p472 = pneg %p356
        $region58: #{_lambda_.1} parent=11 // pred_check_branch
          %474 = sbr.rel (%p472) target = $region60
        $region59: #{_lambda_.1} parent=11 // pred_region
          _
        $region60: #{_lambda_.1} parent=11 // pred_fallthru
          _
        // Predicated region
        $region61: #{_lambda_.1} parent=11 // pred_check
          %p475 = pneg %p377
        $region62: #{_lambda_.1} parent=11 // pred_check_branch
          %477 = sbr.rel (%p475) target = $region64
        $region63: #{_lambda_.1} parent=11 // pred_region
          _
        $region64: #{_lambda_.1} parent=11 // pred_fallthru
          _
        // Predicated region
        $region65: #{_lambda_.1} parent=11 // pred_check
          %p478 = pneg %p398
        $region66: #{_lambda_.1} parent=11 // pred_check_branch
          %480 = sbr.rel (%p478) target = $region68
        $region67: #{_lambda_.1} parent=11 // pred_region
          _
        $region68: #{_lambda_.1} parent=11 // pred_fallthru
          _
      $region12: #{_lambda_.1} parent=5 // pred_fallthru
        _
      %p481 = scmp.lt.s32.totalorder %s26, 2
      // Predicated region
      $region69: #{_lambda_.1} parent=5 // pred_check
        %p482 = pneg %p481
      $region70: #{_lambda_.1} parent=5 // pred_check_branch
        %484 = sbr.rel (%p482) target = $region72
      $region71: #{_lambda_.1} parent=5 // pred_region
        // Predicated region
        $region73: #{_lambda_.1} parent=71 // pred_check
          %p485 = pneg %p46
        $region74: #{_lambda_.1} parent=71 // pred_check_branch
          %487 = sbr.rel (%p485) target = $region76
        $region75: #{_lambda_.1} parent=71 // pred_region
          %p488 = scmp.lt.s32.totalorder %s26, 1
          %s489 = scalar_select %p488, %s26, 1
          %s490 = smul.addr %s489, 8
          %s491 = scalar_lea.vmem %s0, %s490
        $region76: #{_lambda_.1} parent=71 // pred_fallthru
          _
        // Predicated region
        $region77: #{_lambda_.1} parent=71 // pred_check
          %p492 = pneg %p72
        $region78: #{_lambda_.1} parent=71 // pred_check_branch
          %494 = sbr.rel (%p492) target = $region80
        $region79: #{_lambda_.1} parent=71 // pred_region
          %p495 = scmp.lt.s32.totalorder %s26, 1
          %s496 = scalar_select %p495, %s26, 1
          %s497 = scalar_lea.vmem %s1, %s496
        $region80: #{_lambda_.1} parent=71 // pred_fallthru
          _
        // Predicated region
        $region81: #{_lambda_.1} parent=71 // pred_check
          %p498 = pneg %p98
        $region82: #{_lambda_.1} parent=71 // pred_check_branch
          %500 = sbr.rel (%p498) target = $region84
        $region83: #{_lambda_.1} parent=71 // pred_region
          %p501 = scmp.lt.s32.totalorder %s26, 1
          %s502 = scalar_select %p501, %s26, 1
          %s503 = smul.addr %s502, 8
          %s504 = scalar_lea.vmem %s2, %s503
        $region84: #{_lambda_.1} parent=71 // pred_fallthru
          _
      $region72: #{_lambda_.1} parent=5 // pred_fallthru
        _
      %p505 = scmp.le.s32.totalorder 1, %s26
      %p506 = scmp.lt.s32.totalorder %s26, 3
      %p507 = pnand %p505, %p506
      %p508 = pneg %p507
      // Predicated region
      $region85: #{_lambda_.1} parent=5 // pred_check
        _
      $region86: #{_lambda_.1} parent=5 // pred_check_branch
        %510 = sbr.rel (%p507) target = $region88
      $region87: #{_lambda_.1} parent=5 // pred_region
        %s511 = ssub.s32 %s26, 1
        %p512 = scmp.lt.s32.totalorder %s31, 1
        %s513 = scalar_select %p512, %s31, 1
        %s514 = smul.addr %s513, 8
        %s515 = scalar_lea.vmem %s0, %s514
        %p516 = pneg %p52
        %p517 = pneg %p49
        %p518 = scmp.lt.s32.totalorder %s31, 1
        %s519 = scalar_select %p518, %s31, 1
        %s520 = scalar_lea.vmem %s1, %s519
        %p521 = pneg %p78
        %p522 = pneg %p75
        %p523 = scmp.lt.s32.totalorder %s31, 1
        %s524 = scalar_select %p523, %s31, 1
        %s525 = smul.addr %s524, 8
        %s526 = scalar_lea.vmem %s2, %s525
        %p527 = pneg %p104
        %p528 = pneg %p101
        %p529 = pneg %p125
        %p530 = pneg %p122
        %p531 = pneg %p146
        %p532 = pneg %p143
        %p533 = pneg %p167
        %p534 = pneg %p164
        %p535 = pneg %p188
        %p536 = pneg %p185
        %p537 = pneg %p209
        %p538 = pneg %p206
        %p539 = pneg %p230
        %p540 = pneg %p227
        %p541 = pneg %p251
        %p542 = pneg %p248
        %p543 = pneg %p272
        %p544 = pneg %p269
        %p545 = pneg %p293
        %p546 = pneg %p290
        %p547 = pneg %p314
        %p548 = pneg %p311
        %p549 = pneg %p335
        %p550 = pneg %p332
        %p551 = pneg %p356
        %p552 = pneg %p353
        %p553 = pneg %p377
        %p554 = pneg %p374
        %p555 = pneg %p398
        %p556 = pneg %p395
        %p557 = pneg %p424
        %p558 = pneg %p421
        %s559 = sand.u32 %s411, 1
        %s560 = scalar_lea.sflag [#allocation3], %s559
        %s561 = sand.u32 %s411, 1
        %s562 = scalar_lea.vmem [#allocation2], %s561
        %p563 = scmp.lt.s32.totalorder %s31, 1
        %s564 = scalar_select %p563, %s31, 1
        %s565 = smul.addr %s564, 8
        %s566 = scalar_lea.vmem %s0, %s565
        %p567 = scmp.lt.s32.totalorder %s31, 1
        %s568 = scalar_select %p567, %s31, 1
        %s569 = scalar_lea.vmem %s1, %s568
        %p570 = scmp.lt.s32.totalorder %s31, 1
        %s571 = scalar_select %p570, %s31, 1
        %s572 = smul.addr %s571, 8
        %s573 = scalar_lea.vmem %s2, %s572
        %v574 = vld [vmem:[%s566] sm:$0xff]
        %v575 = vld [vmem:[%s569] sm:$0x1]
        %v576 = vld [vmem:[%s573] sm:$0xff]
        %v577 = vld [vmem:[%s3] sm:$0xff]
        %v578 = vld [vmem:[%s3 + $0x8] sm:$0xff]
        %v579 = vld [vmem:[%s4] sm:$0x1]
        %v581 = vlaneseq
        %v582 = vshrl.u32 %v581, 7
        %v583 = vsub.s32 0, %v582
        %v584 = vrot.slane %v579, %v583
        %vm586 = vcmask 130048
        %v588 = vsel %vm586, %v574, 0
        %590 = vmatprep.subr.mxu0 0.0
        %591 = vmatpush1.msra.mxu0 0.0
        %592 = vmatprep.subr.mxu0 0.0
        %593 = vmatpush1.msra.mxu0 0.0
        %594 = vmatprep.subr.mxu0 0.0
        %595 = vmatpush1.msra.mxu0 0.0
        %596 = vmatprep.subr.mxu0 0.0
        %597 = vmatpush1.msra.mxu0 0.0
        %598 = vmatprep.subr.mxu0 0.0
        %599 = vmatpush1.msra.mxu0 0.0
        %600 = vmatprep.subr.mxu0 0.0
        %601 = vmatpush1.msra.mxu0 0.0
        %602 = vmatprep.subr.mxu0 0.0
        %603 = vmatpush1.msra.mxu0 0.0
        %604 = vmatprep.subr.mxu0 0.0
        %605 = vmatpush1.msra.mxu0 0.0
        %606 = vmatprep.subr.mxu0 0.0
        %607 = vmatpush1.msra.mxu0 0.0
        %608 = vmatprep.subr.mxu0 0.0
        %609 = vmatpush1.msra.mxu0 0.0
        %610 = vmatprep.subr.mxu0 0.0
        %611 = vmatpush1.msra.mxu0 0.0
        %612 = vmatprep.subr.mxu0 0.0
        %613 = vmatpush1.msra.mxu0 0.0
        %614 = vmatprep.subr.mxu0 0.0
        %615 = vmatpush1.msra.mxu0 0.0
        %616 = vmatprep.subr.mxu0 0.0
        %617 = vmatpush1.msra.mxu0 0.0
        %618 = vmatprep.subr.mxu0 0.0
        %619 = vmatpush1.msra.mxu0 %v578
        %620 = vmatprep.subr.mxu0 0.0
        %621 = vmatpush1.msra.mxu0 %v577
        %622 = vmatprep.subr.mxu0 0.0
        %623 = vmatpush2.msra.mxu0 0.0
        %624 = vmatprep.subr.mxu0 0.0
        %625 = vmatpush2.msra.mxu0 0.0
        %626 = vmatprep.subr.mxu0 0.0
        %627 = vmatpush2.msra.mxu0 0.0
        %628 = vmatprep.subr.mxu0 0.0
        %629 = vmatpush2.msra.mxu0 0.0
        %630 = vmatprep.subr.mxu0 0.0
        %631 = vmatpush2.msra.mxu0 0.0
        %632 = vmatprep.subr.mxu0 0.0
        %633 = vmatpush2.msra.mxu0 0.0
        %634 = vmatprep.subr.mxu0 0.0
        %635 = vmatpush2.msra.mxu0 0.0
        %636 = vmatprep.subr.mxu0 0.0
        %637 = vmatpush2.msra.mxu0 0.0
        %638 = vmatprep.subr.mxu0 0.0
        %639 = vmatpush2.msra.mxu0 0.0
        %640 = vmatprep.subr.mxu0 0.0
        %641 = vmatpush2.msra.mxu0 0.0
        %642 = vmatprep.subr.mxu0 0.0
        %643 = vmatpush2.msra.mxu0 0.0
        %644 = vmatprep.subr.mxu0 0.0
        %645 = vmatpush2.msra.mxu0 0.0
        %646 = vmatprep.subr.mxu0 0.0
        %647 = vmatpush2.msra.mxu0 0.0
        %648 = vmatprep.subr.mxu0 0.0
        %649 = vmatpush2.msra.mxu0 0.0
        %650 = vmatprep.subr.mxu0 0.0
        %651 = vmatpush2.msra.mxu0 0.0
        %652 = vmatprep.subr.mxu0 0.0
        %653 = vmatpush2.msra.mxu0 0.0
        %654 = vmatprep.mubr.f32.mxu0 0.0
        %655 = vmatmul.mubr.f32.gmra.mxu0 %v588
        %v656 = vpop.f32.mrf.mxu0
        %v657 = vadd.f32 %v584, %v656
        %v658 = vpop.f32.mrf.mxu0
        %659 = vdwg.mxu0
        %661 = vrot.lane.b32.xlu0 %v657, 112
        %v662 = vpop.permute.xlu0 %661
        %vm663 = vcmask 64512
        %v664 = vsel %vm663, %v657, 0
        %v666 = vsel %vm663, %v662, 0
        %668 = vmatprep.subr.mxu0 0.0
        %669 = vmatpush1.xpose.msra.mxu0 0.0
        %670 = vmatprep.subr.mxu0 0.0
        %671 = vmatpush1.xpose.msra.mxu0 0.0
        %672 = vmatprep.subr.mxu0 0.0
        %673 = vmatpush1.xpose.msra.mxu0 0.0
        %674 = vmatprep.subr.mxu0 0.0
        %675 = vmatpush1.xpose.msra.mxu0 0.0
        %676 = vmatprep.subr.mxu0 0.0
        %677 = vmatpush1.xpose.msra.mxu0 0.0
        %678 = vmatprep.subr.mxu0 0.0
        %679 = vmatpush1.xpose.msra.mxu0 0.0
        %680 = vmatprep.subr.mxu0 0.0
        %681 = vmatpush1.xpose.msra.mxu0 0.0
        %682 = vmatprep.subr.mxu0 0.0
        %683 = vmatpush1.xpose.msra.mxu0 0.0
        %684 = vmatprep.subr.mxu0 0.0
        %685 = vmatpush1.xpose.msra.mxu0 0.0
        %686 = vmatprep.subr.mxu0 0.0
        %687 = vmatpush1.xpose.msra.mxu0 0.0
        %688 = vmatprep.subr.mxu0 0.0
        %689 = vmatpush1.xpose.msra.mxu0 0.0
        %690 = vmatprep.subr.mxu0 0.0
        %691 = vmatpush1.xpose.msra.mxu0 0.0
        %692 = vmatprep.subr.mxu0 0.0
        %693 = vmatpush1.xpose.msra.mxu0 0.0
        %694 = vmatprep.subr.mxu0 0.0
        %695 = vmatpush1.xpose.msra.mxu0 0.0
        %696 = vmatprep.subr.mxu0 0.0
        %697 = vmatpush1.xpose.msra.mxu0 0.0
        %698 = vmatprep.subr.mxu0 0.0
        %699 = vmatpush1.xpose.msra.mxu0 %v666
        %700 = vmatprep.subr.mxu0 0.0
        %701 = vmatpush2.xpose.msra.mxu0 0.0
        %702 = vmatprep.subr.mxu0 0.0
        %703 = vmatpush2.xpose.msra.mxu0 0.0
        %704 = vmatprep.subr.mxu0 0.0
        %705 = vmatpush2.xpose.msra.mxu0 0.0
        %706 = vmatprep.subr.mxu0 0.0
        %707 = vmatpush2.xpose.msra.mxu0 0.0
        %708 = vmatprep.subr.mxu0 0.0
        %709 = vmatpush2.xpose.msra.mxu0 0.0
        %710 = vmatprep.subr.mxu0 0.0
        %711 = vmatpush2.xpose.msra.mxu0 0.0
        %712 = vmatprep.subr.mxu0 0.0
        %713 = vmatpush2.xpose.msra.mxu0 0.0
        %714 = vmatprep.subr.mxu0 0.0
        %715 = vmatpush2.xpose.msra.mxu0 0.0
        %716 = vmatprep.subr.mxu0 0.0
        %717 = vmatpush2.xpose.msra.mxu0 0.0
        %718 = vmatprep.subr.mxu0 0.0
        %719 = vmatpush2.xpose.msra.mxu0 0.0
        %720 = vmatprep.subr.mxu0 0.0
        %721 = vmatpush2.xpose.msra.mxu0 0.0
        %722 = vmatprep.subr.mxu0 0.0
        %723 = vmatpush2.xpose.msra.mxu0 0.0
        %724 = vmatprep.subr.mxu0 0.0
        %725 = vmatpush2.xpose.msra.mxu0 0.0
        %726 = vmatprep.subr.mxu0 0.0
        %727 = vmatpush2.xpose.msra.mxu0 0.0
        %728 = vmatprep.subr.mxu0 0.0
        %729 = vmatpush2.xpose.msra.mxu0 0.0
        %730 = vmatprep.subr.mxu0 0.0
        %731 = vmatpush2.xpose.msra.mxu0 0.0
        %732 = vmatprep.mubr.f32.mxu0 0.0
        %733 = vmatmul.mubr.f32.gmra.mxu0 %v664
        %v734 = vpop.f32.mrf.mxu0
        %v735 = vadd.f32 0.0, %v734
        %v736 = vpop.f32.mrf.mxu0
        %737 = vdwg.mxu0
        %v738 = vmul.f32 %v735, 0.35355338
        %v740 = vlaneseq
        %v741 = vshrl.u32 %v740, 7
        %v742 = vsub.s32 0, %v741
        %v743 = vrot.slane %v575, %v742
        %v745 = vadd.f32 %v738, %v743
        %v746 = vsel %vm663, %v745, -inf
        %747 = vmax.xlane.f32.xlu0 %v746
        %v748 = vpop.xlane.xlu0 %747
        %v749 = vsub.f32 %v745, %v748
        %v750 = vmul.f32 %v749, 1.442695
        %v751 = vpow.pop %v750
        %v752 = vsel %vm663, %v751, 0.0
        %753 = vadd.xlane.f32.xlu0 %v752
        %v754 = vpop.xlane.xlu0 %753
        %v755 = vrcp.pop %v754
        %v756 = vmul.f32 %v751, %v755
        %757 = vrot.lane.b32.xlu0 %v657, 96
        %v758 = vpop.permute.xlu0 %757
        %v761 = vsel %vm663, %v756, 0
        %763 = vmatprep.subr.mxu0 0.0
        %764 = vmatpush1.msra.mxu0 0.0
        %765 = vmatprep.subr.mxu0 0.0
        %766 = vmatpush1.msra.mxu0 0.0
        %767 = vmatprep.subr.mxu0 0.0
        %768 = vmatpush1.msra.mxu0 0.0
        %769 = vmatprep.subr.mxu0 0.0
        %770 = vmatpush1.msra.mxu0 0.0
        %771 = vmatprep.subr.mxu0 0.0
        %772 = vmatpush1.msra.mxu0 0.0
        %773 = vmatprep.subr.mxu0 0.0
        %774 = vmatpush1.msra.mxu0 0.0
        %775 = vmatprep.subr.mxu0 0.0
        %776 = vmatpush1.msra.mxu0 0.0
        %777 = vmatprep.subr.mxu0 0.0
        %778 = vmatpush1.msra.mxu0 0.0
        %779 = vmatprep.subr.mxu0 0.0
        %780 = vmatpush1.msra.mxu0 0.0
        %781 = vmatprep.subr.mxu0 0.0
        %782 = vmatpush1.msra.mxu0 0.0
        %783 = vmatprep.subr.mxu0 0.0
        %784 = vmatpush1.msra.mxu0 0.0
        %785 = vmatprep.subr.mxu0 0.0
        %786 = vmatpush1.msra.mxu0 0.0
        %787 = vmatprep.subr.mxu0 0.0
        %788 = vmatpush1.msra.mxu0 0.0
        %789 = vmatprep.subr.mxu0 0.0
        %790 = vmatpush1.msra.mxu0 0.0
        %791 = vmatprep.subr.mxu0 0.0
        %792 = vmatpush1.msra.mxu0 0.0
        %793 = vmatprep.subr.mxu0 0.0
        %794 = vmatpush1.msra.mxu0 %v758
        %795 = vmatprep.subr.mxu0 0.0
        %796 = vmatpush2.msra.mxu0 0.0
        %797 = vmatprep.subr.mxu0 0.0
        %798 = vmatpush2.msra.mxu0 0.0
        %799 = vmatprep.subr.mxu0 0.0
        %800 = vmatpush2.msra.mxu0 0.0
        %801 = vmatprep.subr.mxu0 0.0
        %802 = vmatpush2.msra.mxu0 0.0
        %803 = vmatprep.subr.mxu0 0.0
        %804 = vmatpush2.msra.mxu0 0.0
        %805 = vmatprep.subr.mxu0 0.0
        %806 = vmatpush2.msra.mxu0 0.0
        %807 = vmatprep.subr.mxu0 0.0
        %808 = vmatpush2.msra.mxu0 0.0
        %809 = vmatprep.subr.mxu0 0.0
        %810 = vmatpush2.msra.mxu0 0.0
        %811 = vmatprep.subr.mxu0 0.0
        %812 = vmatpush2.msra.mxu0 0.0
        %813 = vmatprep.subr.mxu0 0.0
        %814 = vmatpush2.msra.mxu0 0.0
        %815 = vmatprep.subr.mxu0 0.0
        %816 = vmatpush2.msra.mxu0 0.0
        %817 = vmatprep.subr.mxu0 0.0
        %818 = vmatpush2.msra.mxu0 0.0
        %819 = vmatprep.subr.mxu0 0.0
        %820 = vmatpush2.msra.mxu0 0.0
        %821 = vmatprep.subr.mxu0 0.0
        %822 = vmatpush2.msra.mxu0 0.0
        %823 = vmatprep.subr.mxu0 0.0
        %824 = vmatpush2.msra.mxu0 0.0
        %825 = vmatprep.subr.mxu0 0.0
        %826 = vmatpush2.msra.mxu0 0.0
        %827 = vmatprep.mubr.f32.mxu0 0.0
        %828 = vmatmul.mubr.f32.gmra.mxu0 %v761
        %v829 = vpop.f32.mrf.mxu0
        %v830 = vadd.f32 0.0, %v829
        %v831 = vpop.f32.mrf.mxu0
        %832 = vdwg.mxu0
        %833 = vrot.lane.b32.xlu0 %v657, 120
        %v834 = vpop.permute.xlu0 %833
        %835 = vrot.lane.b32.xlu0 %v657, 104
        %v836 = vpop.permute.xlu0 %835
        %v837 = vsel %vm663, %v834, 0
        %v839 = vsel %vm663, %v836, 0
        %841 = vmatprep.subr.mxu0 0.0
        %842 = vmatpush1.xpose.msra.mxu0 0.0
        %843 = vmatprep.subr.mxu0 0.0
        %844 = vmatpush1.xpose.msra.mxu0 0.0
        %845 = vmatprep.subr.mxu0 0.0
        %846 = vmatpush1.xpose.msra.mxu0 0.0
        %847 = vmatprep.subr.mxu0 0.0
        %848 = vmatpush1.xpose.msra.mxu0 0.0
        %849 = vmatprep.subr.mxu0 0.0
        %850 = vmatpush1.xpose.msra.mxu0 0.0
        %851 = vmatprep.subr.mxu0 0.0
        %852 = vmatpush1.xpose.msra.mxu0 0.0
        %853 = vmatprep.subr.mxu0 0.0
        %854 = vmatpush1.xpose.msra.mxu0 0.0
        %855 = vmatprep.subr.mxu0 0.0
        %856 = vmatpush1.xpose.msra.mxu0 0.0
        %857 = vmatprep.subr.mxu0 0.0
        %858 = vmatpush1.xpose.msra.mxu0 0.0
        %859 = vmatprep.subr.mxu0 0.0
        %860 = vmatpush1.xpose.msra.mxu0 0.0
        %861 = vmatprep.subr.mxu0 0.0
        %862 = vmatpush1.xpose.msra.mxu0 0.0
        %863 = vmatprep.subr.mxu0 0.0
        %864 = vmatpush1.xpose.msra.mxu0 0.0
        %865 = vmatprep.subr.mxu0 0.0
        %866 = vmatpush1.xpose.msra.mxu0 0.0
        %867 = vmatprep.subr.mxu0 0.0
        %868 = vmatpush1.xpose.msra.mxu0 0.0
        %869 = vmatprep.subr.mxu0 0.0
        %870 = vmatpush1.xpose.msra.mxu0 0.0
        %871 = vmatprep.subr.mxu0 0.0
        %872 = vmatpush1.xpose.msra.mxu0 %v839
        %873 = vmatprep.subr.mxu0 0.0
        %874 = vmatpush2.xpose.msra.mxu0 0.0
        %875 = vmatprep.subr.mxu0 0.0
        %876 = vmatpush2.xpose.msra.mxu0 0.0
        %877 = vmatprep.subr.mxu0 0.0
        %878 = vmatpush2.xpose.msra.mxu0 0.0
        %879 = vmatprep.subr.mxu0 0.0
        %880 = vmatpush2.xpose.msra.mxu0 0.0
        %881 = vmatprep.subr.mxu0 0.0
        %882 = vmatpush2.xpose.msra.mxu0 0.0
        %883 = vmatprep.subr.mxu0 0.0
        %884 = vmatpush2.xpose.msra.mxu0 0.0
        %885 = vmatprep.subr.mxu0 0.0
        %886 = vmatpush2.xpose.msra.mxu0 0.0
        %887 = vmatprep.subr.mxu0 0.0
        %888 = vmatpush2.xpose.msra.mxu0 0.0
        %889 = vmatprep.subr.mxu0 0.0
        %890 = vmatpush2.xpose.msra.mxu0 0.0
        %891 = vmatprep.subr.mxu0 0.0
        %892 = vmatpush2.xpose.msra.mxu0 0.0
        %893 = vmatprep.subr.mxu0 0.0
        %894 = vmatpush2.xpose.msra.mxu0 0.0
        %895 = vmatprep.subr.mxu0 0.0
        %896 = vmatpush2.xpose.msra.mxu0 0.0
        %897 = vmatprep.subr.mxu0 0.0
        %898 = vmatpush2.xpose.msra.mxu0 0.0
        %899 = vmatprep.subr.mxu0 0.0
        %900 = vmatpush2.xpose.msra.mxu0 0.0
        %901 = vmatprep.subr.mxu0 0.0
        %902 = vmatpush2.xpose.msra.mxu0 0.0
        %903 = vmatprep.subr.mxu0 0.0
        %904 = vmatpush2.xpose.msra.mxu0 0.0
        %905 = vmatprep.mubr.f32.mxu0 0.0
        %906 = vmatmul.mubr.f32.gmra.mxu0 %v837
        %v907 = vpop.f32.mrf.mxu0
        %v908 = vadd.f32 0.0, %v907
        %v909 = vpop.f32.mrf.mxu0
        %910 = vdwg.mxu0
        %v911 = vmul.f32 %v908, 0.35355338
        %v912 = vadd.f32 %v911, %v743
        %v913 = vsel %vm663, %v912, -inf
        %914 = vmax.xlane.f32.xlu0 %v913
        %v915 = vpop.xlane.xlu0 %914
        %v916 = vsub.f32 %v912, %v915
        %v917 = vmul.f32 %v916, 1.442695
        %v918 = vpow.pop %v917
        %v919 = vsel %vm663, %v918, 0.0
        %920 = vadd.xlane.f32.xlu0 %v919
        %v921 = vpop.xlane.xlu0 %920
        %v922 = vrcp.pop %v921
        %v923 = vmul.f32 %v918, %v922
        %924 = vrot.lane.b32.xlu0 %v657, 88
        %v925 = vpop.permute.xlu0 %924
        %v928 = vsel %vm663, %v923, 0
        %930 = vmatprep.subr.mxu0 0.0
        %931 = vmatpush1.msra.mxu0 0.0
        %932 = vmatprep.subr.mxu0 0.0
        %933 = vmatpush1.msra.mxu0 0.0
        %934 = vmatprep.subr.mxu0 0.0
        %935 = vmatpush1.msra.mxu0 0.0
        %936 = vmatprep.subr.mxu0 0.0
        %937 = vmatpush1.msra.mxu0 0.0
        %938 = vmatprep.subr.mxu0 0.0
        %939 = vmatpush1.msra.mxu0 0.0
        %940 = vmatprep.subr.mxu0 0.0
        %941 = vmatpush1.msra.mxu0 0.0
        %942 = vmatprep.subr.mxu0 0.0
        %943 = vmatpush1.msra.mxu0 0.0
        %944 = vmatprep.subr.mxu0 0.0
        %945 = vmatpush1.msra.mxu0 0.0
        %946 = vmatprep.subr.mxu0 0.0
        %947 = vmatpush1.msra.mxu0 0.0
        %948 = vmatprep.subr.mxu0 0.0
        %949 = vmatpush1.msra.mxu0 0.0
        %950 = vmatprep.subr.mxu0 0.0
        %951 = vmatpush1.msra.mxu0 0.0
        %952 = vmatprep.subr.mxu0 0.0
        %953 = vmatpush1.msra.mxu0 0.0
        %954 = vmatprep.subr.mxu0 0.0
        %955 = vmatpush1.msra.mxu0 0.0
        %956 = vmatprep.subr.mxu0 0.0
        %957 = vmatpush1.msra.mxu0 0.0
        %958 = vmatprep.subr.mxu0 0.0
        %959 = vmatpush1.msra.mxu0 0.0
        %960 = vmatprep.subr.mxu0 0.0
        %961 = vmatpush1.msra.mxu0 %v925
        %962 = vmatprep.subr.mxu0 0.0
        %963 = vmatpush2.msra.mxu0 0.0
        %964 = vmatprep.subr.mxu0 0.0
        %965 = vmatpush2.msra.mxu0 0.0
        %966 = vmatprep.subr.mxu0 0.0
        %967 = vmatpush2.msra.mxu0 0.0
        %968 = vmatprep.subr.mxu0 0.0
        %969 = vmatpush2.msra.mxu0 0.0
        %970 = vmatprep.subr.mxu0 0.0
        %971 = vmatpush2.msra.mxu0 0.0
        %972 = vmatprep.subr.mxu0 0.0
        %973 = vmatpush2.msra.mxu0 0.0
        %974 = vmatprep.subr.mxu0 0.0
        %975 = vmatpush2.msra.mxu0 0.0
        %976 = vmatprep.subr.mxu0 0.0
        %977 = vmatpush2.msra.mxu0 0.0
        %978 = vmatprep.subr.mxu0 0.0
        %979 = vmatpush2.msra.mxu0 0.0
        %980 = vmatprep.subr.mxu0 0.0
        %981 = vmatpush2.msra.mxu0 0.0
        %982 = vmatprep.subr.mxu0 0.0
        %983 = vmatpush2.msra.mxu0 0.0
        %984 = vmatprep.subr.mxu0 0.0
        %985 = vmatpush2.msra.mxu0 0.0
        %986 = vmatprep.subr.mxu0 0.0
        %987 = vmatpush2.msra.mxu0 0.0
        %988 = vmatprep.subr.mxu0 0.0
        %989 = vmatpush2.msra.mxu0 0.0
        %990 = vmatprep.subr.mxu0 0.0
        %991 = vmatpush2.msra.mxu0 0.0
        %992 = vmatprep.subr.mxu0 0.0
        %993 = vmatpush2.msra.mxu0 0.0
        %994 = vmatprep.mubr.f32.mxu0 0.0
        %995 = vmatmul.mubr.f32.gmra.mxu0 %v928
        %v996 = vpop.f32.mrf.mxu0
        %v997 = vadd.f32 0.0, %v996
        %v998 = vpop.f32.mrf.mxu0
        %999 = vdwg.mxu0
        %1001 = vrot.lane.b32.xlu0 %v997, 8
        %v1002 = vpop.permute.xlu0 %1001
        %v1004 = vsel %vm663, %v830, %v1002
        %v1005 = vld [vmem:[%s5] sm:$0xff]
        %v1006 = vld [vmem:[%s5 + $0x8] sm:$0xff]
        %v1007 = vld [vmem:[%s6] sm:$0x1]
        %v1009 = vlaneseq
        %v1010 = vshrl.u32 %v1009, 7
        %v1011 = vsub.s32 0, %v1010
        %v1012 = vrot.slane %v1007, %v1011
        %v1015 = vsel %vm586, %v1004, 0
        %1017 = vmatprep.subr.mxu0 0.0
        %1018 = vmatpush1.msra.mxu0 0.0
        %1019 = vmatprep.subr.mxu0 0.0
        %1020 = vmatpush1.msra.mxu0 0.0
        %1021 = vmatprep.subr.mxu0 0.0
        %1022 = vmatpush1.msra.mxu0 0.0
        %1023 = vmatprep.subr.mxu0 0.0
        %1024 = vmatpush1.msra.mxu0 0.0
        %1025 = vmatprep.subr.mxu0 0.0
        %1026 = vmatpush1.msra.mxu0 0.0
        %1027 = vmatprep.subr.mxu0 0.0
        %1028 = vmatpush1.msra.mxu0 0.0
        %1029 = vmatprep.subr.mxu0 0.0
        %1030 = vmatpush1.msra.mxu0 0.0
        %1031 = vmatprep.subr.mxu0 0.0
        %1032 = vmatpush1.msra.mxu0 0.0
        %1033 = vmatprep.subr.mxu0 0.0
        %1034 = vmatpush1.msra.mxu0 0.0
        %1035 = vmatprep.subr.mxu0 0.0
        %1036 = vmatpush1.msra.mxu0 0.0
        %1037 = vmatprep.subr.mxu0 0.0
        %1038 = vmatpush1.msra.mxu0 0.0
        %1039 = vmatprep.subr.mxu0 0.0
        %1040 = vmatpush1.msra.mxu0 0.0
        %1041 = vmatprep.subr.mxu0 0.0
        %1042 = vmatpush1.msra.mxu0 0.0
        %1043 = vmatprep.subr.mxu0 0.0
        %1044 = vmatpush1.msra.mxu0 0.0
        %1045 = vmatprep.subr.mxu0 0.0
        %1046 = vmatpush1.msra.mxu0 %v1006
        %1047 = vmatprep.subr.mxu0 0.0
        %1048 = vmatpush1.msra.mxu0 %v1005
        %1049 = vmatprep.subr.mxu0 0.0
        %1050 = vmatpush2.msra.mxu0 0.0
        %1051 = vmatprep.subr.mxu0 0.0
        %1052 = vmatpush2.msra.mxu0 0.0
        %1053 = vmatprep.subr.mxu0 0.0
        %1054 = vmatpush2.msra.mxu0 0.0
        %1055 = vmatprep.subr.mxu0 0.0
        %1056 = vmatpush2.msra.mxu0 0.0
        %1057 = vmatprep.subr.mxu0 0.0
        %1058 = vmatpush2.msra.mxu0 0.0
        %1059 = vmatprep.subr.mxu0 0.0
        %1060 = vmatpush2.msra.mxu0 0.0
        %1061 = vmatprep.subr.mxu0 0.0
        %1062 = vmatpush2.msra.mxu0 0.0
        %1063 = vmatprep.subr.mxu0 0.0
        %1064 = vmatpush2.msra.mxu0 0.0
        %1065 = vmatprep.subr.mxu0 0.0
        %1066 = vmatpush2.msra.mxu0 0.0
        %1067 = vmatprep.subr.mxu0 0.0
        %1068 = vmatpush2.msra.mxu0 0.0
        %1069 = vmatprep.subr.mxu0 0.0
        %1070 = vmatpush2.msra.mxu0 0.0
        %1071 = vmatprep.subr.mxu0 0.0
        %1072 = vmatpush2.msra.mxu0 0.0
        %1073 = vmatprep.subr.mxu0 0.0
        %1074 = vmatpush2.msra.mxu0 0.0
        %1075 = vmatprep.subr.mxu0 0.0
        %1076 = vmatpush2.msra.mxu0 0.0
        %1077 = vmatprep.subr.mxu0 0.0
        %1078 = vmatpush2.msra.mxu0 0.0
        %1079 = vmatprep.subr.mxu0 0.0
        %1080 = vmatpush2.msra.mxu0 0.0
        %1081 = vmatprep.mubr.f32.mxu0 0.0
        %1082 = vmatmul.mubr.f32.gmra.mxu0 %v1015
        %v1083 = vpop.f32.mrf.mxu0
        %v1084 = vadd.f32 %v1012, %v1083
        %v1085 = vpop.f32.mrf.mxu0
        %1086 = vdwg.mxu0
        %v1087 = vadd.f32 %v574, %v1084
        %v1088 = vld [vmem:[%s7] sm:$0x1]
        %v1089 = vld [vmem:[%s8] sm:$0x1]
        %v1090 = vsel %vm586, %v1087, 0.0
        %1091 = vadd.xlane.f32.xlu0 %v1090
        %v1092 = vpop.xlane.xlu0 %1091
        %v1093 = vrcp.pop 16.0
        %v1094 = vmul.f32 %v1092, %v1093
        %v1095 = vsub.f32 %v1087, %v1094
        %v1096 = vmul.f32 %v1095, %v1095
        %v1097 = vsel %vm586, %v1096, 0.0
        %1098 = vadd.xlane.f32.xlu0 %v1097
        %v1099 = vpop.xlane.xlu0 %1098
        %v1100 = vmul.f32 %v1099, %v1093
        %v1101 = vadd.f32 %v1100, 1e-05
        %v1102 = vrsqrt.pop %v1101
        %v1103 = vmul.f32 %v1095, %v1102
        %v1105 = vlaneseq
        %v1106 = vshrl.u32 %v1105, 7
        %v1107 = vsub.s32 0, %v1106
        %v1108 = vrot.slane %v1088, %v1107
        %v1110 = vmul.f32 %v1103, %v1108
        %v1112 = vlaneseq
        %v1113 = vshrl.u32 %v1112, 7
        %v1114 = vsub.s32 0, %v1113
        %v1115 = vrot.slane %v1089, %v1114
        %v1117 = vadd.f32 %v1110, %v1115
        %v1118 = vld [vmem:[%s9] sm:$0xff]
        %v1119 = vld [vmem:[%s9 + $0x8] sm:$0xff]
        %v1120 = vld [vmem:[%s10] sm:$0x1]
        %v1122 = vlaneseq
        %v1123 = vshrl.u32 %v1122, 7
        %v1124 = vsub.s32 0, %v1123
        %v1125 = vrot.slane %v1120, %v1124
        %v1128 = vsel %vm586, %v1117, 0
        %1130 = vmatprep.subr.mxu0 0.0
        %1131 = vmatpush1.msra.mxu0 0.0
        %1132 = vmatprep.subr.mxu0 0.0
        %1133 = vmatpush1.msra.mxu0 0.0
        %1134 = vmatprep.subr.mxu0 0.0
        %1135 = vmatpush1.msra.mxu0 0.0
        %1136 = vmatprep.subr.mxu0 0.0
        %1137 = vmatpush1.msra.mxu0 0.0
        %1138 = vmatprep.subr.mxu0 0.0
        %1139 = vmatpush1.msra.mxu0 0.0
        %1140 = vmatprep.subr.mxu0 0.0
        %1141 = vmatpush1.msra.mxu0 0.0
        %1142 = vmatprep.subr.mxu0 0.0
        %1143 = vmatpush1.msra.mxu0 0.0
        %1144 = vmatprep.subr.mxu0 0.0
        %1145 = vmatpush1.msra.mxu0 0.0
        %1146 = vmatprep.subr.mxu0 0.0
        %1147 = vmatpush1.msra.mxu0 0.0
        %1148 = vmatprep.subr.mxu0 0.0
        %1149 = vmatpush1.msra.mxu0 0.0
        %1150 = vmatprep.subr.mxu0 0.0
        %1151 = vmatpush1.msra.mxu0 0.0
        %1152 = vmatprep.subr.mxu0 0.0
        %1153 = vmatpush1.msra.mxu0 0.0
        %1154 = vmatprep.subr.mxu0 0.0
        %1155 = vmatpush1.msra.mxu0 0.0
        %1156 = vmatprep.subr.mxu0 0.0
        %1157 = vmatpush1.msra.mxu0 0.0
        %1158 = vmatprep.subr.mxu0 0.0
        %1159 = vmatpush1.msra.mxu0 %v1119
        %1160 = vmatprep.subr.mxu0 0.0
        %1161 = vmatpush1.msra.mxu0 %v1118
        %1162 = vmatprep.subr.mxu0 0.0
        %1163 = vmatpush2.msra.mxu0 0.0
        %1164 = vmatprep.subr.mxu0 0.0
        %1165 = vmatpush2.msra.mxu0 0.0
        %1166 = vmatprep.subr.mxu0 0.0
        %1167 = vmatpush2.msra.mxu0 0.0
        %1168 = vmatprep.subr.mxu0 0.0
        %1169 = vmatpush2.msra.mxu0 0.0
        %1170 = vmatprep.subr.mxu0 0.0
        %1171 = vmatpush2.msra.mxu0 0.0
        %1172 = vmatprep.subr.mxu0 0.0
        %1173 = vmatpush2.msra.mxu0 0.0
        %1174 = vmatprep.subr.mxu0 0.0
        %1175 = vmatpush2.msra.mxu0 0.0
        %1176 = vmatprep.subr.mxu0 0.0
        %1177 = vmatpush2.msra.mxu0 0.0
        %1178 = vmatprep.subr.mxu0 0.0
        %1179 = vmatpush2.msra.mxu0 0.0
        %1180 = vmatprep.subr.mxu0 0.0
        %1181 = vmatpush2.msra.mxu0 0.0
        %1182 = vmatprep.subr.mxu0 0.0
        %1183 = vmatpush2.msra.mxu0 0.0
        %1184 = vmatprep.subr.mxu0 0.0
        %1185 = vmatpush2.msra.mxu0 0.0
        %1186 = vmatprep.subr.mxu0 0.0
        %1187 = vmatpush2.msra.mxu0 0.0
        %1188 = vmatprep.subr.mxu0 0.0
        %1189 = vmatpush2.msra.mxu0 0.0
        %1190 = vmatprep.subr.mxu0 0.0
        %1191 = vmatpush2.msra.mxu0 0.0
        %1192 = vmatprep.subr.mxu0 0.0
        %1193 = vmatpush2.msra.mxu0 0.0
        %1194 = vmatprep.mubr.f32.mxu0 0.0
        %1195 = vmatmul.mubr.f32.gmra.mxu0 %v1128
        %v1196 = vpop.f32.mrf.mxu0
        %v1197 = vadd.f32 %v1125, %v1196
        %v1198 = vpop.f32.mrf.mxu0
        %1199 = vdwg.mxu0
        %v1200 = vmax.f32 %v1197, 0.0
        %v1201 = vld [vmem:[%s11] sm:$0xff]
        %v1202 = vld [vmem:[%s11 + $0x8] sm:$0xff]
        %v1203 = vld [vmem:[%s11 + $0x10] sm:$0xff]
        %v1204 = vld [vmem:[%s11 + $0x18] sm:$0xff]
        %v1205 = vld [vmem:[%s12] sm:$0x1]
        %v1207 = vlaneseq
        %v1208 = vshrl.u32 %v1207, 7
        %v1209 = vsub.s32 0, %v1208
        %v1210 = vrot.slane %v1205, %v1209
        %vm1212 = vcmask 261120
        %v1214 = vsel %vm1212, %v1200, 0
        %1216 = vmatprep.subr.mxu0 0.0
        %1217 = vmatpush1.msra.mxu0 0.0
        %1218 = vmatprep.subr.mxu0 0.0
        %1219 = vmatpush1.msra.mxu0 0.0
        %1220 = vmatprep.subr.mxu0 0.0
        %1221 = vmatpush1.msra.mxu0 0.0
        %1222 = vmatprep.subr.mxu0 0.0
        %1223 = vmatpush1.msra.mxu0 0.0
        %1224 = vmatprep.subr.mxu0 0.0
        %1225 = vmatpush1.msra.mxu0 0.0
        %1226 = vmatprep.subr.mxu0 0.0
        %1227 = vmatpush1.msra.mxu0 0.0
        %1228 = vmatprep.subr.mxu0 0.0
        %1229 = vmatpush1.msra.mxu0 0.0
        %1230 = vmatprep.subr.mxu0 0.0
        %1231 = vmatpush1.msra.mxu0 0.0
        %1232 = vmatprep.subr.mxu0 0.0
        %1233 = vmatpush1.msra.mxu0 0.0
        %1234 = vmatprep.subr.mxu0 0.0
        %1235 = vmatpush1.msra.mxu0 0.0
        %1236 = vmatprep.subr.mxu0 0.0
        %1237 = vmatpush1.msra.mxu0 0.0
        %1238 = vmatprep.subr.mxu0 0.0
        %1239 = vmatpush1.msra.mxu0 0.0
        %1240 = vmatprep.subr.mxu0 0.0
        %1241 = vmatpush1.msra.mxu0 %v1204
        %1242 = vmatprep.subr.mxu0 0.0
        %1243 = vmatpush1.msra.mxu0 %v1203
        %1244 = vmatprep.subr.mxu0 0.0
        %1245 = vmatpush1.msra.mxu0 %v1202
        %1246 = vmatprep.subr.mxu0 0.0
        %1247 = vmatpush1.msra.mxu0 %v1201
        %1248 = vmatprep.subr.mxu0 0.0
        %1249 = vmatpush2.msra.mxu0 0.0
        %1250 = vmatprep.subr.mxu0 0.0
        %1251 = vmatpush2.msra.mxu0 0.0
        %1252 = vmatprep.subr.mxu0 0.0
        %1253 = vmatpush2.msra.mxu0 0.0
        %1254 = vmatprep.subr.mxu0 0.0
        %1255 = vmatpush2.msra.mxu0 0.0
        %1256 = vmatprep.subr.mxu0 0.0
        %1257 = vmatpush2.msra.mxu0 0.0
        %1258 = vmatprep.subr.mxu0 0.0
        %1259 = vmatpush2.msra.mxu0 0.0
        %1260 = vmatprep.subr.mxu0 0.0
        %1261 = vmatpush2.msra.mxu0 0.0
        %1262 = vmatprep.subr.mxu0 0.0
        %1263 = vmatpush2.msra.mxu0 0.0
        %1264 = vmatprep.subr.mxu0 0.0
        %1265 = vmatpush2.msra.mxu0 0.0
        %1266 = vmatprep.subr.mxu0 0.0
        %1267 = vmatpush2.msra.mxu0 0.0
        %1268 = vmatprep.subr.mxu0 0.0
        %1269 = vmatpush2.msra.mxu0 0.0
        %1270 = vmatprep.subr.mxu0 0.0
        %1271 = vmatpush2.msra.mxu0 0.0
        %1272 = vmatprep.subr.mxu0 0.0
        %1273 = vmatpush2.msra.mxu0 0.0
        %1274 = vmatprep.subr.mxu0 0.0
        %1275 = vmatpush2.msra.mxu0 0.0
        %1276 = vmatprep.subr.mxu0 0.0
        %1277 = vmatpush2.msra.mxu0 0.0
        %1278 = vmatprep.subr.mxu0 0.0
        %1279 = vmatpush2.msra.mxu0 0.0
        %1280 = vmatprep.mubr.f32.mxu0 0.0
        %1281 = vmatmul.mubr.f32.gmra.mxu0 %v1214
        %v1282 = vpop.f32.mrf.mxu0
        %v1283 = vadd.f32 %v1210, %v1282
        %v1284 = vpop.f32.mrf.mxu0
        %1285 = vdwg.mxu0
        %v1286 = vadd.f32 %v1117, %v1283
        %v1287 = vld [vmem:[%s13] sm:$0x1]
        %v1288 = vld [vmem:[%s14] sm:$0x1]
        %v1289 = vsel %vm586, %v1286, 0.0
        %1290 = vadd.xlane.f32.xlu0 %v1289
        %v1291 = vpop.xlane.xlu0 %1290
        %v1292 = vmul.f32 %v1291, %v1093
        %v1293 = vsub.f32 %v1286, %v1292
        %v1294 = vmul.f32 %v1293, %v1293
        %v1295 = vsel %vm586, %v1294, 0.0
        %1296 = vadd.xlane.f32.xlu0 %v1295
        %v1297 = vpop.xlane.xlu0 %1296
        %v1298 = vmul.f32 %v1297, %v1093
        %v1299 = vadd.f32 %v1298, 1e-05
        %v1300 = vrsqrt.pop %v1299
        %v1301 = vmul.f32 %v1293, %v1300
        %v1303 = vlaneseq
        %v1304 = vshrl.u32 %v1303, 7
        %v1305 = vsub.s32 0, %v1304
        %v1306 = vrot.slane %v1287, %v1305
        %v1308 = vmul.f32 %v1301, %v1306
        %v1310 = vlaneseq
        %v1311 = vshrl.u32 %v1310, 7
        %v1312 = vsub.s32 0, %v1311
        %v1313 = vrot.slane %v1288, %v1312
        %v1315 = vadd.f32 %v1308, %v1313
        %s1316 = scalar_lea.vmem %s3, 16
        %v1317 = vld [vmem:[%s1316] sm:$0xff]
        %v1318 = vld [vmem:[%s1316 + $0x8] sm:$0xff]
        %s1319 = scalar_lea.vmem %s4, 1
        %v1320 = vld [vmem:[%s1319] sm:$0x1]
        %v1322 = vlaneseq
        %v1323 = vshrl.u32 %v1322, 7
        %v1324 = vsub.s32 0, %v1323
        %v1325 = vrot.slane %v1320, %v1324
        %v1328 = vsel %vm586, %v1315, 0
        %1330 = vmatprep.subr.mxu0 0.0
        %1331 = vmatpush1.msra.mxu0 0.0
        %1332 = vmatprep.subr.mxu0 0.0
        %1333 = vmatpush1.msra.mxu0 0.0
        %1334 = vmatprep.subr.mxu0 0.0
        %1335 = vmatpush1.msra.mxu0 0.0
        %1336 = vmatprep.subr.mxu0 0.0
        %1337 = vmatpush1.msra.mxu0 0.0
        %1338 = vmatprep.subr.mxu0 0.0
        %1339 = vmatpush1.msra.mxu0 0.0
        %1340 = vmatprep.subr.mxu0 0.0
        %1341 = vmatpush1.msra.mxu0 0.0
        %1342 = vmatprep.subr.mxu0 0.0
        %1343 = vmatpush1.msra.mxu0 0.0
        %1344 = vmatprep.subr.mxu0 0.0
        %1345 = vmatpush1.msra.mxu0 0.0
        %1346 = vmatprep.subr.mxu0 0.0
        %1347 = vmatpush1.msra.mxu0 0.0
        %1348 = vmatprep.subr.mxu0 0.0
        %1349 = vmatpush1.msra.mxu0 0.0
        %1350 = vmatprep.subr.mxu0 0.0
        %1351 = vmatpush1.msra.mxu0 0.0
        %1352 = vmatprep.subr.mxu0 0.0
        %1353 = vmatpush1.msra.mxu0 0.0
        %1354 = vmatprep.subr.mxu0 0.0
        %1355 = vmatpush1.msra.mxu0 0.0
        %1356 = vmatprep.subr.mxu0 0.0
        %1357 = vmatpush1.msra.mxu0 0.0
        %1358 = vmatprep.subr.mxu0 0.0
        %1359 = vmatpush1.msra.mxu0 %v1318
        %1360 = vmatprep.subr.mxu0 0.0
        %1361 = vmatpush1.msra.mxu0 %v1317
        %1362 = vmatprep.subr.mxu0 0.0
        %1363 = vmatpush2.msra.mxu0 0.0
        %1364 = vmatprep.subr.mxu0 0.0
        %1365 = vmatpush2.msra.mxu0 0.0
        %1366 = vmatprep.subr.mxu0 0.0
        %1367 = vmatpush2.msra.mxu0 0.0
        %1368 = vmatprep.subr.mxu0 0.0
        %1369 = vmatpush2.msra.mxu0 0.0
        %1370 = vmatprep.subr.mxu0 0.0
        %1371 = vmatpush2.msra.mxu0 0.0
        %1372 = vmatprep.subr.mxu0 0.0
        %1373 = vmatpush2.msra.mxu0 0.0
        %1374 = vmatprep.subr.mxu0 0.0
        %1375 = vmatpush2.msra.mxu0 0.0
        %1376 = vmatprep.subr.mxu0 0.0
        %1377 = vmatpush2.msra.mxu0 0.0
        %1378 = vmatprep.subr.mxu0 0.0
        %1379 = vmatpush2.msra.mxu0 0.0
        %1380 = vmatprep.subr.mxu0 0.0
        %1381 = vmatpush2.msra.mxu0 0.0
        %1382 = vmatprep.subr.mxu0 0.0
        %1383 = vmatpush2.msra.mxu0 0.0
        %1384 = vmatprep.subr.mxu0 0.0
        %1385 = vmatpush2.msra.mxu0 0.0
        %1386 = vmatprep.subr.mxu0 0.0
        %1387 = vmatpush2.msra.mxu0 0.0
        %1388 = vmatprep.subr.mxu0 0.0
        %1389 = vmatpush2.msra.mxu0 0.0
        %1390 = vmatprep.subr.mxu0 0.0
        %1391 = vmatpush2.msra.mxu0 0.0
        %1392 = vmatprep.subr.mxu0 0.0
        %1393 = vmatpush2.msra.mxu0 0.0
        %1394 = vmatprep.mubr.f32.mxu0 0.0
        %1395 = vmatmul.mubr.f32.gmra.mxu0 %v1328
        %v1396 = vpop.f32.mrf.mxu0
        %v1397 = vadd.f32 %v1325, %v1396
        %v1398 = vpop.f32.mrf.mxu0
        %1399 = vdwg.mxu0
        %1401 = vrot.lane.b32.xlu0 %v1397, 112
        %v1402 = vpop.permute.xlu0 %1401
        %v1403 = vsel %vm663, %v1397, 0
        %v1405 = vsel %vm663, %v1402, 0
        %1407 = vmatprep.subr.mxu0 0.0
        %1408 = vmatpush1.xpose.msra.mxu0 0.0
        %1409 = vmatprep.subr.mxu0 0.0
        %1410 = vmatpush1.xpose.msra.mxu0 0.0
        %1411 = vmatprep.subr.mxu0 0.0
        %1412 = vmatpush1.xpose.msra.mxu0 0.0
        %1413 = vmatprep.subr.mxu0 0.0
        %1414 = vmatpush1.xpose.msra.mxu0 0.0
        %1415 = vmatprep.subr.mxu0 0.0
        %1416 = vmatpush1.xpose.msra.mxu0 0.0
        %1417 = vmatprep.subr.mxu0 0.0
        %1418 = vmatpush1.xpose.msra.mxu0 0.0
        %1419 = vmatprep.subr.mxu0 0.0
        %1420 = vmatpush1.xpose.msra.mxu0 0.0
        %1421 = vmatprep.subr.mxu0 0.0
        %1422 = vmatpush1.xpose.msra.mxu0 0.0
        %1423 = vmatprep.subr.mxu0 0.0
        %1424 = vmatpush1.xpose.msra.mxu0 0.0
        %1425 = vmatprep.subr.mxu0 0.0
        %1426 = vmatpush1.xpose.msra.mxu0 0.0
        %1427 = vmatprep.subr.mxu0 0.0
        %1428 = vmatpush1.xpose.msra.mxu0 0.0
        %1429 = vmatprep.subr.mxu0 0.0
        %1430 = vmatpush1.xpose.msra.mxu0 0.0
        %1431 = vmatprep.subr.mxu0 0.0
        %1432 = vmatpush1.xpose.msra.mxu0 0.0
        %1433 = vmatprep.subr.mxu0 0.0
        %1434 = vmatpush1.xpose.msra.mxu0 0.0
        %1435 = vmatprep.subr.mxu0 0.0
        %1436 = vmatpush1.xpose.msra.mxu0 0.0
        %1437 = vmatprep.subr.mxu0 0.0
        %1438 = vmatpush1.xpose.msra.mxu0 %v1405
        %1439 = vmatprep.subr.mxu0 0.0
        %1440 = vmatpush2.xpose.msra.mxu0 0.0
        %1441 = vmatprep.subr.mxu0 0.0
        %1442 = vmatpush2.xpose.msra.mxu0 0.0
        %1443 = vmatprep.subr.mxu0 0.0
        %1444 = vmatpush2.xpose.msra.mxu0 0.0
        %1445 = vmatprep.subr.mxu0 0.0
        %1446 = vmatpush2.xpose.msra.mxu0 0.0
        %1447 = vmatprep.subr.mxu0 0.0
        %1448 = vmatpush2.xpose.msra.mxu0 0.0
        %1449 = vmatprep.subr.mxu0 0.0
        %1450 = vmatpush2.xpose.msra.mxu0 0.0
        %1451 = vmatprep.subr.mxu0 0.0
        %1452 = vmatpush2.xpose.msra.mxu0 0.0
        %1453 = vmatprep.subr.mxu0 0.0
        %1454 = vmatpush2.xpose.msra.mxu0 0.0
        %1455 = vmatprep.subr.mxu0 0.0
        %1456 = vmatpush2.xpose.msra.mxu0 0.0
        %1457 = vmatprep.subr.mxu0 0.0
        %1458 = vmatpush2.xpose.msra.mxu0 0.0
        %1459 = vmatprep.subr.mxu0 0.0
        %1460 = vmatpush2.xpose.msra.mxu0 0.0
        %1461 = vmatprep.subr.mxu0 0.0
        %1462 = vmatpush2.xpose.msra.mxu0 0.0
        %1463 = vmatprep.subr.mxu0 0.0
        %1464 = vmatpush2.xpose.msra.mxu0 0.0
        %1465 = vmatprep.subr.mxu0 0.0
        %1466 = vmatpush2.xpose.msra.mxu0 0.0
        %1467 = vmatprep.subr.mxu0 0.0
        %1468 = vmatpush2.xpose.msra.mxu0 0.0
        %1469 = vmatprep.subr.mxu0 0.0
        %1470 = vmatpush2.xpose.msra.mxu0 0.0
        %1471 = vmatprep.mubr.f32.mxu0 0.0
        %1472 = vmatmul.mubr.f32.gmra.mxu0 %v1403
        %v1473 = vpop.f32.mrf.mxu0
        %v1474 = vadd.f32 0.0, %v1473
        %v1475 = vpop.f32.mrf.mxu0
        %1476 = vdwg.mxu0
        %v1477 = vmul.f32 %v1474, 0.35355338
        %v1478 = vadd.f32 %v1477, %v743
        %v1479 = vsel %vm663, %v1478, -inf
        %1480 = vmax.xlane.f32.xlu0 %v1479
        %v1481 = vpop.xlane.xlu0 %1480
        %v1482 = vsub.f32 %v1478, %v1481
        %v1483 = vmul.f32 %v1482, 1.442695
        %v1484 = vpow.pop %v1483
        %v1485 = vsel %vm663, %v1484, 0.0
        %1486 = vadd.xlane.f32.xlu0 %v1485
        %v1487 = vpop.xlane.xlu0 %1486
        %v1488 = vrcp.pop %v1487
        %v1489 = vmul.f32 %v1484, %v1488
        %1490 = vrot.lane.b32.xlu0 %v1397, 96
        %v1491 = vpop.permute.xlu0 %1490
        %v1494 = vsel %vm663, %v1489, 0
        %1496 = vmatprep.subr.mxu0 0.0
        %1497 = vmatpush1.msra.mxu0 0.0
        %1498 = vmatprep.subr.mxu0 0.0
        %1499 = vmatpush1.msra.mxu0 0.0
        %1500 = vmatprep.subr.mxu0 0.0
        %1501 = vmatpush1.msra.mxu0 0.0
        %1502 = vmatprep.subr.mxu0 0.0
        %1503 = vmatpush1.msra.mxu0 0.0
        %1504 = vmatprep.subr.mxu0 0.0
        %1505 = vmatpush1.msra.mxu0 0.0
        %1506 = vmatprep.subr.mxu0 0.0
        %1507 = vmatpush1.msra.mxu0 0.0
        %1508 = vmatprep.subr.mxu0 0.0
        %1509 = vmatpush1.msra.mxu0 0.0
        %1510 = vmatprep.subr.mxu0 0.0
        %1511 = vmatpush1.msra.mxu0 0.0
        %1512 = vmatprep.subr.mxu0 0.0
        %1513 = vmatpush1.msra.mxu0 0.0
        %1514 = vmatprep.subr.mxu0 0.0
        %1515 = vmatpush1.msra.mxu0 0.0
        %1516 = vmatprep.subr.mxu0 0.0
        %1517 = vmatpush1.msra.mxu0 0.0
        %1518 = vmatprep.subr.mxu0 0.0
        %1519 = vmatpush1.msra.mxu0 0.0
        %1520 = vmatprep.subr.mxu0 0.0
        %1521 = vmatpush1.msra.mxu0 0.0
        %1522 = vmatprep.subr.mxu0 0.0
        %1523 = vmatpush1.msra.mxu0 0.0
        %1524 = vmatprep.subr.mxu0 0.0
        %1525 = vmatpush1.msra.mxu0 0.0
        %1526 = vmatprep.subr.mxu0 0.0
        %1527 = vmatpush1.msra.mxu0 %v1491
        %1528 = vmatprep.subr.mxu0 0.0
        %1529 = vmatpush2.msra.mxu0 0.0
        %1530 = vmatprep.subr.mxu0 0.0
        %1531 = vmatpush2.msra.mxu0 0.0
        %1532 = vmatprep.subr.mxu0 0.0
        %1533 = vmatpush2.msra.mxu0 0.0
        %1534 = vmatprep.subr.mxu0 0.0
        %1535 = vmatpush2.msra.mxu0 0.0
        %1536 = vmatprep.subr.mxu0 0.0
        %1537 = vmatpush2.msra.mxu0 0.0
        %1538 = vmatprep.subr.mxu0 0.0
        %1539 = vmatpush2.msra.mxu0 0.0
        %1540 = vmatprep.subr.mxu0 0.0
        %1541 = vmatpush2.msra.mxu0 0.0
        %1542 = vmatprep.subr.mxu0 0.0
        %1543 = vmatpush2.msra.mxu0 0.0
        %1544 = vmatprep.subr.mxu0 0.0
        %1545 = vmatpush2.msra.mxu0 0.0
        %1546 = vmatprep.subr.mxu0 0.0
        %1547 = vmatpush2.msra.mxu0 0.0
        %1548 = vmatprep.subr.mxu0 0.0
        %1549 = vmatpush2.msra.mxu0 0.0
        %1550 = vmatprep.subr.mxu0 0.0
        %1551 = vmatpush2.msra.mxu0 0.0
        %1552 = vmatprep.subr.mxu0 0.0
        %1553 = vmatpush2.msra.mxu0 0.0
        %1554 = vmatprep.subr.mxu0 0.0
        %1555 = vmatpush2.msra.mxu0 0.0
        %1556 = vmatprep.subr.mxu0 0.0
        %1557 = vmatpush2.msra.mxu0 0.0
        %1558 = vmatprep.subr.mxu0 0.0
        %1559 = vmatpush2.msra.mxu0 0.0
        %1560 = vmatprep.mubr.f32.mxu0 0.0
        %1561 = vmatmul.mubr.f32.gmra.mxu0 %v1494
        %v1562 = vpop.f32.mrf.mxu0
        %v1563 = vadd.f32 0.0, %v1562
        %v1564 = vpop.f32.mrf.mxu0
        %1565 = vdwg.mxu0
        %1566 = vrot.lane.b32.xlu0 %v1397, 120
        %v1567 = vpop.permute.xlu0 %1566
        %1568 = vrot.lane.b32.xlu0 %v1397, 104
        %v1569 = vpop.permute.xlu0 %1568
        %v1570 = vsel %vm663, %v1567, 0
        %v1572 = vsel %vm663, %v1569, 0
        %1574 = vmatprep.subr.mxu0 0.0
        %1575 = vmatpush1.xpose.msra.mxu0 0.0
        %1576 = vmatprep.subr.mxu0 0.0
        %1577 = vmatpush1.xpose.msra.mxu0 0.0
        %1578 = vmatprep.subr.mxu0 0.0
        %1579 = vmatpush1.xpose.msra.mxu0 0.0
        %1580 = vmatprep.subr.mxu0 0.0
        %1581 = vmatpush1.xpose.msra.mxu0 0.0
        %1582 = vmatprep.subr.mxu0 0.0
        %1583 = vmatpush1.xpose.msra.mxu0 0.0
        %1584 = vmatprep.subr.mxu0 0.0
        %1585 = vmatpush1.xpose.msra.mxu0 0.0
        %1586 = vmatprep.subr.mxu0 0.0
        %1587 = vmatpush1.xpose.msra.mxu0 0.0
        %1588 = vmatprep.subr.mxu0 0.0
        %1589 = vmatpush1.xpose.msra.mxu0 0.0
        %1590 = vmatprep.subr.mxu0 0.0
        %1591 = vmatpush1.xpose.msra.mxu0 0.0
        %1592 = vmatprep.subr.mxu0 0.0
        %1593 = vmatpush1.xpose.msra.mxu0 0.0
        %1594 = vmatprep.subr.mxu0 0.0
        %1595 = vmatpush1.xpose.msra.mxu0 0.0
        %1596 = vmatprep.subr.mxu0 0.0
        %1597 = vmatpush1.xpose.msra.mxu0 0.0
        %1598 = vmatprep.subr.mxu0 0.0
        %1599 = vmatpush1.xpose.msra.mxu0 0.0
        %1600 = vmatprep.subr.mxu0 0.0
        %1601 = vmatpush1.xpose.msra.mxu0 0.0
        %1602 = vmatprep.subr.mxu0 0.0
        %1603 = vmatpush1.xpose.msra.mxu0 0.0
        %1604 = vmatprep.subr.mxu0 0.0
        %1605 = vmatpush1.xpose.msra.mxu0 %v1572
        %1606 = vmatprep.subr.mxu0 0.0
        %1607 = vmatpush2.xpose.msra.mxu0 0.0
        %1608 = vmatprep.subr.mxu0 0.0
        %1609 = vmatpush2.xpose.msra.mxu0 0.0
        %1610 = vmatprep.subr.mxu0 0.0
        %1611 = vmatpush2.xpose.msra.mxu0 0.0
        %1612 = vmatprep.subr.mxu0 0.0
        %1613 = vmatpush2.xpose.msra.mxu0 0.0
        %1614 = vmatprep.subr.mxu0 0.0
        %1615 = vmatpush2.xpose.msra.mxu0 0.0
        %1616 = vmatprep.subr.mxu0 0.0
        %1617 = vmatpush2.xpose.msra.mxu0 0.0
        %1618 = vmatprep.subr.mxu0 0.0
        %1619 = vmatpush2.xpose.msra.mxu0 0.0
        %1620 = vmatprep.subr.mxu0 0.0
        %1621 = vmatpush2.xpose.msra.mxu0 0.0
        %1622 = vmatprep.subr.mxu0 0.0
        %1623 = vmatpush2.xpose.msra.mxu0 0.0
        %1624 = vmatprep.subr.mxu0 0.0
        %1625 = vmatpush2.xpose.msra.mxu0 0.0
        %1626 = vmatprep.subr.mxu0 0.0
        %1627 = vmatpush2.xpose.msra.mxu0 0.0
        %1628 = vmatprep.subr.mxu0 0.0
        %1629 = vmatpush2.xpose.msra.mxu0 0.0
        %1630 = vmatprep.subr.mxu0 0.0
        %1631 = vmatpush2.xpose.msra.mxu0 0.0
        %1632 = vmatprep.subr.mxu0 0.0
        %1633 = vmatpush2.xpose.msra.mxu0 0.0
        %1634 = vmatprep.subr.mxu0 0.0
        %1635 = vmatpush2.xpose.msra.mxu0 0.0
        %1636 = vmatprep.subr.mxu0 0.0
        %1637 = vmatpush2.xpose.msra.mxu0 0.0
        %1638 = vmatprep.mubr.f32.mxu0 0.0
        %1639 = vmatmul.mubr.f32.gmra.mxu0 %v1570
        %v1640 = vpop.f32.mrf.mxu0
        %v1641 = vadd.f32 0.0, %v1640
        %v1642 = vpop.f32.mrf.mxu0
        %1643 = vdwg.mxu0
        %v1644 = vmul.f32 %v1641, 0.35355338
        %v1645 = vadd.f32 %v1644, %v743
        %v1646 = vsel %vm663, %v1645, -inf
        %1647 = vmax.xlane.f32.xlu0 %v1646
        %v1648 = vpop.xlane.xlu0 %1647
        %v1649 = vsub.f32 %v1645, %v1648
        %v1650 = vmul.f32 %v1649, 1.442695
        %v1651 = vpow.pop %v1650
        %v1652 = vsel %vm663, %v1651, 0.0
        %1653 = vadd.xlane.f32.xlu0 %v1652
        %v1654 = vpop.xlane.xlu0 %1653
        %v1655 = vrcp.pop %v1654
        %v1656 = vmul.f32 %v1651, %v1655
        %1657 = vrot.lane.b32.xlu0 %v1397, 88
        %v1658 = vpop.permute.xlu0 %1657
        %v1661 = vsel %vm663, %v1656, 0
        %1663 = vmatprep.subr.mxu0 0.0
        %1664 = vmatpush1.msra.mxu0 0.0
        %1665 = vmatprep.subr.mxu0 0.0
        %1666 = vmatpush1.msra.mxu0 0.0
        %1667 = vmatprep.subr.mxu0 0.0
        %1668 = vmatpush1.msra.mxu0 0.0
        %1669 = vmatprep.subr.mxu0 0.0
        %1670 = vmatpush1.msra.mxu0 0.0
        %1671 = vmatprep.subr.mxu0 0.0
        %1672 = vmatpush1.msra.mxu0 0.0
        %1673 = vmatprep.subr.mxu0 0.0
        %1674 = vmatpush1.msra.mxu0 0.0
        %1675 = vmatprep.subr.mxu0 0.0
        %1676 = vmatpush1.msra.mxu0 0.0
        %1677 = vmatprep.subr.mxu0 0.0
        %1678 = vmatpush1.msra.mxu0 0.0
        %1679 = vmatprep.subr.mxu0 0.0
        %1680 = vmatpush1.msra.mxu0 0.0
        %1681 = vmatprep.subr.mxu0 0.0
        %1682 = vmatpush1.msra.mxu0 0.0
        %1683 = vmatprep.subr.mxu0 0.0
        %1684 = vmatpush1.msra.mxu0 0.0
        %1685 = vmatprep.subr.mxu0 0.0
        %1686 = vmatpush1.msra.mxu0 0.0
        %1687 = vmatprep.subr.mxu0 0.0
        %1688 = vmatpush1.msra.mxu0 0.0
        %1689 = vmatprep.subr.mxu0 0.0
        %1690 = vmatpush1.msra.mxu0 0.0
        %1691 = vmatprep.subr.mxu0 0.0
        %1692 = vmatpush1.msra.mxu0 0.0
        %1693 = vmatprep.subr.mxu0 0.0
        %1694 = vmatpush1.msra.mxu0 %v1658
        %1695 = vmatprep.subr.mxu0 0.0
        %1696 = vmatpush2.msra.mxu0 0.0
        %1697 = vmatprep.subr.mxu0 0.0
        %1698 = vmatpush2.msra.mxu0 0.0
        %1699 = vmatprep.subr.mxu0 0.0
        %1700 = vmatpush2.msra.mxu0 0.0
        %1701 = vmatprep.subr.mxu0 0.0
        %1702 = vmatpush2.msra.mxu0 0.0
        %1703 = vmatprep.subr.mxu0 0.0
        %1704 = vmatpush2.msra.mxu0 0.0
        %1705 = vmatprep.subr.mxu0 0.0
        %1706 = vmatpush2.msra.mxu0 0.0
        %1707 = vmatprep.subr.mxu0 0.0
        %1708 = vmatpush2.msra.mxu0 0.0
        %1709 = vmatprep.subr.mxu0 0.0
        %1710 = vmatpush2.msra.mxu0 0.0
        %1711 = vmatprep.subr.mxu0 0.0
        %1712 = vmatpush2.msra.mxu0 0.0
        %1713 = vmatprep.subr.mxu0 0.0
        %1714 = vmatpush2.msra.mxu0 0.0
        %1715 = vmatprep.subr.mxu0 0.0
        %1716 = vmatpush2.msra.mxu0 0.0
        %1717 = vmatprep.subr.mxu0 0.0
        %1718 = vmatpush2.msra.mxu0 0.0
        %1719 = vmatprep.subr.mxu0 0.0
        %1720 = vmatpush2.msra.mxu0 0.0
        %1721 = vmatprep.subr.mxu0 0.0
        %1722 = vmatpush2.msra.mxu0 0.0
        %1723 = vmatprep.subr.mxu0 0.0
        %1724 = vmatpush2.msra.mxu0 0.0
        %1725 = vmatprep.subr.mxu0 0.0
        %1726 = vmatpush2.msra.mxu0 0.0
        %1727 = vmatprep.mubr.f32.mxu0 0.0
        %1728 = vmatmul.mubr.f32.gmra.mxu0 %v1661
        %v1729 = vpop.f32.mrf.mxu0
        %v1730 = vadd.f32 0.0, %v1729
        %v1731 = vpop.f32.mrf.mxu0
        %1732 = vdwg.mxu0
        %1734 = vrot.lane.b32.xlu0 %v1730, 8
        %v1735 = vpop.permute.xlu0 %1734
        %v1737 = vsel %vm663, %v1563, %v1735
        %s1738 = scalar_lea.vmem %s5, 16
        %v1739 = vld [vmem:[%s1738] sm:$0xff]
        %v1740 = vld [vmem:[%s1738 + $0x8] sm:$0xff]
        %s1741 = scalar_lea.vmem %s6, 1
        %v1742 = vld [vmem:[%s1741] sm:$0x1]
        %v1744 = vlaneseq
        %v1745 = vshrl.u32 %v1744, 7
        %v1746 = vsub.s32 0, %v1745
        %v1747 = vrot.slane %v1742, %v1746
        %v1750 = vsel %vm586, %v1737, 0
        %1752 = vmatprep.subr.mxu0 0.0
        %1753 = vmatpush1.msra.mxu0 0.0
        %1754 = vmatprep.subr.mxu0 0.0
        %1755 = vmatpush1.msra.mxu0 0.0
        %1756 = vmatprep.subr.mxu0 0.0
        %1757 = vmatpush1.msra.mxu0 0.0
        %1758 = vmatprep.subr.mxu0 0.0
        %1759 = vmatpush1.msra.mxu0 0.0
        %1760 = vmatprep.subr.mxu0 0.0
        %1761 = vmatpush1.msra.mxu0 0.0
        %1762 = vmatprep.subr.mxu0 0.0
        %1763 = vmatpush1.msra.mxu0 0.0
        %1764 = vmatprep.subr.mxu0 0.0
        %1765 = vmatpush1.msra.mxu0 0.0
        %1766 = vmatprep.subr.mxu0 0.0
        %1767 = vmatpush1.msra.mxu0 0.0
        %1768 = vmatprep.subr.mxu0 0.0
        %1769 = vmatpush1.msra.mxu0 0.0
        %1770 = vmatprep.subr.mxu0 0.0
        %1771 = vmatpush1.msra.mxu0 0.0
        %1772 = vmatprep.subr.mxu0 0.0
        %1773 = vmatpush1.msra.mxu0 0.0
        %1774 = vmatprep.subr.mxu0 0.0
        %1775 = vmatpush1.msra.mxu0 0.0
        %1776 = vmatprep.subr.mxu0 0.0
        %1777 = vmatpush1.msra.mxu0 0.0
        %1778 = vmatprep.subr.mxu0 0.0
        %1779 = vmatpush1.msra.mxu0 0.0
        %1780 = vmatprep.subr.mxu0 0.0
        %1781 = vmatpush1.msra.mxu0 %v1740
        %1782 = vmatprep.subr.mxu0 0.0
        %1783 = vmatpush1.msra.mxu0 %v1739
        %1784 = vmatprep.subr.mxu0 0.0
        %1785 = vmatpush2.msra.mxu0 0.0
        %1786 = vmatprep.subr.mxu0 0.0
        %1787 = vmatpush2.msra.mxu0 0.0
        %1788 = vmatprep.subr.mxu0 0.0
        %1789 = vmatpush2.msra.mxu0 0.0
        %1790 = vmatprep.subr.mxu0 0.0
        %1791 = vmatpush2.msra.mxu0 0.0
        %1792 = vmatprep.subr.mxu0 0.0
        %1793 = vmatpush2.msra.mxu0 0.0
        %1794 = vmatprep.subr.mxu0 0.0
        %1795 = vmatpush2.msra.mxu0 0.0
        %1796 = vmatprep.subr.mxu0 0.0
        %1797 = vmatpush2.msra.mxu0 0.0
        %1798 = vmatprep.subr.mxu0 0.0
        %1799 = vmatpush2.msra.mxu0 0.0
        %1800 = vmatprep.subr.mxu0 0.0
        %1801 = vmatpush2.msra.mxu0 0.0
        %1802 = vmatprep.subr.mxu0 0.0
        %1803 = vmatpush2.msra.mxu0 0.0
        %1804 = vmatprep.subr.mxu0 0.0
        %1805 = vmatpush2.msra.mxu0 0.0
        %1806 = vmatprep.subr.mxu0 0.0
        %1807 = vmatpush2.msra.mxu0 0.0
        %1808 = vmatprep.subr.mxu0 0.0
        %1809 = vmatpush2.msra.mxu0 0.0
        %1810 = vmatprep.subr.mxu0 0.0
        %1811 = vmatpush2.msra.mxu0 0.0
        %1812 = vmatprep.subr.mxu0 0.0
        %1813 = vmatpush2.msra.mxu0 0.0
        %1814 = vmatprep.subr.mxu0 0.0
        %1815 = vmatpush2.msra.mxu0 0.0
        %1816 = vmatprep.mubr.f32.mxu0 0.0
        %1817 = vmatmul.mubr.f32.gmra.mxu0 %v1750
        %v1818 = vpop.f32.mrf.mxu0
        %v1819 = vadd.f32 %v1747, %v1818
        %v1820 = vpop.f32.mrf.mxu0
        %1821 = vdwg.mxu0
        %v1822 = vadd.f32 %v1315, %v1819
        %s1823 = scalar_lea.vmem %s7, 1
        %v1824 = vld [vmem:[%s1823] sm:$0x1]
        %s1825 = scalar_lea.vmem %s8, 1
        %v1826 = vld [vmem:[%s1825] sm:$0x1]
        %v1827 = vsel %vm586, %v1822, 0.0
        %1828 = vadd.xlane.f32.xlu0 %v1827
        %v1829 = vpop.xlane.xlu0 %1828
        %v1830 = vmul.f32 %v1829, %v1093
        %v1831 = vsub.f32 %v1822, %v1830
        %v1832 = vmul.f32 %v1831, %v1831
        %v1833 = vsel %vm586, %v1832, 0.0
        %1834 = vadd.xlane.f32.xlu0 %v1833
        %v1835 = vpop.xlane.xlu0 %1834
        %v1836 = vmul.f32 %v1835, %v1093
        %v1837 = vadd.f32 %v1836, 1e-05
        %v1838 = vrsqrt.pop %v1837
        %v1839 = vmul.f32 %v1831, %v1838
        %v1841 = vlaneseq
        %v1842 = vshrl.u32 %v1841, 7
        %v1843 = vsub.s32 0, %v1842
        %v1844 = vrot.slane %v1824, %v1843
        %v1846 = vmul.f32 %v1839, %v1844
        %v1848 = vlaneseq
        %v1849 = vshrl.u32 %v1848, 7
        %v1850 = vsub.s32 0, %v1849
        %v1851 = vrot.slane %v1826, %v1850
        %v1853 = vadd.f32 %v1846, %v1851
        %s1854 = scalar_lea.vmem %s9, 16
        %v1855 = vld [vmem:[%s1854] sm:$0xff]
        %v1856 = vld [vmem:[%s1854 + $0x8] sm:$0xff]
        %s1857 = scalar_lea.vmem %s10, 1
        %v1858 = vld [vmem:[%s1857] sm:$0x1]
        %v1860 = vlaneseq
        %v1861 = vshrl.u32 %v1860, 7
        %v1862 = vsub.s32 0, %v1861
        %v1863 = vrot.slane %v1858, %v1862
        %v1866 = vsel %vm586, %v1853, 0
        %1868 = vmatprep.subr.mxu0 0.0
        %1869 = vmatpush1.msra.mxu0 0.0
        %1870 = vmatprep.subr.mxu0 0.0
        %1871 = vmatpush1.msra.mxu0 0.0
        %1872 = vmatprep.subr.mxu0 0.0
        %1873 = vmatpush1.msra.mxu0 0.0
        %1874 = vmatprep.subr.mxu0 0.0
        %1875 = vmatpush1.msra.mxu0 0.0
        %1876 = vmatprep.subr.mxu0 0.0
        %1877 = vmatpush1.msra.mxu0 0.0
        %1878 = vmatprep.subr.mxu0 0.0
        %1879 = vmatpush1.msra.mxu0 0.0
        %1880 = vmatprep.subr.mxu0 0.0
        %1881 = vmatpush1.msra.mxu0 0.0
        %1882 = vmatprep.subr.mxu0 0.0
        %1883 = vmatpush1.msra.mxu0 0.0
        %1884 = vmatprep.subr.mxu0 0.0
        %1885 = vmatpush1.msra.mxu0 0.0
        %1886 = vmatprep.subr.mxu0 0.0
        %1887 = vmatpush1.msra.mxu0 0.0
        %1888 = vmatprep.subr.mxu0 0.0
        %1889 = vmatpush1.msra.mxu0 0.0
        %1890 = vmatprep.subr.mxu0 0.0
        %1891 = vmatpush1.msra.mxu0 0.0
        %1892 = vmatprep.subr.mxu0 0.0
        %1893 = vmatpush1.msra.mxu0 0.0
        %1894 = vmatprep.subr.mxu0 0.0
        %1895 = vmatpush1.msra.mxu0 0.0
        %1896 = vmatprep.subr.mxu0 0.0
        %1897 = vmatpush1.msra.mxu0 %v1856
        %1898 = vmatprep.subr.mxu0 0.0
        %1899 = vmatpush1.msra.mxu0 %v1855
        %1900 = vmatprep.subr.mxu0 0.0
        %1901 = vmatpush2.msra.mxu0 0.0
        %1902 = vmatprep.subr.mxu0 0.0
        %1903 = vmatpush2.msra.mxu0 0.0
        %1904 = vmatprep.subr.mxu0 0.0
        %1905 = vmatpush2.msra.mxu0 0.0
        %1906 = vmatprep.subr.mxu0 0.0
        %1907 = vmatpush2.msra.mxu0 0.0
        %1908 = vmatprep.subr.mxu0 0.0
        %1909 = vmatpush2.msra.mxu0 0.0
        %1910 = vmatprep.subr.mxu0 0.0
        %1911 = vmatpush2.msra.mxu0 0.0
        %1912 = vmatprep.subr.mxu0 0.0
        %1913 = vmatpush2.msra.mxu0 0.0
        %1914 = vmatprep.subr.mxu0 0.0
        %1915 = vmatpush2.msra.mxu0 0.0
        %1916 = vmatprep.subr.mxu0 0.0
        %1917 = vmatpush2.msra.mxu0 0.0
        %1918 = vmatprep.subr.mxu0 0.0
        %1919 = vmatpush2.msra.mxu0 0.0
        %1920 = vmatprep.subr.mxu0 0.0
        %1921 = vmatpush2.msra.mxu0 0.0
        %1922 = vmatprep.subr.mxu0 0.0
        %1923 = vmatpush2.msra.mxu0 0.0
        %1924 = vmatprep.subr.mxu0 0.0
        %1925 = vmatpush2.msra.mxu0 0.0
        %1926 = vmatprep.subr.mxu0 0.0
        %1927 = vmatpush2.msra.mxu0 0.0
        %1928 = vmatprep.subr.mxu0 0.0
        %1929 = vmatpush2.msra.mxu0 0.0
        %1930 = vmatprep.subr.mxu0 0.0
        %1931 = vmatpush2.msra.mxu0 0.0
        %1932 = vmatprep.mubr.f32.mxu0 0.0
        %1933 = vmatmul.mubr.f32.gmra.mxu0 %v1866
        %v1934 = vpop.f32.mrf.mxu0
        %v1935 = vadd.f32 %v1863, %v1934
        %v1936 = vpop.f32.mrf.mxu0
        %1937 = vdwg.mxu0
        %v1938 = vmax.f32 %v1935, 0.0
        %s1939 = scalar_lea.vmem %s11, 32
        %v1940 = vld [vmem:[%s1939] sm:$0xff]
        %v1941 = vld [vmem:[%s1939 + $0x8] sm:$0xff]
        %v1942 = vld [vmem:[%s1939 + $0x10] sm:$0xff]
        %v1943 = vld [vmem:[%s1939 + $0x18] sm:$0xff]
        %s1944 = scalar_lea.vmem %s12, 1
        %v1945 = vld [vmem:[%s1944] sm:$0x1]
        %v1947 = vlaneseq
        %v1948 = vshrl.u32 %v1947, 7
        %v1949 = vsub.s32 0, %v1948
        %v1950 = vrot.slane %v1945, %v1949
        %v1953 = vsel %vm1212, %v1938, 0
        %1955 = vmatprep.subr.mxu0 0.0
        %1956 = vmatpush1.msra.mxu0 0.0
        %1957 = vmatprep.subr.mxu0 0.0
        %1958 = vmatpush1.msra.mxu0 0.0
        %1959 = vmatprep.subr.mxu0 0.0
        %1960 = vmatpush1.msra.mxu0 0.0
        %1961 = vmatprep.subr.mxu0 0.0
        %1962 = vmatpush1.msra.mxu0 0.0
        %1963 = vmatprep.subr.mxu0 0.0
        %1964 = vmatpush1.msra.mxu0 0.0
        %1965 = vmatprep.subr.mxu0 0.0
        %1966 = vmatpush1.msra.mxu0 0.0
        %1967 = vmatprep.subr.mxu0 0.0
        %1968 = vmatpush1.msra.mxu0 0.0
        %1969 = vmatprep.subr.mxu0 0.0
        %1970 = vmatpush1.msra.mxu0 0.0
        %1971 = vmatprep.subr.mxu0 0.0
        %1972 = vmatpush1.msra.mxu0 0.0
        %1973 = vmatprep.subr.mxu0 0.0
        %1974 = vmatpush1.msra.mxu0 0.0
        %1975 = vmatprep.subr.mxu0 0.0
        %1976 = vmatpush1.msra.mxu0 0.0
        %1977 = vmatprep.subr.mxu0 0.0
        %1978 = vmatpush1.msra.mxu0 0.0
        %1979 = vmatprep.subr.mxu0 0.0
        %1980 = vmatpush1.msra.mxu0 %v1943
        %1981 = vmatprep.subr.mxu0 0.0
        %1982 = vmatpush1.msra.mxu0 %v1942
        %1983 = vmatprep.subr.mxu0 0.0
        %1984 = vmatpush1.msra.mxu0 %v1941
        %1985 = vmatprep.subr.mxu0 0.0
        %1986 = vmatpush1.msra.mxu0 %v1940
        %1987 = vmatprep.subr.mxu0 0.0
        %1988 = vmatpush2.msra.mxu0 0.0
        %1989 = vmatprep.subr.mxu0 0.0
        %1990 = vmatpush2.msra.mxu0 0.0
        %1991 = vmatprep.subr.mxu0 0.0
        %1992 = vmatpush2.msra.mxu0 0.0
        %1993 = vmatprep.subr.mxu0 0.0
        %1994 = vmatpush2.msra.mxu0 0.0
        %1995 = vmatprep.subr.mxu0 0.0
        %1996 = vmatpush2.msra.mxu0 0.0
        %1997 = vmatprep.subr.mxu0 0.0
        %1998 = vmatpush2.msra.mxu0 0.0
        %1999 = vmatprep.subr.mxu0 0.0
        %2000 = vmatpush2.msra.mxu0 0.0
        %2001 = vmatprep.subr.mxu0 0.0
        %2002 = vmatpush2.msra.mxu0 0.0
        %2003 = vmatprep.subr.mxu0 0.0
        %2004 = vmatpush2.msra.mxu0 0.0
        %2005 = vmatprep.subr.mxu0 0.0
        %2006 = vmatpush2.msra.mxu0 0.0
        %2007 = vmatprep.subr.mxu0 0.0
        %2008 = vmatpush2.msra.mxu0 0.0
        %2009 = vmatprep.subr.mxu0 0.0
        %2010 = vmatpush2.msra.mxu0 0.0
        %2011 = vmatprep.subr.mxu0 0.0
        %2012 = vmatpush2.msra.mxu0 0.0
        %2013 = vmatprep.subr.mxu0 0.0
        %2014 = vmatpush2.msra.mxu0 0.0
        %2015 = vmatprep.subr.mxu0 0.0
        %2016 = vmatpush2.msra.mxu0 0.0
        %2017 = vmatprep.subr.mxu0 0.0
        %2018 = vmatpush2.msra.mxu0 0.0
        %2019 = vmatprep.mubr.f32.mxu0 0.0
        %2020 = vmatmul.mubr.f32.gmra.mxu0 %v1953
        %v2021 = vpop.f32.mrf.mxu0
        %v2022 = vadd.f32 %v1950, %v2021
        %v2023 = vpop.f32.mrf.mxu0
        %2024 = vdwg.mxu0
        %v2025 = vadd.f32 %v1853, %v2022
        %s2026 = scalar_lea.vmem %s13, 1
        %v2027 = vld [vmem:[%s2026] sm:$0x1]
        %s2028 = scalar_lea.vmem %s14, 1
        %v2029 = vld [vmem:[%s2028] sm:$0x1]
        %v2030 = vsel %vm586, %v2025, 0.0
        %2031 = vadd.xlane.f32.xlu0 %v2030
        %v2032 = vpop.xlane.xlu0 %2031
        %v2033 = vmul.f32 %v2032, %v1093
        %v2034 = vsub.f32 %v2025, %v2033
        %v2035 = vmul.f32 %v2034, %v2034
        %v2036 = vsel %vm586, %v2035, 0.0
        %2037 = vadd.xlane.f32.xlu0 %v2036
        %v2038 = vpop.xlane.xlu0 %2037
        %v2039 = vmul.f32 %v2038, %v1093
        %v2040 = vadd.f32 %v2039, 1e-05
        %v2041 = vrsqrt.pop %v2040
        %v2042 = vmul.f32 %v2034, %v2041
        %v2044 = vlaneseq
        %v2045 = vshrl.u32 %v2044, 7
        %v2046 = vsub.s32 0, %v2045
        %v2047 = vrot.slane %v2027, %v2046
        %v2049 = vmul.f32 %v2042, %v2047
        %v2051 = vlaneseq
        %v2052 = vshrl.u32 %v2051, 7
        %v2053 = vsub.s32 0, %v2052
        %v2054 = vrot.slane %v2029, %v2053
        %v2056 = vadd.f32 %v2049, %v2054
        %v2057 = vsub.f32 1.0, %v576
        %2059 = vset.pattern.permute.xlu0 0
        %2060 = vperm.xlu0 %2059, %v2057
        %v2061 = vpop.permute.xlu0 %2060
        %v2063 = vmul.f32 %v2056, %v2061
        %v2064 = vmul.f32 %v2063, %v2063
        %v2065 = vsel %vm586, %v2064, 0.0
        %v2066 = vrot.slane %v2065, 4
        %v2067 = vadd.f32 %v2065, %v2066
        %v2068 = vrot.slane %v2067, 2
        %v2069 = vadd.f32 %v2067, %v2068
        %v2070 = vrot.slane %v2069, 1
        %v2071 = vadd.f32 %v2069, %v2070
        %v2072 = vrsqrt.pop %v2071
        %v2073 = vmul.f32 %v2071, %v2072
        %vm2074 = vcmp.eq.f32.partialorder %v2071, inf
        %v2075 = vsel %vm2074, %v2071, %v2073
        %vm2076 = vcmp.eq.f32.partialorder %v2071, 0.0
        %v2077 = vand.u32 %v2071, 2147483648
        %v2078 = vsel %vm2076, %v2077, %v2075
        %v2079 = vmax.f32 %v2078, 1e-12
        %v2080 = vrcp.pop %v2079
        %v2081 = vmul.f32 %v2063, %v2080
        %v2082 = vld [vmem:[%s15] sm:$0xff]
        %v2083 = vld [vmem:[%s15 + $0x8] sm:$0xff]
        %v2085 = vsel %vm586, %v2081, 0
        %2087 = vmatprep.subr.mxu0 0.0
        %2088 = vmatpush1.msra.mxu0 0.0
        %2089 = vmatprep.subr.mxu0 0.0
        %2090 = vmatpush1.msra.mxu0 0.0
        %2091 = vmatprep.subr.mxu0 0.0
        %2092 = vmatpush1.msra.mxu0 0.0
        %2093 = vmatprep.subr.mxu0 0.0
        %2094 = vmatpush1.msra.mxu0 0.0
        %2095 = vmatprep.subr.mxu0 0.0
        %2096 = vmatpush1.msra.mxu0 0.0
        %2097 = vmatprep.subr.mxu0 0.0
        %2098 = vmatpush1.msra.mxu0 0.0
        %2099 = vmatprep.subr.mxu0 0.0
        %2100 = vmatpush1.msra.mxu0 0.0
        %2101 = vmatprep.subr.mxu0 0.0
        %2102 = vmatpush1.msra.mxu0 0.0
        %2103 = vmatprep.subr.mxu0 0.0
        %2104 = vmatpush1.msra.mxu0 0.0
        %2105 = vmatprep.subr.mxu0 0.0
        %2106 = vmatpush1.msra.mxu0 0.0
        %2107 = vmatprep.subr.mxu0 0.0
        %2108 = vmatpush1.msra.mxu0 0.0
        %2109 = vmatprep.subr.mxu0 0.0
        %2110 = vmatpush1.msra.mxu0 0.0
        %2111 = vmatprep.subr.mxu0 0.0
        %2112 = vmatpush1.msra.mxu0 0.0
        %2113 = vmatprep.subr.mxu0 0.0
        %2114 = vmatpush1.msra.mxu0 0.0
        %2115 = vmatprep.subr.mxu0 0.0
        %2116 = vmatpush1.msra.mxu0 %v2083
        %2117 = vmatprep.subr.mxu0 0.0
        %2118 = vmatpush1.msra.mxu0 %v2082
        %2119 = vmatprep.subr.mxu0 0.0
        %2120 = vmatpush2.msra.mxu0 0.0
        %2121 = vmatprep.subr.mxu0 0.0
        %2122 = vmatpush2.msra.mxu0 0.0
        %2123 = vmatprep.subr.mxu0 0.0
        %2124 = vmatpush2.msra.mxu0 0.0
        %2125 = vmatprep.subr.mxu0 0.0
        %2126 = vmatpush2.msra.mxu0 0.0
        %2127 = vmatprep.subr.mxu0 0.0
        %2128 = vmatpush2.msra.mxu0 0.0
        %2129 = vmatprep.subr.mxu0 0.0
        %2130 = vmatpush2.msra.mxu0 0.0
        %2131 = vmatprep.subr.mxu0 0.0
        %2132 = vmatpush2.msra.mxu0 0.0
        %2133 = vmatprep.subr.mxu0 0.0
        %2134 = vmatpush2.msra.mxu0 0.0
        %2135 = vmatprep.subr.mxu0 0.0
        %2136 = vmatpush2.msra.mxu0 0.0
        %2137 = vmatprep.subr.mxu0 0.0
        %2138 = vmatpush2.msra.mxu0 0.0
        %2139 = vmatprep.subr.mxu0 0.0
        %2140 = vmatpush2.msra.mxu0 0.0
        %2141 = vmatprep.subr.mxu0 0.0
        %2142 = vmatpush2.msra.mxu0 0.0
        %2143 = vmatprep.subr.mxu0 0.0
        %2144 = vmatpush2.msra.mxu0 0.0
        %2145 = vmatprep.subr.mxu0 0.0
        %2146 = vmatpush2.msra.mxu0 0.0
        %2147 = vmatprep.subr.mxu0 0.0
        %2148 = vmatpush2.msra.mxu0 0.0
        %2149 = vmatprep.subr.mxu0 0.0
        %2150 = vmatpush2.msra.mxu0 0.0
        %2151 = vmatprep.mubr.f32.mxu0 0.0
        %2152 = vmatmul.mubr.f32.gmra.mxu0 %v2085
        %v2153 = vpop.f32.mrf.mxu0
        %v2154 = vadd.f32 0.0, %v2153
        %v2155 = vpop.f32.mrf.mxu0
        %2156 = vdwg.mxu0
        %v2157 = vmul.f32 %v2154, %v2081
        %v2158 = vsel %vm586, %v2157, 0.0
        %2159 = vadd.xlane.f32.xlu0 %v2158
        %v2160 = vpop.xlane.xlu0 %2159
        %v2161 = vrot.slane %v2160, 4
        %v2162 = vadd.f32 %v2160, %v2161
        %v2163 = vrot.slane %v2162, 2
        %v2164 = vadd.f32 %v2162, %v2163
        %v2165 = vrot.slane %v2164, 1
        %v2166 = vadd.f32 %v2164, %v2165
        %s2167 = scalar_lea.vmem %s15, 16
        %v2168 = vld [vmem:[%s2167] sm:$0xff]
        %v2169 = vld [vmem:[%s2167 + $0x8] sm:$0xff]
        %2170 = vmatprep.subr.mxu0 0.0
        %2171 = vmatpush1.msra.mxu0 0.0
        %2172 = vmatprep.subr.mxu0 0.0
        %2173 = vmatpush1.msra.mxu0 0.0
        %2174 = vmatprep.subr.mxu0 0.0
        %2175 = vmatpush1.msra.mxu0 0.0
        %2176 = vmatprep.subr.mxu0 0.0
        %2177 = vmatpush1.msra.mxu0 0.0
        %2178 = vmatprep.subr.mxu0 0.0
        %2179 = vmatpush1.msra.mxu0 0.0
        %2180 = vmatprep.subr.mxu0 0.0
        %2181 = vmatpush1.msra.mxu0 0.0
        %2182 = vmatprep.subr.mxu0 0.0
        %2183 = vmatpush1.msra.mxu0 0.0
        %2184 = vmatprep.subr.mxu0 0.0
        %2185 = vmatpush1.msra.mxu0 0.0
        %2186 = vmatprep.subr.mxu0 0.0
        %2187 = vmatpush1.msra.mxu0 0.0
        %2188 = vmatprep.subr.mxu0 0.0
        %2189 = vmatpush1.msra.mxu0 0.0
        %2190 = vmatprep.subr.mxu0 0.0
        %2191 = vmatpush1.msra.mxu0 0.0
        %2192 = vmatprep.subr.mxu0 0.0
        %2193 = vmatpush1.msra.mxu0 0.0
        %2194 = vmatprep.subr.mxu0 0.0
        %2195 = vmatpush1.msra.mxu0 0.0
        %2196 = vmatprep.subr.mxu0 0.0
        %2197 = vmatpush1.msra.mxu0 0.0
        %2198 = vmatprep.subr.mxu0 0.0
        %2199 = vmatpush1.msra.mxu0 %v2169
        %2200 = vmatprep.subr.mxu0 0.0
        %2201 = vmatpush1.msra.mxu0 %v2168
        %2202 = vmatprep.subr.mxu0 0.0
        %2203 = vmatpush2.msra.mxu0 0.0
        %2204 = vmatprep.subr.mxu0 0.0
        %2205 = vmatpush2.msra.mxu0 0.0
        %2206 = vmatprep.subr.mxu0 0.0
        %2207 = vmatpush2.msra.mxu0 0.0
        %2208 = vmatprep.subr.mxu0 0.0
        %2209 = vmatpush2.msra.mxu0 0.0
        %2210 = vmatprep.subr.mxu0 0.0
        %2211 = vmatpush2.msra.mxu0 0.0
        %2212 = vmatprep.subr.mxu0 0.0
        %2213 = vmatpush2.msra.mxu0 0.0
        %2214 = vmatprep.subr.mxu0 0.0
        %2215 = vmatpush2.msra.mxu0 0.0
        %2216 = vmatprep.subr.mxu0 0.0
        %2217 = vmatpush2.msra.mxu0 0.0
        %2218 = vmatprep.subr.mxu0 0.0
        %2219 = vmatpush2.msra.mxu0 0.0
        %2220 = vmatprep.subr.mxu0 0.0
        %2221 = vmatpush2.msra.mxu0 0.0
        %2222 = vmatprep.subr.mxu0 0.0
        %2223 = vmatpush2.msra.mxu0 0.0
        %2224 = vmatprep.subr.mxu0 0.0
        %2225 = vmatpush2.msra.mxu0 0.0
        %2226 = vmatprep.subr.mxu0 0.0
        %2227 = vmatpush2.msra.mxu0 0.0
        %2228 = vmatprep.subr.mxu0 0.0
        %2229 = vmatpush2.msra.mxu0 0.0
        %2230 = vmatprep.subr.mxu0 0.0
        %2231 = vmatpush2.msra.mxu0 0.0
        %2232 = vmatprep.subr.mxu0 0.0
        %2233 = vmatpush2.msra.mxu0 0.0
        %2234 = vmatprep.mubr.f32.mxu0 0.0
        %2235 = vmatmul.mubr.f32.gmra.mxu0 %v2085
        %v2236 = vpop.f32.mrf.mxu0
        %v2237 = vadd.f32 0.0, %v2236
        %v2238 = vpop.f32.mrf.mxu0
        %2239 = vdwg.mxu0
        %v2240 = vmul.f32 %v2237, %v2081
        %v2241 = vsel %vm586, %v2240, 0.0
        %2242 = vadd.xlane.f32.xlu0 %v2241
        %v2243 = vpop.xlane.xlu0 %2242
        %v2244 = vrot.slane %v2243, 4
        %v2245 = vadd.f32 %v2243, %v2244
        %v2246 = vrot.slane %v2245, 2
        %v2247 = vadd.f32 %v2245, %v2246
        %v2248 = vrot.slane %v2247, 1
        %v2249 = vadd.f32 %v2247, %v2248
        %s2250 = scalar_lea.vmem %s15, 32
        %v2251 = vld [vmem:[%s2250] sm:$0xff]
        %v2252 = vld [vmem:[%s2250 + $0x8] sm:$0xff]
        %2253 = vmatprep.subr.mxu0 0.0
        %2254 = vmatpush1.msra.mxu0 0.0
        %2255 = vmatprep.subr.mxu0 0.0
        %2256 = vmatpush1.msra.mxu0 0.0
        %2257 = vmatprep.subr.mxu0 0.0
        %2258 = vmatpush1.msra.mxu0 0.0
        %2259 = vmatprep.subr.mxu0 0.0
        %2260 = vmatpush1.msra.mxu0 0.0
        %2261 = vmatprep.subr.mxu0 0.0
        %2262 = vmatpush1.msra.mxu0 0.0
        %2263 = vmatprep.subr.mxu0 0.0
        %2264 = vmatpush1.msra.mxu0 0.0
        %2265 = vmatprep.subr.mxu0 0.0
        %2266 = vmatpush1.msra.mxu0 0.0
        %2267 = vmatprep.subr.mxu0 0.0
        %2268 = vmatpush1.msra.mxu0 0.0
        %2269 = vmatprep.subr.mxu0 0.0
        %2270 = vmatpush1.msra.mxu0 0.0
        %2271 = vmatprep.subr.mxu0 0.0
        %2272 = vmatpush1.msra.mxu0 0.0
        %2273 = vmatprep.subr.mxu0 0.0
        %2274 = vmatpush1.msra.mxu0 0.0
        %2275 = vmatprep.subr.mxu0 0.0
        %2276 = vmatpush1.msra.mxu0 0.0
        %2277 = vmatprep.subr.mxu0 0.0
        %2278 = vmatpush1.msra.mxu0 0.0
        %2279 = vmatprep.subr.mxu0 0.0
        %2280 = vmatpush1.msra.mxu0 0.0
        %2281 = vmatprep.subr.mxu0 0.0
        %2282 = vmatpush1.msra.mxu0 %v2252
        %2283 = vmatprep.subr.mxu0 0.0
        %2284 = vmatpush1.msra.mxu0 %v2251
        %2285 = vmatprep.subr.mxu0 0.0
        %2286 = vmatpush2.msra.mxu0 0.0
        %2287 = vmatprep.subr.mxu0 0.0
        %2288 = vmatpush2.msra.mxu0 0.0
        %2289 = vmatprep.subr.mxu0 0.0
        %2290 = vmatpush2.msra.mxu0 0.0
        %2291 = vmatprep.subr.mxu0 0.0
        %2292 = vmatpush2.msra.mxu0 0.0
        %2293 = vmatprep.subr.mxu0 0.0
        %2294 = vmatpush2.msra.mxu0 0.0
        %2295 = vmatprep.subr.mxu0 0.0
        %2296 = vmatpush2.msra.mxu0 0.0
        %2297 = vmatprep.subr.mxu0 0.0
        %2298 = vmatpush2.msra.mxu0 0.0
        %2299 = vmatprep.subr.mxu0 0.0
        %2300 = vmatpush2.msra.mxu0 0.0
        %2301 = vmatprep.subr.mxu0 0.0
        %2302 = vmatpush2.msra.mxu0 0.0
        %2303 = vmatprep.subr.mxu0 0.0
        %2304 = vmatpush2.msra.mxu0 0.0
        %2305 = vmatprep.subr.mxu0 0.0
        %2306 = vmatpush2.msra.mxu0 0.0
        %2307 = vmatprep.subr.mxu0 0.0
        %2308 = vmatpush2.msra.mxu0 0.0
        %2309 = vmatprep.subr.mxu0 0.0
        %2310 = vmatpush2.msra.mxu0 0.0
        %2311 = vmatprep.subr.mxu0 0.0
        %2312 = vmatpush2.msra.mxu0 0.0
        %2313 = vmatprep.subr.mxu0 0.0
        %2314 = vmatpush2.msra.mxu0 0.0
        %2315 = vmatprep.subr.mxu0 0.0
        %2316 = vmatpush2.msra.mxu0 0.0
        %2317 = vmatprep.mubr.f32.mxu0 0.0
        %2318 = vmatmul.mubr.f32.gmra.mxu0 %v2085
        %v2319 = vpop.f32.mrf.mxu0
        %v2320 = vadd.f32 0.0, %v2319
        %v2321 = vpop.f32.mrf.mxu0
        %2322 = vdwg.mxu0
        %v2323 = vmul.f32 %v2320, %v2081
        %v2324 = vsel %vm586, %v2323, 0.0
        %2325 = vadd.xlane.f32.xlu0 %v2324
        %v2326 = vpop.xlane.xlu0 %2325
        %v2327 = vrot.slane %v2326, 4
        %v2328 = vadd.f32 %v2326, %v2327
        %v2329 = vrot.slane %v2328, 2
        %v2330 = vadd.f32 %v2328, %v2329
        %v2331 = vrot.slane %v2330, 1
        %v2332 = vadd.f32 %v2330, %v2331
        %vm2333 = vcmask 7168
        %v2334 = vsel %vm2333, %v2166, %v2249
        %vm2335 = vcmask 15360
        %v2336 = vsel %vm2335, %v2334, %v2332
        %v2337 = vld [vmem:[%s16] sm:$0x1]
        %v2338 = vadd.f32 %v2336, %v2337
        %vm2339 = vcmask 16384
        %v2340 = vsel %vm2339, %v2338, -inf
        %2341 = vmax.xlane.f32.xlu0 %v2340
        %v2342 = vpop.xlane.xlu0 %2341
        %v2343 = vsub.f32 %v2338, %v2342
        %v2344 = vmul.f32 %v2343, 1.442695
        %v2345 = vpow.pop %v2344
        %v2346 = vsel %vm2339, %v2345, 0.0
        %2347 = vadd.xlane.f32.xlu0 %v2346
        %v2348 = vpop.xlane.xlu0 %2347
        %v2349 = vrcp.pop %v2348
        %v2350 = vmul.f32 %v2345, %v2349
        %2351 = vst.msk [vmem:[%s562] sm:$0x1] %vm2339, %v2350
        %s2352 = sand.u32 %s411, 1
        %s2353 = scalar_lea.sflag [#allocation3], %s2352
        %s2354 = sand.u32 %s411, 1
        %s2355 = scalar_lea.vmem [#allocation2], %s2354
        // Predicated region
        $region89: #{_lambda_.1} parent=87 // pred_check
          %p2356 = pneg %p421
        $region90: #{_lambda_.1} parent=87 // pred_check_branch
          %2358 = sbr.rel (%p2356) target = $region92
        $region91: #{_lambda_.1} parent=87 // pred_region
          %s2360 = ssub.s32 16, 16
          %2361 = vsyncadd %s2353, %s2360
          %s2362 = smul.addr %s31, 16
          %s2363 = scalar_lea.hbm %s17, %s2362
          %s2365 = sshll.u32 %s2355, 4
          %s2366 = int_to_ptr.vmem [resolvable:$true] %s2365
          %2368 = dma.vmem_to_hbm [thread:$0]  %s2366, 16, %s2363, %s2353
        $region92: #{_lambda_.1} parent=87 // pred_fallthru
          _
      $region88: #{_lambda_.1} parent=5 // pred_fallthru
        _
      %p2369 = scmp.le.s32.totalorder 2, %s26
      // Predicated region
      $region93: #{_lambda_.1} parent=5 // pred_check
        %p2370 = pneg %p2369
      $region94: #{_lambda_.1} parent=5 // pred_check_branch
        %2372 = sbr.rel (%p2370) target = $region96
      $region95: #{_lambda_.1} parent=5 // pred_region
        %s2373 = ssub.s32 %s26, 2
        // Predicated region
        $region97: #{_lambda_.1} parent=95 // pred_check
          %p2374 = pneg %p427
        $region98: #{_lambda_.1} parent=95 // pred_check_branch
          %2376 = sbr.rel (%p2374) target = $region100
        $region99: #{_lambda_.1} parent=95 // pred_region
          %s2377 = sand.u32 %s412, 1
          %s2378 = scalar_lea.sflag [#allocation3], %s2377
          %s2379 = sand.u32 %s412, 1
          %s2380 = scalar_lea.vmem [#allocation2], %s2379
          %2381 = dma.done %s2378, 16
        $region100: #{_lambda_.1} parent=95 // pred_fallthru
          _
      $region96: #{_lambda_.1} parent=5 // pred_fallthru
        _
    $region6: #{_lambda_.1} parent=1 // loop_footer
      %s30 = sadd.s32 1, %s26
    $region7: #{_lambda_.1} parent=1 // loop_footer_branch
      %25 = sbr.rel target = $region3
    $region8: #{_lambda_.1} parent=1 // loop_exit
      _
    %2382 = vsyncpa [#allocation3], 1
    %s2383 = scalar_lea.sflag [#allocation3], 1
    %2384 = vsyncpa %s2383, 1

</llo_original>
